<compile_context>
chip_gen: v5e
topology: v5e:2x2
jax: 0.10.0
libtpu: 0.0.40
codegen_flags: <defaults>
</compile_context>

<pallas_src>
import jax
import jax.numpy as jnp
import numpy as np
from jax import lax
from jax.experimental import pallas as pl
from jax.experimental.pallas import tpu as pltpu


# ----------------------------------------------------------------------------
# Host-side weight preparation
# ----------------------------------------------------------------------------
def _toeplitz_conv_weight(w_hwio, img_w):
    """(3,3,Cin,Cout) HWIO -> (3, img_w*Cin, img_w*Cout) block-Toeplitz weight.

    The 3 width taps and the horizontal SAME padding are folded into the weight so
    one conv kernel-row is a single lane-dense matmul over the unshifted rows:
        out[h] = sum_kh  x[h + kh - 1, :] @ wt[kh]      (rows outside [0,H) are 0)
    """
    w = np.asarray(w_hwio, np.float32)
    _, _, cin, cout = w.shape
    wt = np.zeros((3, img_w * cin, img_w * cout), np.float32)
    for kh in range(3):
        for kw in range(3):
            for wo in range(img_w):
                wi = wo + kw - 1
                if 0 <= wi < img_w:
                    wt[kh, wi * cin:(wi + 1) * cin,
                       wo * cout:(wo + 1) * cout] = w[kh, kw]
    return wt


def _flat_bias(b, img_w):
    # bias for the (H, W*C) layout: lane index w*C + c -> b[c]
    b = np.asarray(b, np.float32).reshape(-1)
    return np.tile(b, img_w).reshape(1, img_w * b.shape[0])


def prepare_kernel_params(params, img_w, mxu_dtype=jnp.bfloat16):
    """Stack per-block params for the fused RG chain.

    Block b in [0, n_rcab): RCAB.  Block n_rcab: final conv (its weight/bias live in
    the conv1 slot; the conv2 / CA slots of that block are zero-filled dummies).
    """
    rcabs = params["rcabs"]
    C = np.asarray(params["wf"]).shape[3]
    Cr = np.asarray(rcabs[0]["ca_w1"]).shape[1]
    WC = img_w * C

    w1s, b1s, w2s, b2s = [], [], [], []
    cw1s, cb1s, cw2s, cb2s, alphas = [], [], [], [], []
    for p in rcabs:
        w1s.append(_toeplitz_conv_weight(p["w1"], img_w))
        b1s.append(_flat_bias(p["b1"], img_w))
        w2s.append(_toeplitz_conv_weight(p["w2"], img_w))
        b2s.append(_flat_bias(p["b2"], img_w))
        cw1s.append(np.asarray(p["ca_w1"], np.float32))
        cb1s.append(np.asarray(p["ca_b1"], np.float32).reshape(1, Cr))
        # Pre-tile the 2nd 1x1 conv across W: gate lands directly in the flat
        # (W*C) lane layout, no cross-lane broadcast needed in the kernel.
        cw2s.append(np.tile(np.asarray(p["ca_w2"], np.float32), (1, img_w)))
        cb2s.append(_flat_bias(p["ca_b2"], img_w))
        alphas.append([float(p["alpha1"]), float(p["ca_alpha"])])
    # final conv slot
    w1s.append(_toeplitz_conv_weight(params["wf"], img_w))
    b1s.append(_flat_bias(params["bf"], img_w))
    w2s.append(np.zeros_like(w1s[0]))
    b2s.append(np.zeros_like(b1s[0]))
    cw1s.append(np.zeros((2 * C, Cr), np.float32))
    cb1s.append(np.zeros((1, Cr), np.float32))
    cw2s.append(np.zeros((Cr, WC), np.float32))
    cb2s.append(np.zeros((1, WC), np.float32))
    alphas.append([0.0, 0.0])

    return {
        "alphas": jnp.asarray(np.asarray(alphas, np.float32)),       # (nb, 2)
        "w1":  jnp.asarray(np.stack(w1s), mxu_dtype),                # (nb, 3, WC, WC)
        "b1":  jnp.asarray(np.stack(b1s), jnp.float32),              # (nb, 1, WC)
        "w2":  jnp.asarray(np.stack(w2s), mxu_dtype),
        "b2":  jnp.asarray(np.stack(b2s), jnp.float32),
        "cw1": jnp.asarray(np.stack(cw1s), jnp.float32),             # (nb, 2C, Cr)
        "cb1": jnp.asarray(np.stack(cb1s), jnp.float32),             # (nb, 1, Cr)
        "cw2f": jnp.asarray(np.stack(cw2s), jnp.float32),            # (nb, Cr, WC)
        "cb2f": jnp.asarray(np.stack(cb2s), jnp.float32),            # (nb, 1, WC)
    }


# ----------------------------------------------------------------------------
# Fused RG kernel: grid axis = block index (n_rcab RCABs, then the final conv).
# Activation (all batch images, flat (N*H, W*C) layout) persists in VMEM scratch.
# ----------------------------------------------------------------------------
def _rg_kernel(alpha_ref,                     # SMEM (nb, 2): [conv PReLU, CA PReLU]
               x_ref,                         # (N, H, WC)   original input / residual
               w1_ref, b1_ref,                # (1,3,WC,WC), (1,1,WC)
               w2_ref, b2_ref,                # (1,3,WC,WC), (1,1,WC)
               cw1_ref, cb1_ref,              # (1,2C,Cr),   (1,1,Cr)
               cw2_ref, cb2_ref,              # (1,Cr,WC),   (1,1,WC)  (W-tiled)
               o_ref,                         # (N, H, WC)   written on last block only
               act_ref):                      # VMEM scratch (N*H, WC) f32
    N, H, WC = x_ref.shape
    C = cw1_ref.shape[1] // 2
    W = WC // C
    NH = N * H
    b = pl.program_id(0)
    n_blocks = pl.num_programs(0)
    mdt = w1_ref.dtype                        # MXU operand dtype (bf16 or f32)

    @pl.when(b == 0)
    def _init():
        act_ref[...] = x_ref[...].reshape(NH, WC).astype(jnp.float32)

    act = act_ref[...]                        # (NH, WC) f32

    # local row index (h within each image) for zeroing the rolled-in halo rows
    h_idx = lax.broadcasted_iota(jnp.int32, (N, H, WC), 1).reshape(NH, WC)

    def conv3x3(src_f32, w3_ref, bias_row):
        # 3 aligned MXU matmuls on the unshifted rows; the +-1 vertical tap shift is
        # applied to the results with pltpu.roll (XLU) + per-image boundary masks.
        src = src_f32.astype(mdt)
        p0 = jnp.dot(src, w3_ref[0, 0], preferred_element_type=jnp.float32)
        p1 = jnp.dot(src, w3_ref[0, 1], preferred_element_type=jnp.float32)
        p2 = jnp.dot(src, w3_ref[0, 2], preferred_element_type=jnp.float32)
        up = jnp.where(h_idx == 0, 0.0, pltpu.roll(p0, 1, 0))          # p0[h-1]
        dn = jnp.where(h_idx == H - 1, 0.0, pltpu.roll(p2, NH - 1, 0))  # p2[h+1]
        return up + p1 + dn + bias_row

    # conv1 (RCAB) or the final conv (its weight lives in the conv1 slot).
    c1 = conv3x3(act, w1_ref, b1_ref[0])      # (NH, WC)

    @pl.when(b < n_blocks - 1)
    def _rcab():
        a1 = alpha_ref[b, 0]
        t1 = jnp.where(c1 >= 0, c1, a1 * c1)                   # PReLU (f32, VPU)
        t2 = conv3x3(t1, w2_ref, b2_ref[0])                    # (NH, WC)

        # ---- channel attention: global avg/max pool + squeeze-excite ----------
        t3 = t2.reshape(N, H, WC)
        col_sum = jnp.sum(t3, axis=1)                          # (N, WC)
        col_max = jnp.max(t3, axis=1)                          # (N, WC)
        ch_avg = jnp.sum(col_sum.reshape(N, W, C), axis=1) * (1.0 / (H * W))  # (N, C)
        ch_max = jnp.max(col_max.reshape(N, W, C), axis=1)                    # (N, C)
        y = jnp.concatenate([ch_avg, ch_max], axis=1)          # (N, 2C)

        h1 = jnp.dot(y, cw1_ref[0], preferred_element_type=jnp.float32) + cb1_ref[0]
        a2 = alpha_ref[b, 1]
        h1 = jnp.where(h1 >= 0, h1, a2 * h1)                   # PReLU
        g = jax.nn.sigmoid(
            jnp.dot(h1, cw2_ref[0], preferred_element_type=jnp.float32) + cb2_ref[0]
        )                                                      # (N, WC), W-replicated
        g_full = jnp.broadcast_to(g[:, None, :], (N, H, WC)).reshape(NH, WC)

        # gate, 1.2 residual scale, residual add; activation stays in VMEM.
        act_ref[...] = act + 1.2 * (t2 * g_full)

    @pl.when(b == n_blocks - 1)
    def _final():
        res = x_ref[...].reshape(NH, WC)
        o_ref[...] = (res + 1.1 * c1).reshape(N, H, WC).astype(o_ref.dtype)


def rg_forward(x_nchw, kp):
    N, C, H, W = x_nchw.shape
    WC = W * C
    n_blocks = kp["w1"].shape[0]
    Cr = kp["cw1"].shape[2]
    # NCHW -> lane-dense flat NHWC layout (one-time layout change at the boundary).
    x = jnp.transpose(x_nchw, (0, 2, 3, 1)).reshape(N, H, WC)

    out = pl.pallas_call(
        _rg_kernel,
        out_shape=jax.ShapeDtypeStruct((N, H, WC), x.dtype),
        grid=(n_blocks,),
        in_specs=[
            pl.BlockSpec(memory_space=pltpu.MemorySpace.SMEM),        # PReLU slopes
            pl.BlockSpec((N, H, WC), lambda b: (0, 0, 0)),            # x (residual)
            pl.BlockSpec((1, 3, WC, WC), lambda b: (b, 0, 0, 0)),     # conv1 / final
            pl.BlockSpec((1, 1, WC), lambda b: (b, 0, 0)),            # b1 (flat)
            pl.BlockSpec((1, 3, WC, WC), lambda b: (b, 0, 0, 0)),     # conv2
            pl.BlockSpec((1, 1, WC), lambda b: (b, 0, 0)),            # b2 (flat)
            pl.BlockSpec((1, 2 * C, Cr), lambda b: (b, 0, 0)),        # CA fc1
            pl.BlockSpec((1, 1, Cr), lambda b: (b, 0, 0)),
            pl.BlockSpec((1, Cr, WC), lambda b: (b, 0, 0)),           # CA fc2 (tiled)
            pl.BlockSpec((1, 1, WC), lambda b: (b, 0, 0)),
        ],
        out_specs=pl.BlockSpec((N, H, WC), lambda b: (0, 0, 0)),
        scratch_shapes=[pltpu.VMEM((N * H, WC), jnp.float32)],        # persistent act
        compiler_params=pltpu.CompilerParams(
            dimension_semantics=("arbitrary",),                       # sequential chain
            vmem_limit_bytes=64 * 1024 * 1024),
    )(kp["alphas"], x, kp["w1"], kp["b1"], kp["w2"], kp["b2"],
      kp["cw1"], kp["cb1"], kp["cw2f"], kp["cb2f"])

    return jnp.transpose(out.reshape(N, H, W, C), (0, 3, 1, 2))


# ----------------------------------------------------------------------------
# Deterministic parameter init (reference layout: HWIO convs, dense CA weights)
# ----------------------------------------------------------------------------
def init_params(key, C, n_rcab, reduction=8):
    Cr = max(C // reduction, 1)
    k = key

    def nxt():
        nonlocal k
        k, sub = jax.random.split(k)
        return sub

    params = {"rcabs": []}
    for _ in range(n_rcab):
        w1 = 0.05 * jax.random.normal(nxt(), (C, C, 3, 3), jnp.float32)       # OIHW
        b1 = 0.01 * jax.random.normal(nxt(), (C,), jnp.float32)
        w2 = 0.05 * jax.random.normal(nxt(), (C, C, 3, 3), jnp.float32)
        b2 = 0.01 * jax.random.normal(nxt(), (C,), jnp.float32)
        ca_w1 = 0.05 * jax.random.normal(nxt(), (Cr, 2 * C, 1, 1), jnp.float32)
        ca_b1 = 0.01 * jax.random.normal(nxt(), (Cr,), jnp.float32)
        ca_w2 = 0.05 * jax.random.normal(nxt(), (C, Cr, 1, 1), jnp.float32)
        ca_b2 = 0.01 * jax.random.normal(nxt(), (C,), jnp.float32)
        params["rcabs"].append({
            "w1": jnp.transpose(w1, (2, 3, 1, 0)),       # HWIO
            "b1": b1,
            "alpha1": jnp.float32(0.25),                 # nn.PReLU default init
            "w2": jnp.transpose(w2, (2, 3, 1, 0)),
            "b2": b2,
            "ca_w1": ca_w1[:, :, 0, 0].T,                # (2C, Cr)
            "ca_b1": ca_b1.reshape(1, Cr),
            "ca_w2": ca_w2[:, :, 0, 0].T,                # (Cr, C)
            "ca_b2": ca_b2.reshape(1, C),
            "ca_alpha": jnp.float32(0.25),
        })
    wf = 0.05 * jax.random.normal(nxt(), (C, C, 3, 3), jnp.float32)
    bf = 0.01 * jax.random.normal(nxt(), (C,), jnp.float32)
    params["wf"] = jnp.transpose(wf, (2, 3, 1, 0))
    params["bf"] = bf
    return params


# ----------------------------------------------------------------------------
# Pure-JAX reference (for correctness check against the Pallas kernel)
# ----------------------------------------------------------------------------
def _conv3x3_ref(x, w, b):
    y = lax.conv_general_dilated(x, w, window_strides=(1, 1), padding="SAME",
                                 dimension_numbers=("NHWC", "HWIO", "NHWC"))
    return y + b[None, None, None, :]


def _prelu(x, a):
    return jnp.where(x >= 0, x, a * x)


def rg_ref(x_nchw, params):
    x = jnp.transpose(x_nchw, (0, 2, 3, 1))
    res = x
    out = x
    for p in params["rcabs"]:
        r = out
        t = _prelu(_conv3x3_ref(out, p["w1"], p["b1"]), p["alpha1"])
        t = _conv3x3_ref(t, p["w2"], p["b2"])
        avg = jnp.mean(t, axis=(1, 2))
        mx = jnp.max(t, axis=(1, 2))
        y = jnp.concatenate([avg, mx], axis=1)                    # (N, 2C)
        h = _prelu(y @ p["ca_w1"] + p["ca_b1"], p["ca_alpha"])
        g = jax.nn.sigmoid(h @ p["ca_w2"] + p["ca_b2"])           # (N, C)
        out = r + 1.2 * (t * g[:, None, None, :])
    out = _conv3x3_ref(out, params["wf"], params["bf"])
    y = res + 1.1 * out
    return jnp.transpose(y, (0, 3, 1, 2))


if __name__ == "__main__":
    key = jax.random.PRNGKey(0)
    N, C, H, W = 2, 16, 16, 16            # small shapes; reduction=8 -> hidden = 2
    n_rcab = 2

    pkey, xkey = jax.random.split(key)
    params = init_params(pkey, C, n_rcab)
    # bf16 MXU operands (weights + casted LHS), f32 accumulation & elementwise.
    mxu_dtype = jnp.bfloat16
    kparams = prepare_kernel_params(params, W, mxu_dtype=mxu_dtype)
    x = jax.random.normal(xkey, (N, C, H, W), jnp.float32)        # NCHW input

    fwd = jax.jit(lambda xx: rg_forward(xx, kparams))
    out = jax.block_until_ready(fwd(x))

    ref = rg_ref(x, params)
    assert out.shape == x.shape and out.dtype == x.dtype
    err = float(jnp.max(jnp.abs(out - ref)))
    tol = 5e-2 if mxu_dtype == jnp.bfloat16 else 5e-3
    if err > tol:
        raise SystemExit(f"mismatch vs reference: max abs err = {err}")
    print("KERNEL_OK")
</pallas_src>

<mosaic_0001>
module attributes {stable_mosaic.version = 11 : i64} {
  func.func @_rg_kernel(%arg0: i32, %arg1: memref<3x2xf32, #tpu.memory_space<smem>>, %arg2: memref<2x16x256xf32, #tpu.memory_space<vmem>>, %arg3: memref<1x3x256x256xbf16, #tpu.memory_space<vmem>>, %arg4: memref<1x1x256xf32, #tpu.memory_space<vmem>>, %arg5: memref<1x3x256x256xbf16, #tpu.memory_space<vmem>>, %arg6: memref<1x1x256xf32, #tpu.memory_space<vmem>>, %arg7: memref<1x32x2xf32, #tpu.memory_space<vmem>>, %arg8: memref<1x1x2xf32, #tpu.memory_space<vmem>>, %arg9: memref<1x2x256xf32, #tpu.memory_space<vmem>>, %arg10: memref<1x1x256xf32, #tpu.memory_space<vmem>>, %arg11: memref<2x16x256xf32, #tpu.memory_space<vmem>>, %arg12: memref<32x256xf32, #tpu.memory_space<vmem>>) attributes {dimension_semantics = [#tpu.dimension_semantics<arbitrary>], iteration_bounds = array<i64: 3>, scalar_prefetch = 0 : i64, scratch_operands = 1 : i64, tpu.core_type = #tpu.core_type<tc>, window_params = [{transform_indices = @transform_0, window_bounds = array<i64: 3, 2>}, {pipeline_mode = #tpu.pipeline_mode<synchronous>, transform_indices = @transform_1, window_bounds = array<i64: 2, 16, 256>}, {transform_indices = @transform_2, window_bounds = array<i64: 1, 3, 256, 256>}, {transform_indices = @transform_3, window_bounds = array<i64: 1, 1, 256>}, {transform_indices = @transform_4, window_bounds = array<i64: 1, 3, 256, 256>}, {transform_indices = @transform_5, window_bounds = array<i64: 1, 1, 256>}, {transform_indices = @transform_6, window_bounds = array<i64: 1, 32, 2>}, {transform_indices = @transform_7, window_bounds = array<i64: 1, 1, 2>}, {transform_indices = @transform_8, window_bounds = array<i64: 1, 2, 256>}, {transform_indices = @transform_9, window_bounds = array<i64: 1, 1, 256>}, {pipeline_mode = #tpu.pipeline_mode<synchronous>, transform_indices = @transform_10, window_bounds = array<i64: 2, 16, 256>}]} {
    %c0_i32 = arith.constant 0 : i32
    %0 = arith.cmpi eq, %arg0, %c0_i32 : i32
    %1 = arith.extui %0 : i1 to i32
    %c0_i32_0 = arith.constant 0 : i32
    %2 = arith.cmpi ne, %1, %c0_i32_0 : i32
    scf.if %2 {
      %c0_23 = arith.constant 0 : index
      %c0_24 = arith.constant 0 : index
      %c0_25 = arith.constant 0 : index
      %38 = vector.load %arg2[%c0_23, %c0_24, %c0_25] : memref<2x16x256xf32, #tpu.memory_space<vmem>>, vector<2x16x256xf32>
      %39 = vector.shape_cast %38 : vector<2x16x256xf32> to vector<32x256xf32>
      %c0_26 = arith.constant 0 : index
      %c0_27 = arith.constant 0 : index
      %40 = vector.load %arg12[%c0_26, %c0_27] : memref<32x256xf32, #tpu.memory_space<vmem>>, vector<32x256xf32>
      tpu.vector_store %arg12[%c0_26, %c0_27], %39 {strides = array<i32>} : memref<32x256xf32, #tpu.memory_space<vmem>>, vector<32x256xf32>,
    } else {
    }
    %c0 = arith.constant 0 : index
    %c0_1 = arith.constant 0 : index
    %3 = vector.load %arg12[%c0, %c0_1] : memref<32x256xf32, #tpu.memory_space<vmem>>, vector<32x256xf32>
    %4 = tpu.iota {dimensions = array<i32: 1>} : vector<2x16x256xi32>
    %5 = vector.shape_cast %4 : vector<2x16x256xi32> to vector<32x256xi32>
    %c0_2 = arith.constant 0 : index
    %c0_3 = arith.constant 0 : index
    %c0_4 = arith.constant 0 : index
    %6 = vector.load %arg4[%c0_2, %c0_3, %c0_4] : memref<1x1x256xf32, #tpu.memory_space<vmem>>, vector<1x1x256xf32>
    %7 = vector.shape_cast %6 : vector<1x1x256xf32> to vector<1x256xf32>
    %8 = arith.truncf %3 : vector<32x256xf32> to vector<32x256xbf16>
    %c0_5 = arith.constant 0 : index
    %c0_6 = arith.constant 0 : index
    %c0_7 = arith.constant 0 : index
    %c0_8 = arith.constant 0 : index
    %9 = vector.load %arg3[%c0_5, %c0_6, %c0_7, %c0_8] : memref<1x3x256x256xbf16, #tpu.memory_space<vmem>>, vector<1x1x256x256xbf16>
    %10 = vector.shape_cast %9 : vector<1x1x256x256xbf16> to vector<256x256xbf16>
    %cst = arith.constant dense<0.000000e+00> : vector<32x256xf32>
    %11 = tpu.matmul %8, %10, %cst {dimension_numbers = #tpu.dot_dimension_numbers<[1], [0], [0], [1], [0, 0, 1, 1], [], []>} : vector<32x256xbf16>, vector<256x256xbf16>, vector<32x256xf32> -> vector<32x256xf32>
    %c0_9 = arith.constant 0 : index
    %c1 = arith.constant 1 : index
    %c0_10 = arith.constant 0 : index
    %c0_11 = arith.constant 0 : index
    %12 = vector.load %arg3[%c0_9, %c1, %c0_10, %c0_11] : memref<1x3x256x256xbf16, #tpu.memory_space<vmem>>, vector<1x1x256x256xbf16>
    %13 = vector.shape_cast %12 : vector<1x1x256x256xbf16> to vector<256x256xbf16>
    %cst_12 = arith.constant dense<0.000000e+00> : vector<32x256xf32>
    %14 = tpu.matmul %8, %13, %cst_12 {dimension_numbers = #tpu.dot_dimension_numbers<[1], [0], [0], [1], [0, 0, 1, 1], [], []>} : vector<32x256xbf16>, vector<256x256xbf16>, vector<32x256xf32> -> vector<32x256xf32>
    %c0_13 = arith.constant 0 : index
    %c2 = arith.constant 2 : index
    %c0_14 = arith.constant 0 : index
    %c0_15 = arith.constant 0 : index
    %15 = vector.load %arg3[%c0_13, %c2, %c0_14, %c0_15] : memref<1x3x256x256xbf16, #tpu.memory_space<vmem>>, vector<1x1x256x256xbf16>
    %16 = vector.shape_cast %15 : vector<1x1x256x256xbf16> to vector<256x256xbf16>
    %cst_16 = arith.constant dense<0.000000e+00> : vector<32x256xf32>
    %17 = tpu.matmul %8, %16, %cst_16 {dimension_numbers = #tpu.dot_dimension_numbers<[1], [0], [0], [1], [0, 0, 1, 1], [], []>} : vector<32x256xbf16>, vector<256x256xbf16>, vector<32x256xf32> -> vector<32x256xf32>
    %c0_i32_17 = arith.constant 0 : i32
    %18 = vector.broadcast %c0_i32_17 : i32 to vector<32x256xi32>
    %19 = arith.cmpi eq, %5, %18 : vector<32x256xi32>
    %c1_i32 = arith.constant 1 : i32
    %20 = tpu.dynamic_rotate %11 by %c1_i32 dim 0 : vector<32x256xf32>, i32 -> vector<32x256xf32>
    %cst_18 = arith.constant 0.000000e+00 : f32
    %21 = vector.broadcast %cst_18 : f32 to vector<32x256xf32>
    %22 = arith.select %19, %21, %20 : vector<32x256xi1>, vector<32x256xf32>
    %c15_i32 = arith.constant 15 : i32
    %23 = vector.broadcast %c15_i32 : i32 to vector<32x256xi32>
    %24 = arith.cmpi eq, %5, %23 : vector<32x256xi32>
    %c31_i32 = arith.constant 31 : i32
    %25 = tpu.dynamic_rotate %17 by %c31_i32 dim 0 : vector<32x256xf32>, i32 -> vector<32x256xf32>
    %cst_19 = arith.constant 0.000000e+00 : f32
    %26 = vector.broadcast %cst_19 : f32 to vector<32x256xf32>
    %27 = arith.select %24, %26, %25 : vector<32x256xi1>, vector<32x256xf32>
    %28 = arith.addf %22, %14 : vector<32x256xf32>
    %29 = arith.addf %28, %27 : vector<32x256xf32>
    %30 = vector.broadcast %7 : vector<1x256xf32> to vector<32x256xf32>
    %31 = arith.addf %29, %30 : vector<32x256xf32>
    %c2_i32 = arith.constant 2 : i32
    %32 = arith.cmpi slt, %arg0, %c2_i32 : i32
    %33 = arith.extui %32 : i1 to i32
    %c0_i32_20 = arith.constant 0 : i32
    %34 = arith.cmpi ne, %33, %c0_i32_20 : i32
    scf.if %34 {
      %38 = arith.index_cast %arg0 : i32 to index
      %c0_23 = arith.constant 0 : index
      %39 = memref.load %arg1[%38, %c0_23] : memref<3x2xf32, #tpu.memory_space<smem>>
      %cst_24 = arith.constant 0.000000e+00 : f32
      %40 = vector.broadcast %cst_24 : f32 to vector<32x256xf32>
      %41 = arith.cmpf oge, %31, %40 : vector<32x256xf32>
      %42 = vector.broadcast %39 : f32 to vector<32x256xf32>
      %43 = arith.mulf %42, %31 : vector<32x256xf32>
      %44 = arith.select %41, %31, %43 : vector<32x256xi1>, vector<32x256xf32>
      %c0_25 = arith.constant 0 : index
      %c0_26 = arith.constant 0 : index
      %c0_27 = arith.constant 0 : index
      %45 = vector.load %arg6[%c0_25, %c0_26, %c0_27] : memref<1x1x256xf32, #tpu.memory_space<vmem>>, vector<1x1x256xf32>
      %46 = vector.shape_cast %45 : vector<1x1x256xf32> to vector<1x256xf32>
      %47 = arith.truncf %44 : vector<32x256xf32> to vector<32x256xbf16>
      %c0_28 = arith.constant 0 : index
      %c0_29 = arith.constant 0 : index
      %c0_30 = arith.constant 0 : index
      %c0_31 = arith.constant 0 : index
      %48 = vector.load %arg5[%c0_28, %c0_29, %c0_30, %c0_31] : memref<1x3x256x256xbf16, #tpu.memory_space<vmem>>, vector<1x1x256x256xbf16>
      %49 = vector.shape_cast %48 : vector<1x1x256x256xbf16> to vector<256x256xbf16>
      %cst_32 = arith.constant dense<0.000000e+00> : vector<32x256xf32>
      %50 = tpu.matmul %47, %49, %cst_32 {dimension_numbers = #tpu.dot_dimension_numbers<[1], [0], [0], [1], [0, 0, 1, 1], [], []>} : vector<32x256xbf16>, vector<256x256xbf16>, vector<32x256xf32> -> vector<32x256xf32>
      %c0_33 = arith.constant 0 : index
      %c1_34 = arith.constant 1 : index
      %c0_35 = arith.constant 0 : index
      %c0_36 = arith.constant 0 : index
      %51 = vector.load %arg5[%c0_33, %c1_34, %c0_35, %c0_36] : memref<1x3x256x256xbf16, #tpu.memory_space<vmem>>, vector<1x1x256x256xbf16>
      %52 = vector.shape_cast %51 : vector<1x1x256x256xbf16> to vector<256x256xbf16>
      %cst_37 = arith.constant dense<0.000000e+00> : vector<32x256xf32>
      %53 = tpu.matmul %47, %52, %cst_37 {dimension_numbers = #tpu.dot_dimension_numbers<[1], [0], [0], [1], [0, 0, 1, 1], [], []>} : vector<32x256xbf16>, vector<256x256xbf16>, vector<32x256xf32> -> vector<32x256xf32>
      %c0_38 = arith.constant 0 : index
      %c2_39 = arith.constant 2 : index
      %c0_40 = arith.constant 0 : index
      %c0_41 = arith.constant 0 : index
      %54 = vector.load %arg5[%c0_38, %c2_39, %c0_40, %c0_41] : memref<1x3x256x256xbf16, #tpu.memory_space<vmem>>, vector<1x1x256x256xbf16>
      %55 = vector.shape_cast %54 : vector<1x1x256x256xbf16> to vector<256x256xbf16>
      %cst_42 = arith.constant dense<0.000000e+00> : vector<32x256xf32>
      %56 = tpu.matmul %47, %55, %cst_42 {dimension_numbers = #tpu.dot_dimension_numbers<[1], [0], [0], [1], [0, 0, 1, 1], [], []>} : vector<32x256xbf16>, vector<256x256xbf16>, vector<32x256xf32> -> vector<32x256xf32>
      %c0_i32_43 = arith.constant 0 : i32
      %57 = vector.broadcast %c0_i32_43 : i32 to vector<32x256xi32>
      %58 = arith.cmpi eq, %5, %57 : vector<32x256xi32>
      %c1_i32_44 = arith.constant 1 : i32
      %59 = tpu.dynamic_rotate %50 by %c1_i32_44 dim 0 : vector<32x256xf32>, i32 -> vector<32x256xf32>
      %cst_45 = arith.constant 0.000000e+00 : f32
      %60 = vector.broadcast %cst_45 : f32 to vector<32x256xf32>
      %61 = arith.select %58, %60, %59 : vector<32x256xi1>, vector<32x256xf32>
      %c15_i32_46 = arith.constant 15 : i32
      %62 = vector.broadcast %c15_i32_46 : i32 to vector<32x256xi32>
      %63 = arith.cmpi eq, %5, %62 : vector<32x256xi32>
      %c31_i32_47 = arith.constant 31 : i32
      %64 = tpu.dynamic_rotate %56 by %c31_i32_47 dim 0 : vector<32x256xf32>, i32 -> vector<32x256xf32>
      %cst_48 = arith.constant 0.000000e+00 : f32
      %65 = vector.broadcast %cst_48 : f32 to vector<32x256xf32>
      %66 = arith.select %63, %65, %64 : vector<32x256xi1>, vector<32x256xf32>
      %67 = arith.addf %61, %53 : vector<32x256xf32>
      %68 = arith.addf %67, %66 : vector<32x256xf32>
      %69 = vector.broadcast %46 : vector<1x256xf32> to vector<32x256xf32>
      %70 = arith.addf %68, %69 : vector<32x256xf32>
      %71 = vector.shape_cast %70 : vector<32x256xf32> to vector<2x16x256xf32>
      %cst_49 = arith.constant dense<0.000000e+00> : vector<2x256xf32>
      %72 = vector.multi_reduction <add>, %71, %cst_49 [1] : vector<2x16x256xf32> to vector<2x256xf32>
      %cst_50 = arith.constant dense<0xFF800000> : vector<2x256xf32>
      %73 = vector.multi_reduction <maximumf>, %71, %cst_50 [1] : vector<2x16x256xf32> to vector<2x256xf32>
      %74 = vector.shape_cast %72 : vector<2x256xf32> to vector<2x16x16xf32>
      %cst_51 = arith.constant dense<0.000000e+00> : vector<2x16xf32>
      %75 = vector.multi_reduction <add>, %74, %cst_51 [1] : vector<2x16x16xf32> to vector<2x16xf32>
      %cst_52 = arith.constant 3.906250e-03 : f32
      %76 = vector.broadcast %cst_52 : f32 to vector<2x16xf32>
      %77 = arith.mulf %75, %76 : vector<2x16xf32>
      %78 = vector.shape_cast %73 : vector<2x256xf32> to vector<2x16x16xf32>
      %cst_53 = arith.constant dense<0xFF800000> : vector<2x16xf32>
      %79 = vector.multi_reduction <maximumf>, %78, %cst_53 [1] : vector<2x16x16xf32> to vector<2x16xf32>
      %80 = tpu.concatenate %77, %79 in 1 : vector<2x16xf32>, vector<2x16xf32> -> vector<2x32xf32>
      %c0_54 = arith.constant 0 : index
      %c0_55 = arith.constant 0 : index
      %c0_56 = arith.constant 0 : index
      %81 = vector.load %arg7[%c0_54, %c0_55, %c0_56] : memref<1x32x2xf32, #tpu.memory_space<vmem>>, vector<1x32x2xf32>
      %82 = vector.shape_cast %81 : vector<1x32x2xf32> to vector<32x2xf32>
      %cst_57 = arith.constant dense<0.000000e+00> : vector<2x2xf32>
      %83 = tpu.matmul %80, %82, %cst_57 {dimension_numbers = #tpu.dot_dimension_numbers<[1], [0], [0], [1], [0, 0, 1, 1], [], []>} : vector<2x32xf32>, vector<32x2xf32>, vector<2x2xf32> -> vector<2x2xf32>
      %c0_58 = arith.constant 0 : index
      %c0_59 = arith.constant 0 : index
      %c0_60 = arith.constant 0 : index
      %84 = vector.load %arg8[%c0_58, %c0_59, %c0_60] : memref<1x1x2xf32, #tpu.memory_space<vmem>>, vector<1x1x2xf32>
      %85 = vector.shape_cast %84 : vector<1x1x2xf32> to vector<1x2xf32>
      %86 = vector.broadcast %85 : vector<1x2xf32> to vector<2x2xf32>
      %87 = arith.addf %83, %86 : vector<2x2xf32>
      %88 = arith.index_cast %arg0 : i32 to index
      %c1_61 = arith.constant 1 : index
      %89 = memref.load %arg1[%88, %c1_61] : memref<3x2xf32, #tpu.memory_space<smem>>
      %cst_62 = arith.constant 0.000000e+00 : f32
      %90 = vector.broadcast %cst_62 : f32 to vector<2x2xf32>
      %91 = arith.cmpf oge, %87, %90 : vector<2x2xf32>
      %92 = vector.broadcast %89 : f32 to vector<2x2xf32>
      %93 = arith.mulf %92, %87 : vector<2x2xf32>
      %94 = arith.select %91, %87, %93 : vector<2x2xi1>, vector<2x2xf32>
      %c0_63 = arith.constant 0 : index
      %c0_64 = arith.constant 0 : index
      %c0_65 = arith.constant 0 : index
      %95 = vector.load %arg9[%c0_63, %c0_64, %c0_65] : memref<1x2x256xf32, #tpu.memory_space<vmem>>, vector<1x2x256xf32>
      %96 = vector.shape_cast %95 : vector<1x2x256xf32> to vector<2x256xf32>
      %cst_66 = arith.constant dense<0.000000e+00> : vector<2x256xf32>
      %97 = tpu.matmul %94, %96, %cst_66 {dimension_numbers = #tpu.dot_dimension_numbers<[1], [0], [0], [1], [0, 0, 1, 1], [], []>} : vector<2x2xf32>, vector<2x256xf32>, vector<2x256xf32> -> vector<2x256xf32>
      %c0_67 = arith.constant 0 : index
      %c0_68 = arith.constant 0 : index
      %c0_69 = arith.constant 0 : index
      %98 = vector.load %arg10[%c0_67, %c0_68, %c0_69] : memref<1x1x256xf32, #tpu.memory_space<vmem>>, vector<1x1x256xf32>
      %99 = vector.shape_cast %98 : vector<1x1x256xf32> to vector<1x256xf32>
      %100 = vector.broadcast %99 : vector<1x256xf32> to vector<2x256xf32>
      %101 = arith.addf %97, %100 : vector<2x256xf32>
      %102 = arith.negf %101 : vector<2x256xf32>
      %103 = math.exp %102 : vector<2x256xf32>
      %cst_70 = arith.constant 1.000000e+00 : f32
      %104 = vector.broadcast %cst_70 : f32 to vector<2x256xf32>
      %105 = arith.addf %104, %103 : vector<2x256xf32>
      %106 = arith.divf %104, %105 : vector<2x256xf32>
      %107 = vector.shape_cast %106 : vector<2x256xf32> to vector<2x1x256xf32>
      %108 = vector.shape_cast %107 : vector<2x1x256xf32> to vector<2x1x256xf32>
      %109 = vector.broadcast %108 : vector<2x1x256xf32> to vector<2x16x256xf32>
      %110 = vector.shape_cast %109 : vector<2x16x256xf32> to vector<32x256xf32>
      %111 = arith.mulf %70, %110 : vector<32x256xf32>
      %cst_71 = arith.constant 1.200000e+00 : f32
      %112 = vector.broadcast %cst_71 : f32 to vector<32x256xf32>
      %113 = arith.mulf %112, %111 : vector<32x256xf32>
      %114 = arith.addf %3, %113 : vector<32x256xf32>
      %c0_72 = arith.constant 0 : index
      %c0_73 = arith.constant 0 : index
      %115 = vector.load %arg12[%c0_72, %c0_73] : memref<32x256xf32, #tpu.memory_space<vmem>>, vector<32x256xf32>
      tpu.vector_store %arg12[%c0_72, %c0_73], %114 {strides = array<i32>} : memref<32x256xf32, #tpu.memory_space<vmem>>, vector<32x256xf32>,
    } else {
    }
    %c2_i32_21 = arith.constant 2 : i32
    %35 = arith.cmpi eq, %arg0, %c2_i32_21 : i32
    %36 = arith.extui %35 : i1 to i32
    %c0_i32_22 = arith.constant 0 : i32
    %37 = arith.cmpi ne, %36, %c0_i32_22 : i32
    scf.if %37 {
      %c0_23 = arith.constant 0 : index
      %c0_24 = arith.constant 0 : index
      %c0_25 = arith.constant 0 : index
      %38 = vector.load %arg2[%c0_23, %c0_24, %c0_25] : memref<2x16x256xf32, #tpu.memory_space<vmem>>, vector<2x16x256xf32>
      %39 = vector.shape_cast %38 : vector<2x16x256xf32> to vector<32x256xf32>
      %cst_26 = arith.constant 1.100000e+00 : f32
      %40 = vector.broadcast %cst_26 : f32 to vector<32x256xf32>
      %41 = arith.mulf %40, %31 : vector<32x256xf32>
      %42 = arith.addf %39, %41 : vector<32x256xf32>
      %43 = vector.shape_cast %42 : vector<32x256xf32> to vector<2x16x256xf32>
      %c0_27 = arith.constant 0 : index
      %c0_28 = arith.constant 0 : index
      %c0_29 = arith.constant 0 : index
      %44 = vector.load %arg11[%c0_27, %c0_28, %c0_29] : memref<2x16x256xf32, #tpu.memory_space<vmem>>, vector<2x16x256xf32>
      tpu.vector_store %arg11[%c0_27, %c0_28, %c0_29], %43 {strides = array<i32>} : memref<2x16x256xf32, #tpu.memory_space<vmem>>, vector<2x16x256xf32>,
    } else {
    }
    return
  }
  func.func @transform_0(%arg0: i32) -> (i32, i32) {
    %c0_i32 = arith.constant 0 : i32
    %c0_i32_0 = arith.constant 0 : i32
    %c0_i32_1 = arith.constant 0 : i32
    return %c0_i32, %c0_i32_0 : i32, i32
  }
  func.func @transform_1(%arg0: i32) -> (i32, i32, i32) {
    %c0_i32 = arith.constant 0 : i32
    %c0_i32_0 = arith.constant 0 : i32
    %c0_i32_1 = arith.constant 0 : i32
    %c0_i32_2 = arith.constant 0 : i32
    return %c0_i32, %c0_i32_0, %c0_i32_1 : i32, i32, i32
  }
  func.func @transform_2(%arg0: i32) -> (i32, i32, i32, i32) {
    %c0_i32 = arith.constant 0 : i32
    %c0_i32_0 = arith.constant 0 : i32
    %c0_i32_1 = arith.constant 0 : i32
    %c0_i32_2 = arith.constant 0 : i32
    return %arg0, %c0_i32, %c0_i32_0, %c0_i32_1 : i32, i32, i32, i32
  }
  func.func @transform_3(%arg0: i32) -> (i32, i32, i32) {
    %c0_i32 = arith.constant 0 : i32
    %c0_i32_0 = arith.constant 0 : i32
    %c0_i32_1 = arith.constant 0 : i32
    return %arg0, %c0_i32, %c0_i32_0 : i32, i32, i32
  }
  func.func @transform_4(%arg0: i32) -> (i32, i32, i32, i32) {
    %c0_i32 = arith.constant 0 : i32
    %c0_i32_0 = arith.constant 0 : i32
    %c0_i32_1 = arith.constant 0 : i32
    %c0_i32_2 = arith.constant 0 : i32
    return %arg0, %c0_i32, %c0_i32_0, %c0_i32_1 : i32, i32, i32, i32
  }
  func.func @transform_5(%arg0: i32) -> (i32, i32, i32) {
    %c0_i32 = arith.constant 0 : i32
    %c0_i32_0 = arith.constant 0 : i32
    %c0_i32_1 = arith.constant 0 : i32
    return %arg0, %c0_i32, %c0_i32_0 : i32, i32, i32
  }
  func.func @transform_6(%arg0: i32) -> (i32, i32, i32) {
    %c0_i32 = arith.constant 0 : i32
    %c0_i32_0 = arith.constant 0 : i32
    %c0_i32_1 = arith.constant 0 : i32
    return %arg0, %c0_i32, %c0_i32_0 : i32, i32, i32
  }
  func.func @transform_7(%arg0: i32) -> (i32, i32, i32) {
    %c0_i32 = arith.constant 0 : i32
    %c0_i32_0 = arith.constant 0 : i32
    %c0_i32_1 = arith.constant 0 : i32
    return %arg0, %c0_i32, %c0_i32_0 : i32, i32, i32
  }
  func.func @transform_8(%arg0: i32) -> (i32, i32, i32) {
    %c0_i32 = arith.constant 0 : i32
    %c0_i32_0 = arith.constant 0 : i32
    %c0_i32_1 = arith.constant 0 : i32
    return %arg0, %c0_i32, %c0_i32_0 : i32, i32, i32
  }
  func.func @transform_9(%arg0: i32) -> (i32, i32, i32) {
    %c0_i32 = arith.constant 0 : i32
    %c0_i32_0 = arith.constant 0 : i32
    %c0_i32_1 = arith.constant 0 : i32
    return %arg0, %c0_i32, %c0_i32_0 : i32, i32, i32
  }
  func.func @transform_10(%arg0: i32) -> (i32, i32, i32) {
    %c0_i32 = arith.constant 0 : i32
    %c0_i32_0 = arith.constant 0 : i32
    %c0_i32_1 = arith.constant 0 : i32
    %c0_i32_2 = arith.constant 0 : i32
    return %c0_i32, %c0_i32_0, %c0_i32_1 : i32, i32, i32
  }
}

</mosaic_0001>

<llo_original>
// kernel: _lambda_.1
$region0: #{_lambda_.1}
  #allocation0 [shape = 'u32[]', space=smem, size = 0x4, offset = 0x4, fixed_abs, tag = 'smem constant byte address 0x4 - core index']
  #allocation1 [shape = 'u32[72,128]{1,0:T(1,128)}', space=vmem, size = 0x9000, scoped, tag = 'internal scratch']
  #allocation2 [shape = 'f32[32,256]{1,0:T(8,128)}', space=vmem, size = 0x8000, scoped, tag = 'scratch operand']
  %s0 = inlined_call_operand.hbm [shape: f32[3,2], index: 0, kind: input, shape index: {}]
  %s1 = inlined_call_operand.vmem [shape: f32[2,16,256], index: 1, kind: input, shape index: {}]
  %s2 = inlined_call_operand.hbm [shape: bf16[3,3,256,256], index: 2, kind: input, shape index: {}]
  %s3 = inlined_call_operand.hbm [shape: f32[3,1,256], index: 3, kind: input, shape index: {}]
  %s4 = inlined_call_operand.hbm [shape: bf16[3,3,256,256], index: 4, kind: input, shape index: {}]
  %s5 = inlined_call_operand.hbm [shape: f32[3,1,256], index: 5, kind: input, shape index: {}]
  %s6 = inlined_call_operand.hbm [shape: f32[3,32,2], index: 6, kind: input, shape index: {}]
  %s7 = inlined_call_operand.hbm [shape: f32[3,1,2], index: 7, kind: input, shape index: {}]
  %s8 = inlined_call_operand.hbm [shape: f32[3,2,256], index: 8, kind: input, shape index: {}]
  %s9 = inlined_call_operand.hbm [shape: f32[3,1,256], index: 9, kind: input, shape index: {}]
  %s10 = inlined_call_operand.vmem [shape: f32[2,16,256], index: 10, kind: output, shape index: {}]
  %s11 = sld [smem:[#allocation0]]
  $region121: #{_lambda_.1} parent=0
    _
  %s13 = ssub.s32 1, %s11
  %s14 = scalar_select 0, %s13, %s11
  $region1: #{_lambda_.1} parent=0
    #allocation3 [shape = 'u8[2048]{0}', space=smem, size = 0x800, scoped, tag = 'input window, operand 0, single buffered']
    #allocation4 [shape = 's32[2]{0}', space=sflag, size = 0x8, scoped, tag = 'scoped memory for _lambda_.1']
    #allocation5 [shape = 's32[2]{0}', space=sflag, size = 0x8, scoped, tag = 'scoped memory for _lambda_.1']
    #allocation6 [shape = 'u8[786432]{0}', space=vmem, size = 0xc0000, scoped, tag = 'input window, operand 2']
    #allocation7 [shape = 'u8[2048]{0}', space=vmem, size = 0x800, scoped, tag = 'input window, operand 3']
    #allocation8 [shape = 's32[2]{0}', space=sflag, size = 0x8, scoped, tag = 'scoped memory for _lambda_.1']
    #allocation9 [shape = 'u8[786432]{0}', space=vmem, size = 0xc0000, scoped, tag = 'input window, operand 4']
    #allocation10 [shape = 'u8[2048]{0}', space=vmem, size = 0x800, scoped, tag = 'input window, operand 5']
    #allocation11 [shape = 's32[2]{0}', space=sflag, size = 0x8, scoped, tag = 'scoped memory for _lambda_.1']
    #allocation12 [shape = 'u8[32768]{0}', space=vmem, size = 0x8000, scoped, tag = 'input window, operand 6']
    #allocation13 [shape = 'u8[1024]{0}', space=vmem, size = 0x400, scoped, tag = 'input window, operand 7']
    #allocation14 [shape = 's32[2]{0}', space=sflag, size = 0x8, scoped, tag = 'scoped memory for _lambda_.1']
    #allocation15 [shape = 'u8[4096]{0}', space=vmem, size = 0x1000, scoped, tag = 'input window, operand 8']
    #allocation16 [shape = 'u8[2048]{0}', space=vmem, size = 0x800, scoped, tag = 'input window, operand 9']
    #allocation17 [shape = 's32[2]{0}', space=sflag, size = 0x8, scoped, tag = 'scoped memory for _lambda_.1']
    %15 = vsyncpa [#allocation5], 0
    %16 = vsyncpa [#allocation4], 0
    %s17 = scalar_lea.sflag [#allocation4], 1
    %18 = vsyncpa %s17, 0
    %19 = vsyncpa [#allocation8], 0
    %s20 = scalar_lea.sflag [#allocation8], 1
    %21 = vsyncpa %s20, 0
    %22 = vsyncpa [#allocation11], 0
    %s23 = scalar_lea.sflag [#allocation11], 1
    %24 = vsyncpa %s23, 0
    %25 = vsyncpa [#allocation14], 0
    %s26 = scalar_lea.sflag [#allocation14], 1
    %27 = vsyncpa %s26, 0
    %28 = vsyncpa [#allocation17], 0
    %s29 = scalar_lea.sflag [#allocation17], 1
    %30 = vsyncpa %s29, 0
    loop: start=0, step=1, limit=5
    $region2: #{_lambda_.1} parent=1 // loop_pre_header
      _
    $region3: #{_lambda_.1} parent=1 // loop_header
      %s32 = sphi 0, %s36
      %p33 = scmp.ge.s32.totalorder %s32, 5
      %s40 = sphi 0, %s40
      %s42 = sphi 0, %s40
      %s43 = sphi 0, %s42
      %s57 = sphi 0, %s43
      %s61 = sphi 0, %s61
      %s63 = sphi 0, %s61
      %s64 = sphi 0, %s63
      %s78 = sphi 0, %s64
      %s84 = sphi 0, %s86
      %s87 = sphi 0, %s84
      %s88 = sphi 0, %s87
      %s104 = sphi 0, %s88
      %s110 = sphi 0, %s112
      %s113 = sphi 0, %s110
      %s114 = sphi 0, %s113
      %s130 = sphi 0, %s114
      %s136 = sphi 0, %s138
      %s139 = sphi 0, %s136
      %s140 = sphi 0, %s139
      %s156 = sphi 0, %s140
      %s162 = sphi 0, %s164
      %s165 = sphi 0, %s162
      %s166 = sphi 0, %s165
      %s182 = sphi 0, %s166
      %s188 = sphi 0, %s190
      %s191 = sphi 0, %s188
      %s192 = sphi 0, %s191
      %s208 = sphi 0, %s192
      %s214 = sphi 0, %s216
      %s217 = sphi 0, %s214
      %s218 = sphi 0, %s217
      %s234 = sphi 0, %s218
      %s240 = sphi 0, %s242
      %s243 = sphi 0, %s240
      %s244 = sphi 0, %s243
      %s260 = sphi 0, %s244
      %s266 = sphi 0, %s268
      %s269 = sphi 0, %s266
      %s270 = sphi 0, %s269
      %s286 = sphi 0, %s270
      %s290 = sphi 0, %s290
      %s292 = sphi 0, %s290
      %s293 = sphi 0, %s292
      %s307 = sphi 0, %s293
    $region4: #{_lambda_.1} parent=1 // loop_header_branch
      %35 = sbr.rel (%p33) target = $region8
    $region5: #{_lambda_.1} parent=1 // loop_body
      %s37 = ssub.s32 %s32, 1
      %s38 = ssub.s32 %s32, 2
      %s39 = sadd.s32 %s32, 1
      %s41 = sadd.s32 %s40, 1
      %p44 = scmp.eq.s32.totalorder %s32, 2
      %p45 = scmp.ne.s32.totalorder %s40, %s42
      %p46 = scmp.eq.s32.totalorder %s32, 0
      %p47 = por %p45, %p46
      %p48 = scmp.ne.s32.totalorder %s40, %s42
      %p49 = scmp.eq.s32.totalorder %s37, 2
      %p50 = por %p48, %p49
      %p51 = scmp.ne.s32.totalorder %s42, %s43
      %p52 = scmp.eq.s32.totalorder %s37, 0
      %p53 = por %p51, %p52
      %p54 = scmp.ne.s32.totalorder %s42, %s43
      %p55 = scmp.eq.s32.totalorder %s38, 2
      %p56 = por %p54, %p55
      %p58 = scmp.ne.s32.totalorder %s43, %s57
      %p59 = scmp.eq.s32.totalorder %s38, 0
      %p60 = por %p58, %p59
      %s62 = sadd.s32 %s61, 1
      %p65 = scmp.eq.s32.totalorder %s32, 2
      %p66 = scmp.ne.s32.totalorder %s61, %s63
      %p67 = scmp.eq.s32.totalorder %s32, 0
      %p68 = por %p66, %p67
      %p69 = scmp.ne.s32.totalorder %s61, %s63
      %p70 = scmp.eq.s32.totalorder %s37, 2
      %p71 = por %p69, %p70
      %p72 = scmp.ne.s32.totalorder %s63, %s64
      %p73 = scmp.eq.s32.totalorder %s37, 0
      %p74 = por %p72, %p73
      %p75 = scmp.ne.s32.totalorder %s63, %s64
      %p76 = scmp.eq.s32.totalorder %s38, 2
      %p77 = por %p75, %p76
      %p79 = scmp.ne.s32.totalorder %s64, %s78
      %p80 = scmp.eq.s32.totalorder %s38, 0
      %p81 = por %p79, %p80
      %s82 = ssub.s32 %s32, %s39
      %p83 = scmp.eq.s32.totalorder %s82, 0
      %s85 = sadd.s32 %s84, 1
      %s86 = scalar_select %p83, %s84, %s85
      %p89 = pneg %p83
      %p90 = scmp.eq.s32.totalorder %s32, 2
      %p91 = por %p89, %p90
      %p92 = scmp.ne.s32.totalorder %s84, %s87
      %p93 = scmp.eq.s32.totalorder %s32, 0
      %p94 = por %p92, %p93
      %p95 = scmp.ne.s32.totalorder %s84, %s87
      %p96 = scmp.eq.s32.totalorder %s37, 2
      %p97 = por %p95, %p96
      %p98 = scmp.ne.s32.totalorder %s87, %s88
      %p99 = scmp.eq.s32.totalorder %s37, 0
      %p100 = por %p98, %p99
      %p101 = scmp.ne.s32.totalorder %s87, %s88
      %p102 = scmp.eq.s32.totalorder %s38, 2
      %p103 = por %p101, %p102
      %p105 = scmp.ne.s32.totalorder %s88, %s104
      %p106 = scmp.eq.s32.totalorder %s38, 0
      %p107 = por %p105, %p106
      %s108 = ssub.s32 %s32, %s39
      %p109 = scmp.eq.s32.totalorder %s108, 0
      %s111 = sadd.s32 %s110, 1
      %s112 = scalar_select %p109, %s110, %s111
      %p115 = pneg %p109
      %p116 = scmp.eq.s32.totalorder %s32, 2
      %p117 = por %p115, %p116
      %p118 = scmp.ne.s32.totalorder %s110, %s113
      %p119 = scmp.eq.s32.totalorder %s32, 0
      %p120 = por %p118, %p119
      %p121 = scmp.ne.s32.totalorder %s110, %s113
      %p122 = scmp.eq.s32.totalorder %s37, 2
      %p123 = por %p121, %p122
      %p124 = scmp.ne.s32.totalorder %s113, %s114
      %p125 = scmp.eq.s32.totalorder %s37, 0
      %p126 = por %p124, %p125
      %p127 = scmp.ne.s32.totalorder %s113, %s114
      %p128 = scmp.eq.s32.totalorder %s38, 2
      %p129 = por %p127, %p128
      %p131 = scmp.ne.s32.totalorder %s114, %s130
      %p132 = scmp.eq.s32.totalorder %s38, 0
      %p133 = por %p131, %p132
      %s134 = ssub.s32 %s32, %s39
      %p135 = scmp.eq.s32.totalorder %s134, 0
      %s137 = sadd.s32 %s136, 1
      %s138 = scalar_select %p135, %s136, %s137
      %p141 = pneg %p135
      %p142 = scmp.eq.s32.totalorder %s32, 2
      %p143 = por %p141, %p142
      %p144 = scmp.ne.s32.totalorder %s136, %s139
      %p145 = scmp.eq.s32.totalorder %s32, 0
      %p146 = por %p144, %p145
      %p147 = scmp.ne.s32.totalorder %s136, %s139
      %p148 = scmp.eq.s32.totalorder %s37, 2
      %p149 = por %p147, %p148
      %p150 = scmp.ne.s32.totalorder %s139, %s140
      %p151 = scmp.eq.s32.totalorder %s37, 0
      %p152 = por %p150, %p151
      %p153 = scmp.ne.s32.totalorder %s139, %s140
      %p154 = scmp.eq.s32.totalorder %s38, 2
      %p155 = por %p153, %p154
      %p157 = scmp.ne.s32.totalorder %s140, %s156
      %p158 = scmp.eq.s32.totalorder %s38, 0
      %p159 = por %p157, %p158
      %s160 = ssub.s32 %s32, %s39
      %p161 = scmp.eq.s32.totalorder %s160, 0
      %s163 = sadd.s32 %s162, 1
      %s164 = scalar_select %p161, %s162, %s163
      %p167 = pneg %p161
      %p168 = scmp.eq.s32.totalorder %s32, 2
      %p169 = por %p167, %p168
      %p170 = scmp.ne.s32.totalorder %s162, %s165
      %p171 = scmp.eq.s32.totalorder %s32, 0
      %p172 = por %p170, %p171
      %p173 = scmp.ne.s32.totalorder %s162, %s165
      %p174 = scmp.eq.s32.totalorder %s37, 2
      %p175 = por %p173, %p174
      %p176 = scmp.ne.s32.totalorder %s165, %s166
      %p177 = scmp.eq.s32.totalorder %s37, 0
      %p178 = por %p176, %p177
      %p179 = scmp.ne.s32.totalorder %s165, %s166
      %p180 = scmp.eq.s32.totalorder %s38, 2
      %p181 = por %p179, %p180
      %p183 = scmp.ne.s32.totalorder %s166, %s182
      %p184 = scmp.eq.s32.totalorder %s38, 0
      %p185 = por %p183, %p184
      %s186 = ssub.s32 %s32, %s39
      %p187 = scmp.eq.s32.totalorder %s186, 0
      %s189 = sadd.s32 %s188, 1
      %s190 = scalar_select %p187, %s188, %s189
      %p193 = pneg %p187
      %p194 = scmp.eq.s32.totalorder %s32, 2
      %p195 = por %p193, %p194
      %p196 = scmp.ne.s32.totalorder %s188, %s191
      %p197 = scmp.eq.s32.totalorder %s32, 0
      %p198 = por %p196, %p197
      %p199 = scmp.ne.s32.totalorder %s188, %s191
      %p200 = scmp.eq.s32.totalorder %s37, 2
      %p201 = por %p199, %p200
      %p202 = scmp.ne.s32.totalorder %s191, %s192
      %p203 = scmp.eq.s32.totalorder %s37, 0
      %p204 = por %p202, %p203
      %p205 = scmp.ne.s32.totalorder %s191, %s192
      %p206 = scmp.eq.s32.totalorder %s38, 2
      %p207 = por %p205, %p206
      %p209 = scmp.ne.s32.totalorder %s192, %s208
      %p210 = scmp.eq.s32.totalorder %s38, 0
      %p211 = por %p209, %p210
      %s212 = ssub.s32 %s32, %s39
      %p213 = scmp.eq.s32.totalorder %s212, 0
      %s215 = sadd.s32 %s214, 1
      %s216 = scalar_select %p213, %s214, %s215
      %p219 = pneg %p213
      %p220 = scmp.eq.s32.totalorder %s32, 2
      %p221 = por %p219, %p220
      %p222 = scmp.ne.s32.totalorder %s214, %s217
      %p223 = scmp.eq.s32.totalorder %s32, 0
      %p224 = por %p222, %p223
      %p225 = scmp.ne.s32.totalorder %s214, %s217
      %p226 = scmp.eq.s32.totalorder %s37, 2
      %p227 = por %p225, %p226
      %p228 = scmp.ne.s32.totalorder %s217, %s218
      %p229 = scmp.eq.s32.totalorder %s37, 0
      %p230 = por %p228, %p229
      %p231 = scmp.ne.s32.totalorder %s217, %s218
      %p232 = scmp.eq.s32.totalorder %s38, 2
      %p233 = por %p231, %p232
      %p235 = scmp.ne.s32.totalorder %s218, %s234
      %p236 = scmp.eq.s32.totalorder %s38, 0
      %p237 = por %p235, %p236
      %s238 = ssub.s32 %s32, %s39
      %p239 = scmp.eq.s32.totalorder %s238, 0
      %s241 = sadd.s32 %s240, 1
      %s242 = scalar_select %p239, %s240, %s241
      %p245 = pneg %p239
      %p246 = scmp.eq.s32.totalorder %s32, 2
      %p247 = por %p245, %p246
      %p248 = scmp.ne.s32.totalorder %s240, %s243
      %p249 = scmp.eq.s32.totalorder %s32, 0
      %p250 = por %p248, %p249
      %p251 = scmp.ne.s32.totalorder %s240, %s243
      %p252 = scmp.eq.s32.totalorder %s37, 2
      %p253 = por %p251, %p252
      %p254 = scmp.ne.s32.totalorder %s243, %s244
      %p255 = scmp.eq.s32.totalorder %s37, 0
      %p256 = por %p254, %p255
      %p257 = scmp.ne.s32.totalorder %s243, %s244
      %p258 = scmp.eq.s32.totalorder %s38, 2
      %p259 = por %p257, %p258
      %p261 = scmp.ne.s32.totalorder %s244, %s260
      %p262 = scmp.eq.s32.totalorder %s38, 0
      %p263 = por %p261, %p262
      %s264 = ssub.s32 %s32, %s39
      %p265 = scmp.eq.s32.totalorder %s264, 0
      %s267 = sadd.s32 %s266, 1
      %s268 = scalar_select %p265, %s266, %s267
      %p271 = pneg %p265
      %p272 = scmp.eq.s32.totalorder %s32, 2
      %p273 = por %p271, %p272
      %p274 = scmp.ne.s32.totalorder %s266, %s269
      %p275 = scmp.eq.s32.totalorder %s32, 0
      %p276 = por %p274, %p275
      %p277 = scmp.ne.s32.totalorder %s266, %s269
      %p278 = scmp.eq.s32.totalorder %s37, 2
      %p279 = por %p277, %p278
      %p280 = scmp.ne.s32.totalorder %s269, %s270
      %p281 = scmp.eq.s32.totalorder %s37, 0
      %p282 = por %p280, %p281
      %p283 = scmp.ne.s32.totalorder %s269, %s270
      %p284 = scmp.eq.s32.totalorder %s38, 2
      %p285 = por %p283, %p284
      %p287 = scmp.ne.s32.totalorder %s270, %s286
      %p288 = scmp.eq.s32.totalorder %s38, 0
      %p289 = por %p287, %p288
      %s291 = sadd.s32 %s290, 1
      %p294 = scmp.eq.s32.totalorder %s32, 2
      %p295 = scmp.ne.s32.totalorder %s290, %s292
      %p296 = scmp.eq.s32.totalorder %s32, 0
      %p297 = por %p295, %p296
      %p298 = scmp.ne.s32.totalorder %s290, %s292
      %p299 = scmp.eq.s32.totalorder %s37, 2
      %p300 = por %p298, %p299
      %p301 = scmp.ne.s32.totalorder %s292, %s293
      %p302 = scmp.eq.s32.totalorder %s37, 0
      %p303 = por %p301, %p302
      %p304 = scmp.ne.s32.totalorder %s292, %s293
      %p305 = scmp.eq.s32.totalorder %s38, 2
      %p306 = por %p304, %p305
      %p308 = scmp.ne.s32.totalorder %s293, %s307
      %p309 = scmp.eq.s32.totalorder %s38, 0
      %p310 = por %p308, %p309
      %p311 = scmp.le.s32.totalorder 1, %s32
      %p312 = scmp.lt.s32.totalorder %s32, 4
      %p313 = pnand %p311, %p312
      %p314 = pneg %p313
      // Predicated region
      $region9: #{_lambda_.1} parent=5 // pred_check
        _
      $region10: #{_lambda_.1} parent=5 // pred_check_branch
        %316 = sbr.rel (%p313) target = $region12
      $region11: #{_lambda_.1} parent=5 // pred_region
        %s317 = ssub.s32 %s32, 1
        // Predicated region
        $region13: #{_lambda_.1} parent=11 // pred_check
          %p318 = pneg %p53
        $region14: #{_lambda_.1} parent=11 // pred_check_branch
          %320 = sbr.rel (%p318) target = $region16
        $region15: #{_lambda_.1} parent=11 // pred_region
          %322 = vsyncadd [#allocation5], 0
          %s324 = sshll.u32 %s0, 4
          %s325 = int_to_ptr.hbm [resolvable:$true] %s324
          %327 = dma.hbm_to_smem %s325, 64, [#allocation3], [#allocation5]
        $region16: #{_lambda_.1} parent=11 // pred_fallthru
          _
        // Predicated region
        $region17: #{_lambda_.1} parent=11 // pred_check
          %p328 = pneg %p74
        $region18: #{_lambda_.1} parent=11 // pred_check_branch
          %330 = sbr.rel (%p328) target = $region20
        $region19: #{_lambda_.1} parent=11 // pred_region
          _
        $region20: #{_lambda_.1} parent=11 // pred_fallthru
          _
      $region12: #{_lambda_.1} parent=5 // pred_fallthru
        _
      %p331 = scmp.lt.s32.totalorder %s32, 3
      // Predicated region
      $region21: #{_lambda_.1} parent=5 // pred_check
        %p332 = pneg %p331
      $region22: #{_lambda_.1} parent=5 // pred_check_branch
        %334 = sbr.rel (%p332) target = $region24
      $region23: #{_lambda_.1} parent=5 // pred_region
        // Predicated region
        $region25: #{_lambda_.1} parent=23 // pred_check
          %p335 = pneg %p94
        $region26: #{_lambda_.1} parent=23 // pred_check_branch
          %337 = sbr.rel (%p335) target = $region28
        $region27: #{_lambda_.1} parent=23 // pred_region
          %s338 = sand.u32 %s84, 1
          %s339 = scalar_lea.sflag [#allocation4], %s338
          %s340 = sand.u32 %s84, 1
          %s341 = smul.addr %s340, 768
          %s342 = scalar_lea.vmem [#allocation6], %s341
          %344 = vsyncadd %s339, 0
          %s345 = smul.addr %s32, 192
          %s346 = smul.addr %s345, 4
          %s347 = scalar_lea.hbm %s2, %s346
          %s348 = sshll.u32 %s347, 4
          %s349 = int_to_ptr.hbm [resolvable:$true] %s348
          %s350 = sshll.u32 %s342, 4
          %s351 = int_to_ptr.vmem [resolvable:$true] %s350
          %356 = dma.hbm_to_vmem [thread:$0]  %s349, 12288, %s351, %s339, 128, 128, 8
        $region28: #{_lambda_.1} parent=23 // pred_fallthru
          _
        // Predicated region
        $region29: #{_lambda_.1} parent=23 // pred_check
          %p357 = pneg %p120
        $region30: #{_lambda_.1} parent=23 // pred_check_branch
          %359 = sbr.rel (%p357) target = $region32
        $region31: #{_lambda_.1} parent=23 // pred_region
          %s360 = sand.u32 %s32, 1
          %s361 = scalar_lea.sflag [#allocation8], %s360
          %s362 = sand.u32 %s110, 1
          %s363 = smul.addr %s362, 2
          %s364 = scalar_lea.vmem [#allocation7], %s363
          %366 = vsyncadd %s361, 0
          %s367 = smul.addr %s32, 2
          %s368 = scalar_lea.hbm %s3, %s367
          %s370 = sshll.u32 %s368, 4
          %s371 = int_to_ptr.hbm [resolvable:$true] %s370
          %s372 = sshll.u32 %s364, 4
          %s373 = int_to_ptr.vmem [resolvable:$true] %s372
          %375 = dma.hbm_to_vmem [thread:$0]  %s371, 32, %s373, %s361
        $region32: #{_lambda_.1} parent=23 // pred_fallthru
          _
        // Predicated region
        $region33: #{_lambda_.1} parent=23 // pred_check
          %p376 = pneg %p146
        $region34: #{_lambda_.1} parent=23 // pred_check_branch
          %378 = sbr.rel (%p376) target = $region36
        $region35: #{_lambda_.1} parent=23 // pred_region
          %s379 = sand.u32 %s32, 1
          %s380 = scalar_lea.sflag [#allocation8], %s379
          %s381 = sand.u32 %s136, 1
          %s382 = smul.addr %s381, 768
          %s383 = scalar_lea.vmem [#allocation9], %s382
          %385 = vsyncadd %s380, 0
          %s386 = smul.addr %s32, 192
          %s387 = smul.addr %s386, 4
          %s388 = scalar_lea.hbm %s4, %s387
          %s389 = sshll.u32 %s388, 4
          %s390 = int_to_ptr.hbm [resolvable:$true] %s389
          %s391 = sshll.u32 %s383, 4
          %s392 = int_to_ptr.vmem [resolvable:$true] %s391
          %397 = dma.hbm_to_vmem [thread:$0]  %s390, 12288, %s392, %s380, 128, 128, 8
        $region36: #{_lambda_.1} parent=23 // pred_fallthru
          _
        // Predicated region
        $region37: #{_lambda_.1} parent=23 // pred_check
          %p398 = pneg %p172
        $region38: #{_lambda_.1} parent=23 // pred_check_branch
          %400 = sbr.rel (%p398) target = $region40
        $region39: #{_lambda_.1} parent=23 // pred_region
          %s401 = sand.u32 %s32, 1
          %s402 = scalar_lea.sflag [#allocation11], %s401
          %s403 = sand.u32 %s162, 1
          %s404 = smul.addr %s403, 2
          %s405 = scalar_lea.vmem [#allocation10], %s404
          %407 = vsyncadd %s402, 0
          %s408 = smul.addr %s32, 2
          %s409 = scalar_lea.hbm %s5, %s408
          %s411 = sshll.u32 %s409, 4
          %s412 = int_to_ptr.hbm [resolvable:$true] %s411
          %s413 = sshll.u32 %s405, 4
          %s414 = int_to_ptr.vmem [resolvable:$true] %s413
          %416 = dma.hbm_to_vmem [thread:$0]  %s412, 32, %s414, %s402
        $region40: #{_lambda_.1} parent=23 // pred_fallthru
          _
        // Predicated region
        $region41: #{_lambda_.1} parent=23 // pred_check
          %p417 = pneg %p198
        $region42: #{_lambda_.1} parent=23 // pred_check_branch
          %419 = sbr.rel (%p417) target = $region44
        $region43: #{_lambda_.1} parent=23 // pred_region
          %s420 = sand.u32 %s32, 1
          %s421 = scalar_lea.sflag [#allocation11], %s420
          %s422 = sand.u32 %s188, 1
          %s423 = smul.addr %s422, 32
          %s424 = scalar_lea.vmem [#allocation12], %s423
          %426 = vsyncadd %s421, 0
          %s427 = smul.addr %s32, 4
          %s428 = smul.addr %s427, 8
          %s429 = scalar_lea.hbm %s6, %s428
          %s430 = sshll.u32 %s429, 4
          %s431 = int_to_ptr.hbm [resolvable:$true] %s430
          %s432 = sshll.u32 %s424, 4
          %s433 = int_to_ptr.vmem [resolvable:$true] %s432
          %438 = dma.hbm_to_vmem [thread:$0]  %s431, 512, %s433, %s421, 128, 128, 8
        $region44: #{_lambda_.1} parent=23 // pred_fallthru
          _
        // Predicated region
        $region45: #{_lambda_.1} parent=23 // pred_check
          %p439 = pneg %p224
        $region46: #{_lambda_.1} parent=23 // pred_check_branch
          %441 = sbr.rel (%p439) target = $region48
        $region47: #{_lambda_.1} parent=23 // pred_region
          %s442 = sand.u32 %s32, 1
          %s443 = scalar_lea.sflag [#allocation14], %s442
          %s444 = sand.u32 %s214, 1
          %s445 = scalar_lea.vmem [#allocation13], %s444
          %447 = vsyncadd %s443, 0
          %s448 = scalar_lea.hbm %s7, %s32
          %s450 = sshll.u32 %s448, 4
          %s451 = int_to_ptr.hbm [resolvable:$true] %s450
          %s452 = sshll.u32 %s445, 4
          %s453 = int_to_ptr.vmem [resolvable:$true] %s452
          %455 = dma.hbm_to_vmem [thread:$0]  %s451, 16, %s453, %s443
        $region48: #{_lambda_.1} parent=23 // pred_fallthru
          _
        // Predicated region
        $region49: #{_lambda_.1} parent=23 // pred_check
          %p456 = pneg %p250
        $region50: #{_lambda_.1} parent=23 // pred_check_branch
          %458 = sbr.rel (%p456) target = $region52
        $region51: #{_lambda_.1} parent=23 // pred_region
          %s459 = sand.u32 %s32, 1
          %s460 = scalar_lea.sflag [#allocation14], %s459
          %s461 = sand.u32 %s240, 1
          %s462 = smul.addr %s461, 4
          %s463 = scalar_lea.vmem [#allocation15], %s462
          %465 = vsyncadd %s460, 0
          %s466 = smul.addr %s32, 2
          %s467 = smul.addr %s466, 2
          %s468 = scalar_lea.hbm %s8, %s467
          %s470 = sshll.u32 %s468, 4
          %s471 = int_to_ptr.hbm [resolvable:$true] %s470
          %s472 = sshll.u32 %s463, 4
          %s473 = int_to_ptr.vmem [resolvable:$true] %s472
          %475 = dma.hbm_to_vmem [thread:$0]  %s471, 64, %s473, %s460
        $region52: #{_lambda_.1} parent=23 // pred_fallthru
          _
        // Predicated region
        $region53: #{_lambda_.1} parent=23 // pred_check
          %p476 = pneg %p276
        $region54: #{_lambda_.1} parent=23 // pred_check_branch
          %478 = sbr.rel (%p476) target = $region56
        $region55: #{_lambda_.1} parent=23 // pred_region
          %s479 = sand.u32 %s266, 1
          %s480 = scalar_lea.sflag [#allocation17], %s479
          %s481 = sand.u32 %s266, 1
          %s482 = smul.addr %s481, 2
          %s483 = scalar_lea.vmem [#allocation16], %s482
          %485 = vsyncadd %s480, 0
          %s486 = smul.addr %s32, 2
          %s487 = scalar_lea.hbm %s9, %s486
          %s489 = sshll.u32 %s487, 4
          %s490 = int_to_ptr.hbm [resolvable:$true] %s489
          %s491 = sshll.u32 %s483, 4
          %s492 = int_to_ptr.vmem [resolvable:$true] %s491
          %494 = dma.hbm_to_vmem [thread:$0]  %s490, 32, %s492, %s480
        $region56: #{_lambda_.1} parent=23 // pred_fallthru
          _
      $region24: #{_lambda_.1} parent=5 // pred_fallthru
        _
      %p495 = scmp.le.s32.totalorder 1, %s32
      %p496 = scmp.lt.s32.totalorder %s32, 4
      %p497 = pnand %p495, %p496
      %p498 = pneg %p497
      // Predicated region
      $region57: #{_lambda_.1} parent=5 // pred_check
        _
      $region58: #{_lambda_.1} parent=5 // pred_check_branch
        %500 = sbr.rel (%p497) target = $region60
      $region59: #{_lambda_.1} parent=5 // pred_region
        %s501 = ssub.s32 %s32, 1
        // Predicated region
        $region61: #{_lambda_.1} parent=59 // pred_check
          %p502 = pneg %p53
        $region62: #{_lambda_.1} parent=59 // pred_check_branch
          %504 = sbr.rel (%p502) target = $region64
        $region63: #{_lambda_.1} parent=59 // pred_region
          %506 = dma.done [#allocation5], 64
        $region64: #{_lambda_.1} parent=59 // pred_fallthru
          _
        %s507 = sand.u32 %s87, 1
        %s508 = scalar_lea.sflag [#allocation4], %s507
        %s509 = sand.u32 %s87, 1
        %s510 = smul.addr %s509, 768
        %s511 = scalar_lea.vmem [#allocation6], %s510
        // Predicated region
        $region65: #{_lambda_.1} parent=59 // pred_check
          %p512 = pneg %p100
        $region66: #{_lambda_.1} parent=59 // pred_check_branch
          %514 = sbr.rel (%p512) target = $region68
        $region67: #{_lambda_.1} parent=59 // pred_region
          %516 = dma.done %s508, 12288
        $region68: #{_lambda_.1} parent=59 // pred_fallthru
          _
        %s517 = sand.u32 %s37, 1
        %s518 = scalar_lea.sflag [#allocation8], %s517
        %s519 = sand.u32 %s113, 1
        %s520 = smul.addr %s519, 2
        %s521 = scalar_lea.vmem [#allocation7], %s520
        // Predicated region
        $region69: #{_lambda_.1} parent=59 // pred_check
          %p522 = pneg %p126
        $region70: #{_lambda_.1} parent=59 // pred_check_branch
          %524 = sbr.rel (%p522) target = $region72
        $region71: #{_lambda_.1} parent=59 // pred_region
          %526 = dma.done %s518, 32
        $region72: #{_lambda_.1} parent=59 // pred_fallthru
          _
        %s527 = sand.u32 %s37, 1
        %s528 = scalar_lea.sflag [#allocation8], %s527
        %s529 = sand.u32 %s139, 1
        %s530 = smul.addr %s529, 768
        %s531 = scalar_lea.vmem [#allocation9], %s530
        // Predicated region
        $region73: #{_lambda_.1} parent=59 // pred_check
          %p532 = pneg %p152
        $region74: #{_lambda_.1} parent=59 // pred_check_branch
          %534 = sbr.rel (%p532) target = $region76
        $region75: #{_lambda_.1} parent=59 // pred_region
          %536 = dma.done %s528, 12288
        $region76: #{_lambda_.1} parent=59 // pred_fallthru
          _
        %s537 = sand.u32 %s37, 1
        %s538 = scalar_lea.sflag [#allocation11], %s537
        %s539 = sand.u32 %s165, 1
        %s540 = smul.addr %s539, 2
        %s541 = scalar_lea.vmem [#allocation10], %s540
        // Predicated region
        $region77: #{_lambda_.1} parent=59 // pred_check
          %p542 = pneg %p178
        $region78: #{_lambda_.1} parent=59 // pred_check_branch
          %544 = sbr.rel (%p542) target = $region80
        $region79: #{_lambda_.1} parent=59 // pred_region
          %546 = dma.done %s538, 32
        $region80: #{_lambda_.1} parent=59 // pred_fallthru
          _
        %s547 = sand.u32 %s37, 1
        %s548 = scalar_lea.sflag [#allocation11], %s547
        %s549 = sand.u32 %s191, 1
        %s550 = smul.addr %s549, 32
        %s551 = scalar_lea.vmem [#allocation12], %s550
        // Predicated region
        $region81: #{_lambda_.1} parent=59 // pred_check
          %p552 = pneg %p204
        $region82: #{_lambda_.1} parent=59 // pred_check_branch
          %554 = sbr.rel (%p552) target = $region84
        $region83: #{_lambda_.1} parent=59 // pred_region
          %556 = dma.done %s548, 512
        $region84: #{_lambda_.1} parent=59 // pred_fallthru
          _
        %s557 = sand.u32 %s37, 1
        %s558 = scalar_lea.sflag [#allocation14], %s557
        %s559 = sand.u32 %s217, 1
        %s560 = scalar_lea.vmem [#allocation13], %s559
        // Predicated region
        $region85: #{_lambda_.1} parent=59 // pred_check
          %p561 = pneg %p230
        $region86: #{_lambda_.1} parent=59 // pred_check_branch
          %563 = sbr.rel (%p561) target = $region88
        $region87: #{_lambda_.1} parent=59 // pred_region
          %565 = dma.done %s558, 16
        $region88: #{_lambda_.1} parent=59 // pred_fallthru
          _
        %s566 = sand.u32 %s37, 1
        %s567 = scalar_lea.sflag [#allocation14], %s566
        %s568 = sand.u32 %s243, 1
        %s569 = smul.addr %s568, 4
        %s570 = scalar_lea.vmem [#allocation15], %s569
        // Predicated region
        $region89: #{_lambda_.1} parent=59 // pred_check
          %p571 = pneg %p256
        $region90: #{_lambda_.1} parent=59 // pred_check_branch
          %573 = sbr.rel (%p571) target = $region92
        $region91: #{_lambda_.1} parent=59 // pred_region
          %575 = dma.done %s567, 64
        $region92: #{_lambda_.1} parent=59 // pred_fallthru
          _
        %s576 = sand.u32 %s269, 1
        %s577 = scalar_lea.sflag [#allocation17], %s576
        %s578 = sand.u32 %s269, 1
        %s579 = smul.addr %s578, 2
        %s580 = scalar_lea.vmem [#allocation16], %s579
        // Predicated region
        $region93: #{_lambda_.1} parent=59 // pred_check
          %p581 = pneg %p282
        $region94: #{_lambda_.1} parent=59 // pred_check_branch
          %583 = sbr.rel (%p581) target = $region96
        $region95: #{_lambda_.1} parent=59 // pred_region
          %585 = dma.done %s577, 32
        $region96: #{_lambda_.1} parent=59 // pred_fallthru
          _
        %586 = sfence
        %p587 = pneg %p53
        %p588 = pneg %p50
        %p589 = pneg %p74
        %p590 = pneg %p71
        %s591 = sand.u32 %s87, 1
        %s592 = scalar_lea.sflag [#allocation4], %s591
        %s593 = sand.u32 %s87, 1
        %s594 = smul.addr %s593, 768
        %s595 = scalar_lea.vmem [#allocation6], %s594
        %p596 = pneg %p100
        %p597 = pneg %p97
        %s598 = sand.u32 %s37, 1
        %s599 = scalar_lea.sflag [#allocation8], %s598
        %s600 = sand.u32 %s113, 1
        %s601 = smul.addr %s600, 2
        %s602 = scalar_lea.vmem [#allocation7], %s601
        %p603 = pneg %p126
        %p604 = pneg %p123
        %s605 = sand.u32 %s37, 1
        %s606 = scalar_lea.sflag [#allocation8], %s605
        %s607 = sand.u32 %s139, 1
        %s608 = smul.addr %s607, 768
        %s609 = scalar_lea.vmem [#allocation9], %s608
        %p610 = pneg %p152
        %p611 = pneg %p149
        %s612 = sand.u32 %s37, 1
        %s613 = scalar_lea.sflag [#allocation11], %s612
        %s614 = sand.u32 %s165, 1
        %s615 = smul.addr %s614, 2
        %s616 = scalar_lea.vmem [#allocation10], %s615
        %p617 = pneg %p178
        %p618 = pneg %p175
        %s619 = sand.u32 %s37, 1
        %s620 = scalar_lea.sflag [#allocation11], %s619
        %s621 = sand.u32 %s191, 1
        %s622 = smul.addr %s621, 32
        %s623 = scalar_lea.vmem [#allocation12], %s622
        %p624 = pneg %p204
        %p625 = pneg %p201
        %s626 = sand.u32 %s37, 1
        %s627 = scalar_lea.sflag [#allocation14], %s626
        %s628 = sand.u32 %s217, 1
        %s629 = scalar_lea.vmem [#allocation13], %s628
        %p630 = pneg %p230
        %p631 = pneg %p227
        %s632 = sand.u32 %s37, 1
        %s633 = scalar_lea.sflag [#allocation14], %s632
        %s634 = sand.u32 %s243, 1
        %s635 = smul.addr %s634, 4
        %s636 = scalar_lea.vmem [#allocation15], %s635
        %p637 = pneg %p256
        %p638 = pneg %p253
        %s639 = sand.u32 %s269, 1
        %s640 = scalar_lea.sflag [#allocation17], %s639
        %s641 = sand.u32 %s269, 1
        %s642 = smul.addr %s641, 2
        %s643 = scalar_lea.vmem [#allocation16], %s642
        %p644 = pneg %p282
        %p645 = pneg %p279
        %p646 = pneg %p303
        %p647 = pneg %p300
        %p648 = scmp.eq.s32.totalorder %s37, 0
        // Predicated region
        $region97: #{_lambda_.1} parent=59 // pred_check
          %p649 = pneg %p648
        $region98: #{_lambda_.1} parent=59 // pred_check_branch
          %651 = sbr.rel (%p649) target = $region100
        $region99: #{_lambda_.1} parent=59 // pred_region
          %v652 = vld [vmem:[%s1] sm:$0xff]
          %v653 = vld [vmem:[%s1 + $0x8] sm:$0xff]
          %v654 = vld [vmem:[%s1 + $0x10] sm:$0xff]
          %v655 = vld [vmem:[%s1 + $0x18] sm:$0xff]
          %v656 = vld [vmem:[%s1 + $0x20] sm:$0xff]
          %v657 = vld [vmem:[%s1 + $0x28] sm:$0xff]
          %v658 = vld [vmem:[%s1 + $0x30] sm:$0xff]
          %v659 = vld [vmem:[%s1 + $0x38] sm:$0xff]
          %660 = vst [vmem:[#allocation2] sm:$0xff] %v652
          %661 = vst [vmem:[#allocation2 + $0x8] sm:$0xff] %v653
          %662 = vst [vmem:[#allocation2 + $0x10] sm:$0xff] %v654
          %663 = vst [vmem:[#allocation2 + $0x18] sm:$0xff] %v655
          %664 = vst [vmem:[#allocation2 + $0x20] sm:$0xff] %v656
          %665 = vst [vmem:[#allocation2 + $0x28] sm:$0xff] %v657
          %666 = vst [vmem:[#allocation2 + $0x30] sm:$0xff] %v658
          %667 = vst [vmem:[#allocation2 + $0x38] sm:$0xff] %v659
        $region100: #{_lambda_.1} parent=59 // pred_fallthru
          _
        %v668 = vld [vmem:[#allocation2] sm:$0xff]
        %v669 = vld [vmem:[#allocation2 + $0x8] sm:$0xff]
        %v670 = vld [vmem:[#allocation2 + $0x10] sm:$0xff]
        %v671 = vld [vmem:[#allocation2 + $0x18] sm:$0xff]
        %v672 = vld [vmem:[#allocation2 + $0x20] sm:$0xff]
        %v673 = vld [vmem:[#allocation2 + $0x28] sm:$0xff]
        %v674 = vld [vmem:[#allocation2 + $0x30] sm:$0xff]
        %v675 = vld [vmem:[#allocation2 + $0x38] sm:$0xff]
        %v676 = vlaneseq
        %v677 = vshrl.u32 %v676, 7
        %v678 = vadd.s32 %v677, 8
        %v679 = vld [vmem:[%s521] sm:$0x3]
        %v680 = vpack.c.bf16 %v670, %v668
        %v681 = vpack.c.bf16 %v671, %v669
        %v682 = vpack.c.bf16 %v674, %v672
        %v683 = vpack.c.bf16 %v675, %v673
        %v684 = vld [vmem:[%s511] sm:$0xff]
        %v685 = vld [vmem:[%s511 + $0x8] sm:$0xff]
        %v686 = vld [vmem:[%s511 + $0x10] sm:$0xff]
        %v687 = vld [vmem:[%s511 + $0x18] sm:$0xff]
        %v688 = vld [vmem:[%s511 + $0x20] sm:$0xff]
        %v689 = vld [vmem:[%s511 + $0x28] sm:$0xff]
        %v690 = vld [vmem:[%s511 + $0x30] sm:$0xff]
        %v691 = vld [vmem:[%s511 + $0x38] sm:$0xff]
        %v692 = vld [vmem:[%s511 + $0x40] sm:$0xff]
        %v693 = vld [vmem:[%s511 + $0x48] sm:$0xff]
        %v694 = vld [vmem:[%s511 + $0x50] sm:$0xff]
        %v695 = vld [vmem:[%s511 + $0x58] sm:$0xff]
        %v696 = vld [vmem:[%s511 + $0x60] sm:$0xff]
        %v697 = vld [vmem:[%s511 + $0x68] sm:$0xff]
        %v698 = vld [vmem:[%s511 + $0x70] sm:$0xff]
        %v699 = vld [vmem:[%s511 + $0x78] sm:$0xff]
        %v700 = vld [vmem:[%s511 + $0x80] sm:$0xff]
        %v701 = vld [vmem:[%s511 + $0x88] sm:$0xff]
        %v702 = vld [vmem:[%s511 + $0x90] sm:$0xff]
        %v703 = vld [vmem:[%s511 + $0x98] sm:$0xff]
        %v704 = vld [vmem:[%s511 + $0xa0] sm:$0xff]
        %v705 = vld [vmem:[%s511 + $0xa8] sm:$0xff]
        %v706 = vld [vmem:[%s511 + $0xb0] sm:$0xff]
        %v707 = vld [vmem:[%s511 + $0xb8] sm:$0xff]
        %v708 = vld [vmem:[%s511 + $0xc0] sm:$0xff]
        %v709 = vld [vmem:[%s511 + $0xc8] sm:$0xff]
        %v710 = vld [vmem:[%s511 + $0xd0] sm:$0xff]
        %v711 = vld [vmem:[%s511 + $0xd8] sm:$0xff]
        %v712 = vld [vmem:[%s511 + $0xe0] sm:$0xff]
        %v713 = vld [vmem:[%s511 + $0xe8] sm:$0xff]
        %v714 = vld [vmem:[%s511 + $0xf0] sm:$0xff]
        %v715 = vld [vmem:[%s511 + $0xf8] sm:$0xff]
        %v748 = vunpack.c.l.b16 %v684
        %v749 = vunpack.c.h.b16 %v684
        %v750 = vunpack.c.l.b16 %v685
        %v751 = vunpack.c.h.b16 %v685
        %v752 = vunpack.c.l.b16 %v686
        %v753 = vunpack.c.h.b16 %v686
        %v754 = vunpack.c.l.b16 %v687
        %v755 = vunpack.c.h.b16 %v687
        %v756 = vunpack.c.l.b16 %v688
        %v757 = vunpack.c.h.b16 %v688
        %v758 = vunpack.c.l.b16 %v689
        %v759 = vunpack.c.h.b16 %v689
        %v760 = vunpack.c.l.b16 %v690
        %v761 = vunpack.c.h.b16 %v690
        %v762 = vunpack.c.l.b16 %v691
        %v763 = vunpack.c.h.b16 %v691
        %v764 = vunpack.c.l.b16 %v692
        %v765 = vunpack.c.h.b16 %v692
        %v766 = vunpack.c.l.b16 %v693
        %v767 = vunpack.c.h.b16 %v693
        %v768 = vunpack.c.l.b16 %v694
        %v769 = vunpack.c.h.b16 %v694
        %v770 = vunpack.c.l.b16 %v695
        %v771 = vunpack.c.h.b16 %v695
        %v772 = vunpack.c.l.b16 %v696
        %v773 = vunpack.c.h.b16 %v696
        %v774 = vunpack.c.l.b16 %v697
        %v775 = vunpack.c.h.b16 %v697
        %v776 = vunpack.c.l.b16 %v698
        %v777 = vunpack.c.h.b16 %v698
        %v778 = vunpack.c.l.b16 %v699
        %v779 = vunpack.c.h.b16 %v699
        %v780 = vunpack.c.l.b16 %v700
        %v781 = vunpack.c.h.b16 %v700
        %v782 = vunpack.c.l.b16 %v701
        %v783 = vunpack.c.h.b16 %v701
        %v784 = vunpack.c.l.b16 %v702
        %v785 = vunpack.c.h.b16 %v702
        %v786 = vunpack.c.l.b16 %v703
        %v787 = vunpack.c.h.b16 %v703
        %v788 = vunpack.c.l.b16 %v704
        %v789 = vunpack.c.h.b16 %v704
        %v790 = vunpack.c.l.b16 %v705
        %v791 = vunpack.c.h.b16 %v705
        %v792 = vunpack.c.l.b16 %v706
        %v793 = vunpack.c.h.b16 %v706
        %v794 = vunpack.c.l.b16 %v707
        %v795 = vunpack.c.h.b16 %v707
        %v796 = vunpack.c.l.b16 %v708
        %v797 = vunpack.c.h.b16 %v708
        %v798 = vunpack.c.l.b16 %v709
        %v799 = vunpack.c.h.b16 %v709
        %v800 = vunpack.c.l.b16 %v710
        %v801 = vunpack.c.h.b16 %v710
        %v802 = vunpack.c.l.b16 %v711
        %v803 = vunpack.c.h.b16 %v711
        %v804 = vunpack.c.l.b16 %v712
        %v805 = vunpack.c.h.b16 %v712
        %v806 = vunpack.c.l.b16 %v713
        %v807 = vunpack.c.h.b16 %v713
        %v808 = vunpack.c.l.b16 %v714
        %v809 = vunpack.c.h.b16 %v714
        %v810 = vunpack.c.l.b16 %v715
        %v811 = vunpack.c.h.b16 %v715
        %v812 = vpack.c.b16 %v750, %v748
        %v813 = vpack.c.b16 %v751, %v749
        %v814 = vpack.c.b16 %v754, %v752
        %v815 = vpack.c.b16 %v755, %v753
        %v816 = vpack.c.b16 %v758, %v756
        %v817 = vpack.c.b16 %v759, %v757
        %v818 = vpack.c.b16 %v762, %v760
        %v819 = vpack.c.b16 %v763, %v761
        %v820 = vpack.c.b16 %v766, %v764
        %v821 = vpack.c.b16 %v767, %v765
        %v822 = vpack.c.b16 %v770, %v768
        %v823 = vpack.c.b16 %v771, %v769
        %v824 = vpack.c.b16 %v774, %v772
        %v825 = vpack.c.b16 %v775, %v773
        %v826 = vpack.c.b16 %v778, %v776
        %v827 = vpack.c.b16 %v779, %v777
        %v828 = vpack.c.b16 %v782, %v780
        %v829 = vpack.c.b16 %v783, %v781
        %v830 = vpack.c.b16 %v786, %v784
        %v831 = vpack.c.b16 %v787, %v785
        %v832 = vpack.c.b16 %v790, %v788
        %v833 = vpack.c.b16 %v791, %v789
        %v834 = vpack.c.b16 %v794, %v792
        %v835 = vpack.c.b16 %v795, %v793
        %v836 = vpack.c.b16 %v798, %v796
        %v837 = vpack.c.b16 %v799, %v797
        %v838 = vpack.c.b16 %v802, %v800
        %v839 = vpack.c.b16 %v803, %v801
        %v840 = vpack.c.b16 %v806, %v804
        %v841 = vpack.c.b16 %v807, %v805
        %v842 = vpack.c.b16 %v810, %v808
        %v843 = vpack.c.b16 %v811, %v809
        %876 = vmatpush.bf16.msra.mxu0 %v826
        %877 = vmatpush.bf16.msra.mxu0 %v824
        %878 = vmatpush.bf16.msra.mxu0 %v822
        %879 = vmatpush.bf16.msra.mxu0 %v820
        %880 = vmatpush.bf16.msra.mxu0 %v818
        %881 = vmatpush.bf16.msra.mxu0 %v816
        %882 = vmatpush.bf16.msra.mxu0 %v814
        %883 = vmatpush.bf16.msra.mxu0 %v812
        %884 = vmatmul.bf16.gmra.mxu0 %v680
        %v885 = vpop.f32.mrf.mxu0
        %v886 = vadd.f32 0.0, %v885
        %v887 = vpop.f32.mrf.mxu0
        %v888 = vadd.f32 0.0, %v887
        %889 = vmatmul.bf16.gmra.mxu0 %v682
        %v890 = vpop.f32.mrf.mxu0
        %v891 = vadd.f32 0.0, %v890
        %v892 = vpop.f32.mrf.mxu0
        %v893 = vadd.f32 0.0, %v892
        %894 = vdwg.mxu0
        %895 = vmatpush.bf16.msra.mxu0 %v842
        %896 = vmatpush.bf16.msra.mxu0 %v840
        %897 = vmatpush.bf16.msra.mxu0 %v838
        %898 = vmatpush.bf16.msra.mxu0 %v836
        %899 = vmatpush.bf16.msra.mxu0 %v834
        %900 = vmatpush.bf16.msra.mxu0 %v832
        %901 = vmatpush.bf16.msra.mxu0 %v830
        %902 = vmatpush.bf16.msra.mxu0 %v828
        %903 = vmatmul.bf16.gmra.mxu0 %v681
        %v904 = vpop.f32.mrf.mxu0
        %v905 = vadd.f32 %v886, %v904
        %v906 = vpop.f32.mrf.mxu0
        %v907 = vadd.f32 %v888, %v906
        %908 = vmatmul.bf16.gmra.mxu0 %v683
        %v909 = vpop.f32.mrf.mxu0
        %v910 = vadd.f32 %v891, %v909
        %v911 = vpop.f32.mrf.mxu0
        %v912 = vadd.f32 %v893, %v911
        %913 = vdwg.mxu0
        %914 = vmatpush.bf16.msra.mxu0 %v827
        %915 = vmatpush.bf16.msra.mxu0 %v825
        %916 = vmatpush.bf16.msra.mxu0 %v823
        %917 = vmatpush.bf16.msra.mxu0 %v821
        %918 = vmatpush.bf16.msra.mxu0 %v819
        %919 = vmatpush.bf16.msra.mxu0 %v817
        %920 = vmatpush.bf16.msra.mxu0 %v815
        %921 = vmatpush.bf16.msra.mxu0 %v813
        %922 = vmatmul.bf16.gmra.mxu0 %v680
        %v923 = vpop.f32.mrf.mxu0
        %v924 = vadd.f32 0.0, %v923
        %v925 = vpop.f32.mrf.mxu0
        %v926 = vadd.f32 0.0, %v925
        %927 = vmatmul.bf16.gmra.mxu0 %v682
        %v928 = vpop.f32.mrf.mxu0
        %v929 = vadd.f32 0.0, %v928
        %v930 = vpop.f32.mrf.mxu0
        %v931 = vadd.f32 0.0, %v930
        %932 = vdwg.mxu0
        %933 = vmatpush.bf16.msra.mxu0 %v843
        %934 = vmatpush.bf16.msra.mxu0 %v841
        %935 = vmatpush.bf16.msra.mxu0 %v839
        %936 = vmatpush.bf16.msra.mxu0 %v837
        %937 = vmatpush.bf16.msra.mxu0 %v835
        %938 = vmatpush.bf16.msra.mxu0 %v833
        %939 = vmatpush.bf16.msra.mxu0 %v831
        %940 = vmatpush.bf16.msra.mxu0 %v829
        %941 = vmatmul.bf16.gmra.mxu0 %v681
        %v942 = vpop.f32.mrf.mxu0
        %v943 = vadd.f32 %v924, %v942
        %v944 = vpop.f32.mrf.mxu0
        %v945 = vadd.f32 %v926, %v944
        %946 = vmatmul.bf16.gmra.mxu0 %v683
        %v947 = vpop.f32.mrf.mxu0
        %v948 = vadd.f32 %v929, %v947
        %v949 = vpop.f32.mrf.mxu0
        %v950 = vadd.f32 %v931, %v949
        %951 = vdwg.mxu0
        %s952 = scalar_lea.vmem %s511, 256 [#allocation6]
        %v953 = vld [vmem:[%s952] sm:$0xff]
        %v954 = vld [vmem:[%s952 + $0x8] sm:$0xff]
        %v955 = vld [vmem:[%s952 + $0x10] sm:$0xff]
        %v956 = vld [vmem:[%s952 + $0x18] sm:$0xff]
        %v957 = vld [vmem:[%s952 + $0x20] sm:$0xff]
        %v958 = vld [vmem:[%s952 + $0x28] sm:$0xff]
        %v959 = vld [vmem:[%s952 + $0x30] sm:$0xff]
        %v960 = vld [vmem:[%s952 + $0x38] sm:$0xff]
        %v961 = vld [vmem:[%s952 + $0x40] sm:$0xff]
        %v962 = vld [vmem:[%s952 + $0x48] sm:$0xff]
        %v963 = vld [vmem:[%s952 + $0x50] sm:$0xff]
        %v964 = vld [vmem:[%s952 + $0x58] sm:$0xff]
        %v965 = vld [vmem:[%s952 + $0x60] sm:$0xff]
        %v966 = vld [vmem:[%s952 + $0x68] sm:$0xff]
        %v967 = vld [vmem:[%s952 + $0x70] sm:$0xff]
        %v968 = vld [vmem:[%s952 + $0x78] sm:$0xff]
        %v969 = vld [vmem:[%s952 + $0x80] sm:$0xff]
        %v970 = vld [vmem:[%s952 + $0x88] sm:$0xff]
        %v971 = vld [vmem:[%s952 + $0x90] sm:$0xff]
        %v972 = vld [vmem:[%s952 + $0x98] sm:$0xff]
        %v973 = vld [vmem:[%s952 + $0xa0] sm:$0xff]
        %v974 = vld [vmem:[%s952 + $0xa8] sm:$0xff]
        %v975 = vld [vmem:[%s952 + $0xb0] sm:$0xff]
        %v976 = vld [vmem:[%s952 + $0xb8] sm:$0xff]
        %v977 = vld [vmem:[%s952 + $0xc0] sm:$0xff]
        %v978 = vld [vmem:[%s952 + $0xc8] sm:$0xff]
        %v979 = vld [vmem:[%s952 + $0xd0] sm:$0xff]
        %v980 = vld [vmem:[%s952 + $0xd8] sm:$0xff]
        %v981 = vld [vmem:[%s952 + $0xe0] sm:$0xff]
        %v982 = vld [vmem:[%s952 + $0xe8] sm:$0xff]
        %v983 = vld [vmem:[%s952 + $0xf0] sm:$0xff]
        %v984 = vld [vmem:[%s952 + $0xf8] sm:$0xff]
        %v1017 = vunpack.c.l.b16 %v953
        %v1018 = vunpack.c.h.b16 %v953
        %v1019 = vunpack.c.l.b16 %v954
        %v1020 = vunpack.c.h.b16 %v954
        %v1021 = vunpack.c.l.b16 %v955
        %v1022 = vunpack.c.h.b16 %v955
        %v1023 = vunpack.c.l.b16 %v956
        %v1024 = vunpack.c.h.b16 %v956
        %v1025 = vunpack.c.l.b16 %v957
        %v1026 = vunpack.c.h.b16 %v957
        %v1027 = vunpack.c.l.b16 %v958
        %v1028 = vunpack.c.h.b16 %v958
        %v1029 = vunpack.c.l.b16 %v959
        %v1030 = vunpack.c.h.b16 %v959
        %v1031 = vunpack.c.l.b16 %v960
        %v1032 = vunpack.c.h.b16 %v960
        %v1033 = vunpack.c.l.b16 %v961
        %v1034 = vunpack.c.h.b16 %v961
        %v1035 = vunpack.c.l.b16 %v962
        %v1036 = vunpack.c.h.b16 %v962
        %v1037 = vunpack.c.l.b16 %v963
        %v1038 = vunpack.c.h.b16 %v963
        %v1039 = vunpack.c.l.b16 %v964
        %v1040 = vunpack.c.h.b16 %v964
        %v1041 = vunpack.c.l.b16 %v965
        %v1042 = vunpack.c.h.b16 %v965
        %v1043 = vunpack.c.l.b16 %v966
        %v1044 = vunpack.c.h.b16 %v966
        %v1045 = vunpack.c.l.b16 %v967
        %v1046 = vunpack.c.h.b16 %v967
        %v1047 = vunpack.c.l.b16 %v968
        %v1048 = vunpack.c.h.b16 %v968
        %v1049 = vunpack.c.l.b16 %v969
        %v1050 = vunpack.c.h.b16 %v969
        %v1051 = vunpack.c.l.b16 %v970
        %v1052 = vunpack.c.h.b16 %v970
        %v1053 = vunpack.c.l.b16 %v971
        %v1054 = vunpack.c.h.b16 %v971
        %v1055 = vunpack.c.l.b16 %v972
        %v1056 = vunpack.c.h.b16 %v972
        %v1057 = vunpack.c.l.b16 %v973
        %v1058 = vunpack.c.h.b16 %v973
        %v1059 = vunpack.c.l.b16 %v974
        %v1060 = vunpack.c.h.b16 %v974
        %v1061 = vunpack.c.l.b16 %v975
        %v1062 = vunpack.c.h.b16 %v975
        %v1063 = vunpack.c.l.b16 %v976
        %v1064 = vunpack.c.h.b16 %v976
        %v1065 = vunpack.c.l.b16 %v977
        %v1066 = vunpack.c.h.b16 %v977
        %v1067 = vunpack.c.l.b16 %v978
        %v1068 = vunpack.c.h.b16 %v978
        %v1069 = vunpack.c.l.b16 %v979
        %v1070 = vunpack.c.h.b16 %v979
        %v1071 = vunpack.c.l.b16 %v980
        %v1072 = vunpack.c.h.b16 %v980
        %v1073 = vunpack.c.l.b16 %v981
        %v1074 = vunpack.c.h.b16 %v981
        %v1075 = vunpack.c.l.b16 %v982
        %v1076 = vunpack.c.h.b16 %v982
        %v1077 = vunpack.c.l.b16 %v983
        %v1078 = vunpack.c.h.b16 %v983
        %v1079 = vunpack.c.l.b16 %v984
        %v1080 = vunpack.c.h.b16 %v984
        %v1081 = vpack.c.b16 %v1019, %v1017
        %v1082 = vpack.c.b16 %v1020, %v1018
        %v1083 = vpack.c.b16 %v1023, %v1021
        %v1084 = vpack.c.b16 %v1024, %v1022
        %v1085 = vpack.c.b16 %v1027, %v1025
        %v1086 = vpack.c.b16 %v1028, %v1026
        %v1087 = vpack.c.b16 %v1031, %v1029
        %v1088 = vpack.c.b16 %v1032, %v1030
        %v1089 = vpack.c.b16 %v1035, %v1033
        %v1090 = vpack.c.b16 %v1036, %v1034
        %v1091 = vpack.c.b16 %v1039, %v1037
        %v1092 = vpack.c.b16 %v1040, %v1038
        %v1093 = vpack.c.b16 %v1043, %v1041
        %v1094 = vpack.c.b16 %v1044, %v1042
        %v1095 = vpack.c.b16 %v1047, %v1045
        %v1096 = vpack.c.b16 %v1048, %v1046
        %v1097 = vpack.c.b16 %v1051, %v1049
        %v1098 = vpack.c.b16 %v1052, %v1050
        %v1099 = vpack.c.b16 %v1055, %v1053
        %v1100 = vpack.c.b16 %v1056, %v1054
        %v1101 = vpack.c.b16 %v1059, %v1057
        %v1102 = vpack.c.b16 %v1060, %v1058
        %v1103 = vpack.c.b16 %v1063, %v1061
        %v1104 = vpack.c.b16 %v1064, %v1062
        %v1105 = vpack.c.b16 %v1067, %v1065
        %v1106 = vpack.c.b16 %v1068, %v1066
        %v1107 = vpack.c.b16 %v1071, %v1069
        %v1108 = vpack.c.b16 %v1072, %v1070
        %v1109 = vpack.c.b16 %v1075, %v1073
        %v1110 = vpack.c.b16 %v1076, %v1074
        %v1111 = vpack.c.b16 %v1079, %v1077
        %v1112 = vpack.c.b16 %v1080, %v1078
        %1145 = vmatpush.bf16.msra.mxu0 %v1095
        %1146 = vmatpush.bf16.msra.mxu0 %v1093
        %1147 = vmatpush.bf16.msra.mxu0 %v1091
        %1148 = vmatpush.bf16.msra.mxu0 %v1089
        %1149 = vmatpush.bf16.msra.mxu0 %v1087
        %1150 = vmatpush.bf16.msra.mxu0 %v1085
        %1151 = vmatpush.bf16.msra.mxu0 %v1083
        %1152 = vmatpush.bf16.msra.mxu0 %v1081
        %1153 = vmatmul.bf16.gmra.mxu0 %v680
        %v1154 = vpop.f32.mrf.mxu0
        %v1155 = vadd.f32 0.0, %v1154
        %v1156 = vpop.f32.mrf.mxu0
        %v1157 = vadd.f32 0.0, %v1156
        %1158 = vmatmul.bf16.gmra.mxu0 %v682
        %v1159 = vpop.f32.mrf.mxu0
        %v1160 = vadd.f32 0.0, %v1159
        %v1161 = vpop.f32.mrf.mxu0
        %v1162 = vadd.f32 0.0, %v1161
        %1163 = vdwg.mxu0
        %1164 = vmatpush.bf16.msra.mxu0 %v1111
        %1165 = vmatpush.bf16.msra.mxu0 %v1109
        %1166 = vmatpush.bf16.msra.mxu0 %v1107
        %1167 = vmatpush.bf16.msra.mxu0 %v1105
        %1168 = vmatpush.bf16.msra.mxu0 %v1103
        %1169 = vmatpush.bf16.msra.mxu0 %v1101
        %1170 = vmatpush.bf16.msra.mxu0 %v1099
        %1171 = vmatpush.bf16.msra.mxu0 %v1097
        %1172 = vmatmul.bf16.gmra.mxu0 %v681
        %v1173 = vpop.f32.mrf.mxu0
        %v1174 = vadd.f32 %v1155, %v1173
        %v1175 = vpop.f32.mrf.mxu0
        %v1176 = vadd.f32 %v1157, %v1175
        %1177 = vmatmul.bf16.gmra.mxu0 %v683
        %v1178 = vpop.f32.mrf.mxu0
        %v1179 = vadd.f32 %v1160, %v1178
        %v1180 = vpop.f32.mrf.mxu0
        %v1181 = vadd.f32 %v1162, %v1180
        %1182 = vdwg.mxu0
        %1183 = vmatpush.bf16.msra.mxu0 %v1096
        %1184 = vmatpush.bf16.msra.mxu0 %v1094
        %1185 = vmatpush.bf16.msra.mxu0 %v1092
        %1186 = vmatpush.bf16.msra.mxu0 %v1090
        %1187 = vmatpush.bf16.msra.mxu0 %v1088
        %1188 = vmatpush.bf16.msra.mxu0 %v1086
        %1189 = vmatpush.bf16.msra.mxu0 %v1084
        %1190 = vmatpush.bf16.msra.mxu0 %v1082
        %1191 = vmatmul.bf16.gmra.mxu0 %v680
        %v1192 = vpop.f32.mrf.mxu0
        %v1193 = vadd.f32 0.0, %v1192
        %v1194 = vpop.f32.mrf.mxu0
        %v1195 = vadd.f32 0.0, %v1194
        %1196 = vmatmul.bf16.gmra.mxu0 %v682
        %v1197 = vpop.f32.mrf.mxu0
        %v1198 = vadd.f32 0.0, %v1197
        %v1199 = vpop.f32.mrf.mxu0
        %v1200 = vadd.f32 0.0, %v1199
        %1201 = vdwg.mxu0
        %1202 = vmatpush.bf16.msra.mxu0 %v1112
        %1203 = vmatpush.bf16.msra.mxu0 %v1110
        %1204 = vmatpush.bf16.msra.mxu0 %v1108
        %1205 = vmatpush.bf16.msra.mxu0 %v1106
        %1206 = vmatpush.bf16.msra.mxu0 %v1104
        %1207 = vmatpush.bf16.msra.mxu0 %v1102
        %1208 = vmatpush.bf16.msra.mxu0 %v1100
        %1209 = vmatpush.bf16.msra.mxu0 %v1098
        %1210 = vmatmul.bf16.gmra.mxu0 %v681
        %v1211 = vpop.f32.mrf.mxu0
        %v1212 = vadd.f32 %v1193, %v1211
        %v1213 = vpop.f32.mrf.mxu0
        %v1214 = vadd.f32 %v1195, %v1213
        %1215 = vmatmul.bf16.gmra.mxu0 %v683
        %v1216 = vpop.f32.mrf.mxu0
        %v1217 = vadd.f32 %v1198, %v1216
        %v1218 = vpop.f32.mrf.mxu0
        %v1219 = vadd.f32 %v1200, %v1218
        %1220 = vdwg.mxu0
        %s1221 = scalar_lea.vmem %s511, 512 [#allocation6]
        %v1222 = vld [vmem:[%s1221] sm:$0xff]
        %v1223 = vld [vmem:[%s1221 + $0x8] sm:$0xff]
        %v1224 = vld [vmem:[%s1221 + $0x10] sm:$0xff]
        %v1225 = vld [vmem:[%s1221 + $0x18] sm:$0xff]
        %v1226 = vld [vmem:[%s1221 + $0x20] sm:$0xff]
        %v1227 = vld [vmem:[%s1221 + $0x28] sm:$0xff]
        %v1228 = vld [vmem:[%s1221 + $0x30] sm:$0xff]
        %v1229 = vld [vmem:[%s1221 + $0x38] sm:$0xff]
        %v1230 = vld [vmem:[%s1221 + $0x40] sm:$0xff]
        %v1231 = vld [vmem:[%s1221 + $0x48] sm:$0xff]
        %v1232 = vld [vmem:[%s1221 + $0x50] sm:$0xff]
        %v1233 = vld [vmem:[%s1221 + $0x58] sm:$0xff]
        %v1234 = vld [vmem:[%s1221 + $0x60] sm:$0xff]
        %v1235 = vld [vmem:[%s1221 + $0x68] sm:$0xff]
        %v1236 = vld [vmem:[%s1221 + $0x70] sm:$0xff]
        %v1237 = vld [vmem:[%s1221 + $0x78] sm:$0xff]
        %v1238 = vld [vmem:[%s1221 + $0x80] sm:$0xff]
        %v1239 = vld [vmem:[%s1221 + $0x88] sm:$0xff]
        %v1240 = vld [vmem:[%s1221 + $0x90] sm:$0xff]
        %v1241 = vld [vmem:[%s1221 + $0x98] sm:$0xff]
        %v1242 = vld [vmem:[%s1221 + $0xa0] sm:$0xff]
        %v1243 = vld [vmem:[%s1221 + $0xa8] sm:$0xff]
        %v1244 = vld [vmem:[%s1221 + $0xb0] sm:$0xff]
        %v1245 = vld [vmem:[%s1221 + $0xb8] sm:$0xff]
        %v1246 = vld [vmem:[%s1221 + $0xc0] sm:$0xff]
        %v1247 = vld [vmem:[%s1221 + $0xc8] sm:$0xff]
        %v1248 = vld [vmem:[%s1221 + $0xd0] sm:$0xff]
        %v1249 = vld [vmem:[%s1221 + $0xd8] sm:$0xff]
        %v1250 = vld [vmem:[%s1221 + $0xe0] sm:$0xff]
        %v1251 = vld [vmem:[%s1221 + $0xe8] sm:$0xff]
        %v1252 = vld [vmem:[%s1221 + $0xf0] sm:$0xff]
        %v1253 = vld [vmem:[%s1221 + $0xf8] sm:$0xff]
        %v1286 = vunpack.c.l.b16 %v1222
        %v1287 = vunpack.c.h.b16 %v1222
        %v1288 = vunpack.c.l.b16 %v1223
        %v1289 = vunpack.c.h.b16 %v1223
        %v1290 = vunpack.c.l.b16 %v1224
        %v1291 = vunpack.c.h.b16 %v1224
        %v1292 = vunpack.c.l.b16 %v1225
        %v1293 = vunpack.c.h.b16 %v1225
        %v1294 = vunpack.c.l.b16 %v1226
        %v1295 = vunpack.c.h.b16 %v1226
        %v1296 = vunpack.c.l.b16 %v1227
        %v1297 = vunpack.c.h.b16 %v1227
        %v1298 = vunpack.c.l.b16 %v1228
        %v1299 = vunpack.c.h.b16 %v1228
        %v1300 = vunpack.c.l.b16 %v1229
        %v1301 = vunpack.c.h.b16 %v1229
        %v1302 = vunpack.c.l.b16 %v1230
        %v1303 = vunpack.c.h.b16 %v1230
        %v1304 = vunpack.c.l.b16 %v1231
        %v1305 = vunpack.c.h.b16 %v1231
        %v1306 = vunpack.c.l.b16 %v1232
        %v1307 = vunpack.c.h.b16 %v1232
        %v1308 = vunpack.c.l.b16 %v1233
        %v1309 = vunpack.c.h.b16 %v1233
        %v1310 = vunpack.c.l.b16 %v1234
        %v1311 = vunpack.c.h.b16 %v1234
        %v1312 = vunpack.c.l.b16 %v1235
        %v1313 = vunpack.c.h.b16 %v1235
        %v1314 = vunpack.c.l.b16 %v1236
        %v1315 = vunpack.c.h.b16 %v1236
        %v1316 = vunpack.c.l.b16 %v1237
        %v1317 = vunpack.c.h.b16 %v1237
        %v1318 = vunpack.c.l.b16 %v1238
        %v1319 = vunpack.c.h.b16 %v1238
        %v1320 = vunpack.c.l.b16 %v1239
        %v1321 = vunpack.c.h.b16 %v1239
        %v1322 = vunpack.c.l.b16 %v1240
        %v1323 = vunpack.c.h.b16 %v1240
        %v1324 = vunpack.c.l.b16 %v1241
        %v1325 = vunpack.c.h.b16 %v1241
        %v1326 = vunpack.c.l.b16 %v1242
        %v1327 = vunpack.c.h.b16 %v1242
        %v1328 = vunpack.c.l.b16 %v1243
        %v1329 = vunpack.c.h.b16 %v1243
        %v1330 = vunpack.c.l.b16 %v1244
        %v1331 = vunpack.c.h.b16 %v1244
        %v1332 = vunpack.c.l.b16 %v1245
        %v1333 = vunpack.c.h.b16 %v1245
        %v1334 = vunpack.c.l.b16 %v1246
        %v1335 = vunpack.c.h.b16 %v1246
        %v1336 = vunpack.c.l.b16 %v1247
        %v1337 = vunpack.c.h.b16 %v1247
        %v1338 = vunpack.c.l.b16 %v1248
        %v1339 = vunpack.c.h.b16 %v1248
        %v1340 = vunpack.c.l.b16 %v1249
        %v1341 = vunpack.c.h.b16 %v1249
        %v1342 = vunpack.c.l.b16 %v1250
        %v1343 = vunpack.c.h.b16 %v1250
        %v1344 = vunpack.c.l.b16 %v1251
        %v1345 = vunpack.c.h.b16 %v1251
        %v1346 = vunpack.c.l.b16 %v1252
        %v1347 = vunpack.c.h.b16 %v1252
        %v1348 = vunpack.c.l.b16 %v1253
        %v1349 = vunpack.c.h.b16 %v1253
        %v1350 = vpack.c.b16 %v1288, %v1286
        %v1351 = vpack.c.b16 %v1289, %v1287
        %v1352 = vpack.c.b16 %v1292, %v1290
        %v1353 = vpack.c.b16 %v1293, %v1291
        %v1354 = vpack.c.b16 %v1296, %v1294
        %v1355 = vpack.c.b16 %v1297, %v1295
        %v1356 = vpack.c.b16 %v1300, %v1298
        %v1357 = vpack.c.b16 %v1301, %v1299
        %v1358 = vpack.c.b16 %v1304, %v1302
        %v1359 = vpack.c.b16 %v1305, %v1303
        %v1360 = vpack.c.b16 %v1308, %v1306
        %v1361 = vpack.c.b16 %v1309, %v1307
        %v1362 = vpack.c.b16 %v1312, %v1310
        %v1363 = vpack.c.b16 %v1313, %v1311
        %v1364 = vpack.c.b16 %v1316, %v1314
        %v1365 = vpack.c.b16 %v1317, %v1315
        %v1366 = vpack.c.b16 %v1320, %v1318
        %v1367 = vpack.c.b16 %v1321, %v1319
        %v1368 = vpack.c.b16 %v1324, %v1322
        %v1369 = vpack.c.b16 %v1325, %v1323
        %v1370 = vpack.c.b16 %v1328, %v1326
        %v1371 = vpack.c.b16 %v1329, %v1327
        %v1372 = vpack.c.b16 %v1332, %v1330
        %v1373 = vpack.c.b16 %v1333, %v1331
        %v1374 = vpack.c.b16 %v1336, %v1334
        %v1375 = vpack.c.b16 %v1337, %v1335
        %v1376 = vpack.c.b16 %v1340, %v1338
        %v1377 = vpack.c.b16 %v1341, %v1339
        %v1378 = vpack.c.b16 %v1344, %v1342
        %v1379 = vpack.c.b16 %v1345, %v1343
        %v1380 = vpack.c.b16 %v1348, %v1346
        %v1381 = vpack.c.b16 %v1349, %v1347
        %1414 = vmatpush.bf16.msra.mxu0 %v1364
        %1415 = vmatpush.bf16.msra.mxu0 %v1362
        %1416 = vmatpush.bf16.msra.mxu0 %v1360
        %1417 = vmatpush.bf16.msra.mxu0 %v1358
        %1418 = vmatpush.bf16.msra.mxu0 %v1356
        %1419 = vmatpush.bf16.msra.mxu0 %v1354
        %1420 = vmatpush.bf16.msra.mxu0 %v1352
        %1421 = vmatpush.bf16.msra.mxu0 %v1350
        %1422 = vmatmul.bf16.gmra.mxu0 %v680
        %v1423 = vpop.f32.mrf.mxu0
        %v1424 = vadd.f32 0.0, %v1423
        %v1425 = vpop.f32.mrf.mxu0
        %v1426 = vadd.f32 0.0, %v1425
        %1427 = vmatmul.bf16.gmra.mxu0 %v682
        %v1428 = vpop.f32.mrf.mxu0
        %v1429 = vadd.f32 0.0, %v1428
        %v1430 = vpop.f32.mrf.mxu0
        %v1431 = vadd.f32 0.0, %v1430
        %1432 = vdwg.mxu0
        %1433 = vmatpush.bf16.msra.mxu0 %v1380
        %1434 = vmatpush.bf16.msra.mxu0 %v1378
        %1435 = vmatpush.bf16.msra.mxu0 %v1376
        %1436 = vmatpush.bf16.msra.mxu0 %v1374
        %1437 = vmatpush.bf16.msra.mxu0 %v1372
        %1438 = vmatpush.bf16.msra.mxu0 %v1370
        %1439 = vmatpush.bf16.msra.mxu0 %v1368
        %1440 = vmatpush.bf16.msra.mxu0 %v1366
        %1441 = vmatmul.bf16.gmra.mxu0 %v681
        %v1442 = vpop.f32.mrf.mxu0
        %v1443 = vadd.f32 %v1424, %v1442
        %v1444 = vpop.f32.mrf.mxu0
        %v1445 = vadd.f32 %v1426, %v1444
        %1446 = vmatmul.bf16.gmra.mxu0 %v683
        %v1447 = vpop.f32.mrf.mxu0
        %v1448 = vadd.f32 %v1429, %v1447
        %v1449 = vpop.f32.mrf.mxu0
        %v1450 = vadd.f32 %v1431, %v1449
        %1451 = vdwg.mxu0
        %1452 = vmatpush.bf16.msra.mxu0 %v1365
        %1453 = vmatpush.bf16.msra.mxu0 %v1363
        %1454 = vmatpush.bf16.msra.mxu0 %v1361
        %1455 = vmatpush.bf16.msra.mxu0 %v1359
        %1456 = vmatpush.bf16.msra.mxu0 %v1357
        %1457 = vmatpush.bf16.msra.mxu0 %v1355
        %1458 = vmatpush.bf16.msra.mxu0 %v1353
        %1459 = vmatpush.bf16.msra.mxu0 %v1351
        %1460 = vmatmul.bf16.gmra.mxu0 %v680
        %v1461 = vpop.f32.mrf.mxu0
        %v1462 = vadd.f32 0.0, %v1461
        %v1463 = vpop.f32.mrf.mxu0
        %v1464 = vadd.f32 0.0, %v1463
        %1465 = vmatmul.bf16.gmra.mxu0 %v682
        %v1466 = vpop.f32.mrf.mxu0
        %v1467 = vadd.f32 0.0, %v1466
        %v1468 = vpop.f32.mrf.mxu0
        %v1469 = vadd.f32 0.0, %v1468
        %1470 = vdwg.mxu0
        %1471 = vmatpush.bf16.msra.mxu0 %v1381
        %1472 = vmatpush.bf16.msra.mxu0 %v1379
        %1473 = vmatpush.bf16.msra.mxu0 %v1377
        %1474 = vmatpush.bf16.msra.mxu0 %v1375
        %1475 = vmatpush.bf16.msra.mxu0 %v1373
        %1476 = vmatpush.bf16.msra.mxu0 %v1371
        %1477 = vmatpush.bf16.msra.mxu0 %v1369
        %1478 = vmatpush.bf16.msra.mxu0 %v1367
        %1479 = vmatmul.bf16.gmra.mxu0 %v681
        %v1480 = vpop.f32.mrf.mxu0
        %v1481 = vadd.f32 %v1462, %v1480
        %v1482 = vpop.f32.mrf.mxu0
        %v1483 = vadd.f32 %v1464, %v1482
        %1484 = vmatmul.bf16.gmra.mxu0 %v683
        %v1485 = vpop.f32.mrf.mxu0
        %v1486 = vadd.f32 %v1467, %v1485
        %v1487 = vpop.f32.mrf.mxu0
        %v1488 = vadd.f32 %v1469, %v1487
        %1489 = vdwg.mxu0
        %vm1490 = vcmp.eq.s32.totalorder %v677, 0
        %vm1491 = vcmp.eq.s32.totalorder %v678, 0
        %v1492 = vrot.slane %v905, 7
        %v1493 = vrot.slane %v943, 7
        %v1494 = vrot.slane %v907, 7
        %v1495 = vrot.slane %v945, 7
        %v1496 = vrot.slane %v910, 7
        %v1497 = vrot.slane %v948, 7
        %v1498 = vrot.slane %v912, 7
        %v1499 = vrot.slane %v950, 7
        %vm1500 = vcmp.lt.s32.totalorder %v677, 1
        %v1501 = vsel %vm1500, %v1496, %v1498
        %v1502 = vsel %vm1500, %v1497, %v1499
        %v1503 = vsel %vm1500, %v1494, %v1496
        %v1504 = vsel %vm1500, %v1495, %v1497
        %v1505 = vsel %vm1500, %v1492, %v1494
        %v1506 = vsel %vm1500, %v1493, %v1495
        %v1507 = vsel %vm1500, %v1498, %v1492
        %v1508 = vsel %vm1500, %v1499, %v1493
        %v1509 = vsel %vm1490, 0.0, %v1507
        %v1510 = vsel %vm1490, 0.0, %v1508
        %v1511 = vsel %vm1491, 0.0, %v1505
        %v1512 = vsel %vm1491, 0.0, %v1506
        %v1513 = vsel %vm1490, 0.0, %v1503
        %v1514 = vsel %vm1490, 0.0, %v1504
        %v1515 = vsel %vm1491, 0.0, %v1501
        %v1516 = vsel %vm1491, 0.0, %v1502
        %vm1517 = vcmp.eq.s32.totalorder %v677, 15
        %vm1518 = vcmp.eq.s32.totalorder %v678, 15
        %v1519 = vrot.slane %v1443, 1
        %v1520 = vrot.slane %v1481, 1
        %v1521 = vrot.slane %v1445, 1
        %v1522 = vrot.slane %v1483, 1
        %v1523 = vrot.slane %v1448, 1
        %v1524 = vrot.slane %v1486, 1
        %v1525 = vrot.slane %v1450, 1
        %v1526 = vrot.slane %v1488, 1
        %vm1527 = vcmp.lt.s32.totalorder %v677, 7
        %v1528 = vsel %vm1527, %v1523, %v1525
        %v1529 = vsel %vm1527, %v1524, %v1526
        %v1530 = vsel %vm1527, %v1521, %v1523
        %v1531 = vsel %vm1527, %v1522, %v1524
        %v1532 = vsel %vm1527, %v1519, %v1521
        %v1533 = vsel %vm1527, %v1520, %v1522
        %v1534 = vsel %vm1527, %v1525, %v1519
        %v1535 = vsel %vm1527, %v1526, %v1520
        %v1536 = vsel %vm1517, 0.0, %v1532
        %v1537 = vsel %vm1517, 0.0, %v1533
        %v1538 = vsel %vm1518, 0.0, %v1530
        %v1539 = vsel %vm1518, 0.0, %v1531
        %v1540 = vsel %vm1517, 0.0, %v1528
        %v1541 = vsel %vm1517, 0.0, %v1529
        %v1542 = vsel %vm1518, 0.0, %v1534
        %v1543 = vsel %vm1518, 0.0, %v1535
        %v1544 = vadd.f32 %v1509, %v1174
        %v1545 = vadd.f32 %v1510, %v1212
        %v1546 = vadd.f32 %v1511, %v1176
        %v1547 = vadd.f32 %v1512, %v1214
        %v1548 = vadd.f32 %v1513, %v1179
        %v1549 = vadd.f32 %v1514, %v1217
        %v1550 = vadd.f32 %v1515, %v1181
        %v1551 = vadd.f32 %v1516, %v1219
        %v1552 = vadd.f32 %v1544, %v1536
        %v1553 = vadd.f32 %v1545, %v1537
        %v1554 = vadd.f32 %v1546, %v1538
        %v1555 = vadd.f32 %v1547, %v1539
        %v1556 = vadd.f32 %v1548, %v1540
        %v1557 = vadd.f32 %v1549, %v1541
        %v1558 = vadd.f32 %v1550, %v1542
        %v1559 = vadd.f32 %v1551, %v1543
        %v1561 = vperm.slane %v679, 0
        %v1562 = vperm.slane %v679, 1
        %v1565 = vadd.f32 %v1552, %v1561
        %v1566 = vadd.f32 %v1553, %v1562
        %v1567 = vadd.f32 %v1554, %v1561
        %v1568 = vadd.f32 %v1555, %v1562
        %v1569 = vadd.f32 %v1556, %v1561
        %v1570 = vadd.f32 %v1557, %v1562
        %v1571 = vadd.f32 %v1558, %v1561
        %v1572 = vadd.f32 %v1559, %v1562
        %p1573 = scmp.lt.s32.totalorder %s37, 2
        // Predicated region
        $region101: #{_lambda_.1} parent=59 // pred_check
          %p1574 = pneg %p1573
        $region102: #{_lambda_.1} parent=59 // pred_check_branch
          %1576 = sbr.rel (%p1574) target = $region104
        $region103: #{_lambda_.1} parent=59 // pred_region
          %s1577 = smul.u32 %s37, 128
          %s1578 = sld [smem:[#allocation3 + %s1577]]
          %vm1579 = vcmp.ge.f32.partialorder %v1565, 0.0
          %vm1580 = vcmp.ge.f32.partialorder %v1566, 0.0
          %vm1581 = vcmp.ge.f32.partialorder %v1567, 0.0
          %vm1582 = vcmp.ge.f32.partialorder %v1568, 0.0
          %vm1583 = vcmp.ge.f32.partialorder %v1569, 0.0
          %vm1584 = vcmp.ge.f32.partialorder %v1570, 0.0
          %vm1585 = vcmp.ge.f32.partialorder %v1571, 0.0
          %vm1586 = vcmp.ge.f32.partialorder %v1572, 0.0
          %v1587 = vstv %s1578
          %v1588 = vmul.f32 %v1587, %v1565
          %v1589 = vmul.f32 %v1587, %v1566
          %v1590 = vmul.f32 %v1587, %v1567
          %v1591 = vmul.f32 %v1587, %v1568
          %v1592 = vmul.f32 %v1587, %v1569
          %v1593 = vmul.f32 %v1587, %v1570
          %v1594 = vmul.f32 %v1587, %v1571
          %v1595 = vmul.f32 %v1587, %v1572
          %v1596 = vsel %vm1579, %v1565, %v1588
          %v1597 = vsel %vm1580, %v1566, %v1589
          %v1598 = vsel %vm1581, %v1567, %v1590
          %v1599 = vsel %vm1582, %v1568, %v1591
          %v1600 = vsel %vm1583, %v1569, %v1592
          %v1601 = vsel %vm1584, %v1570, %v1593
          %v1602 = vsel %vm1585, %v1571, %v1594
          %v1603 = vsel %vm1586, %v1572, %v1595
          %v1604 = vld [vmem:[%s541] sm:$0x3]
          %v1605 = vpack.c.bf16 %v1598, %v1596
          %v1606 = vpack.c.bf16 %v1599, %v1597
          %v1607 = vpack.c.bf16 %v1602, %v1600
          %v1608 = vpack.c.bf16 %v1603, %v1601
          %v1609 = vld [vmem:[%s531] sm:$0xff]
          %v1610 = vld [vmem:[%s531 + $0x8] sm:$0xff]
          %v1611 = vld [vmem:[%s531 + $0x10] sm:$0xff]
          %v1612 = vld [vmem:[%s531 + $0x18] sm:$0xff]
          %v1613 = vld [vmem:[%s531 + $0x20] sm:$0xff]
          %v1614 = vld [vmem:[%s531 + $0x28] sm:$0xff]
          %v1615 = vld [vmem:[%s531 + $0x30] sm:$0xff]
          %v1616 = vld [vmem:[%s531 + $0x38] sm:$0xff]
          %v1617 = vld [vmem:[%s531 + $0x40] sm:$0xff]
          %v1618 = vld [vmem:[%s531 + $0x48] sm:$0xff]
          %v1619 = vld [vmem:[%s531 + $0x50] sm:$0xff]
          %v1620 = vld [vmem:[%s531 + $0x58] sm:$0xff]
          %v1621 = vld [vmem:[%s531 + $0x60] sm:$0xff]
          %v1622 = vld [vmem:[%s531 + $0x68] sm:$0xff]
          %v1623 = vld [vmem:[%s531 + $0x70] sm:$0xff]
          %v1624 = vld [vmem:[%s531 + $0x78] sm:$0xff]
          %v1625 = vld [vmem:[%s531 + $0x80] sm:$0xff]
          %v1626 = vld [vmem:[%s531 + $0x88] sm:$0xff]
          %v1627 = vld [vmem:[%s531 + $0x90] sm:$0xff]
          %v1628 = vld [vmem:[%s531 + $0x98] sm:$0xff]
          %v1629 = vld [vmem:[%s531 + $0xa0] sm:$0xff]
          %v1630 = vld [vmem:[%s531 + $0xa8] sm:$0xff]
          %v1631 = vld [vmem:[%s531 + $0xb0] sm:$0xff]
          %v1632 = vld [vmem:[%s531 + $0xb8] sm:$0xff]
          %v1633 = vld [vmem:[%s531 + $0xc0] sm:$0xff]
          %v1634 = vld [vmem:[%s531 + $0xc8] sm:$0xff]
          %v1635 = vld [vmem:[%s531 + $0xd0] sm:$0xff]
          %v1636 = vld [vmem:[%s531 + $0xd8] sm:$0xff]
          %v1637 = vld [vmem:[%s531 + $0xe0] sm:$0xff]
          %v1638 = vld [vmem:[%s531 + $0xe8] sm:$0xff]
          %v1639 = vld [vmem:[%s531 + $0xf0] sm:$0xff]
          %v1640 = vld [vmem:[%s531 + $0xf8] sm:$0xff]
          %v1673 = vunpack.c.l.b16 %v1609
          %v1674 = vunpack.c.h.b16 %v1609
          %v1675 = vunpack.c.l.b16 %v1610
          %v1676 = vunpack.c.h.b16 %v1610
          %v1677 = vunpack.c.l.b16 %v1611
          %v1678 = vunpack.c.h.b16 %v1611
          %v1679 = vunpack.c.l.b16 %v1612
          %v1680 = vunpack.c.h.b16 %v1612
          %v1681 = vunpack.c.l.b16 %v1613
          %v1682 = vunpack.c.h.b16 %v1613
          %v1683 = vunpack.c.l.b16 %v1614
          %v1684 = vunpack.c.h.b16 %v1614
          %v1685 = vunpack.c.l.b16 %v1615
          %v1686 = vunpack.c.h.b16 %v1615
          %v1687 = vunpack.c.l.b16 %v1616
          %v1688 = vunpack.c.h.b16 %v1616
          %v1689 = vunpack.c.l.b16 %v1617
          %v1690 = vunpack.c.h.b16 %v1617
          %v1691 = vunpack.c.l.b16 %v1618
          %v1692 = vunpack.c.h.b16 %v1618
          %v1693 = vunpack.c.l.b16 %v1619
          %v1694 = vunpack.c.h.b16 %v1619
          %v1695 = vunpack.c.l.b16 %v1620
          %v1696 = vunpack.c.h.b16 %v1620
          %v1697 = vunpack.c.l.b16 %v1621
          %v1698 = vunpack.c.h.b16 %v1621
          %v1699 = vunpack.c.l.b16 %v1622
          %v1700 = vunpack.c.h.b16 %v1622
          %v1701 = vunpack.c.l.b16 %v1623
          %v1702 = vunpack.c.h.b16 %v1623
          %v1703 = vunpack.c.l.b16 %v1624
          %v1704 = vunpack.c.h.b16 %v1624
          %v1705 = vunpack.c.l.b16 %v1625
          %v1706 = vunpack.c.h.b16 %v1625
          %v1707 = vunpack.c.l.b16 %v1626
          %v1708 = vunpack.c.h.b16 %v1626
          %v1709 = vunpack.c.l.b16 %v1627
          %v1710 = vunpack.c.h.b16 %v1627
          %v1711 = vunpack.c.l.b16 %v1628
          %v1712 = vunpack.c.h.b16 %v1628
          %v1713 = vunpack.c.l.b16 %v1629
          %v1714 = vunpack.c.h.b16 %v1629
          %v1715 = vunpack.c.l.b16 %v1630
          %v1716 = vunpack.c.h.b16 %v1630
          %v1717 = vunpack.c.l.b16 %v1631
          %v1718 = vunpack.c.h.b16 %v1631
          %v1719 = vunpack.c.l.b16 %v1632
          %v1720 = vunpack.c.h.b16 %v1632
          %v1721 = vunpack.c.l.b16 %v1633
          %v1722 = vunpack.c.h.b16 %v1633
          %v1723 = vunpack.c.l.b16 %v1634
          %v1724 = vunpack.c.h.b16 %v1634
          %v1725 = vunpack.c.l.b16 %v1635
          %v1726 = vunpack.c.h.b16 %v1635
          %v1727 = vunpack.c.l.b16 %v1636
          %v1728 = vunpack.c.h.b16 %v1636
          %v1729 = vunpack.c.l.b16 %v1637
          %v1730 = vunpack.c.h.b16 %v1637
          %v1731 = vunpack.c.l.b16 %v1638
          %v1732 = vunpack.c.h.b16 %v1638
          %v1733 = vunpack.c.l.b16 %v1639
          %v1734 = vunpack.c.h.b16 %v1639
          %v1735 = vunpack.c.l.b16 %v1640
          %v1736 = vunpack.c.h.b16 %v1640
          %v1737 = vpack.c.b16 %v1675, %v1673
          %v1738 = vpack.c.b16 %v1676, %v1674
          %v1739 = vpack.c.b16 %v1679, %v1677
          %v1740 = vpack.c.b16 %v1680, %v1678
          %v1741 = vpack.c.b16 %v1683, %v1681
          %v1742 = vpack.c.b16 %v1684, %v1682
          %v1743 = vpack.c.b16 %v1687, %v1685
          %v1744 = vpack.c.b16 %v1688, %v1686
          %v1745 = vpack.c.b16 %v1691, %v1689
          %v1746 = vpack.c.b16 %v1692, %v1690
          %v1747 = vpack.c.b16 %v1695, %v1693
          %v1748 = vpack.c.b16 %v1696, %v1694
          %v1749 = vpack.c.b16 %v1699, %v1697
          %v1750 = vpack.c.b16 %v1700, %v1698
          %v1751 = vpack.c.b16 %v1703, %v1701
          %v1752 = vpack.c.b16 %v1704, %v1702
          %v1753 = vpack.c.b16 %v1707, %v1705
          %v1754 = vpack.c.b16 %v1708, %v1706
          %v1755 = vpack.c.b16 %v1711, %v1709
          %v1756 = vpack.c.b16 %v1712, %v1710
          %v1757 = vpack.c.b16 %v1715, %v1713
          %v1758 = vpack.c.b16 %v1716, %v1714
          %v1759 = vpack.c.b16 %v1719, %v1717
          %v1760 = vpack.c.b16 %v1720, %v1718
          %v1761 = vpack.c.b16 %v1723, %v1721
          %v1762 = vpack.c.b16 %v1724, %v1722
          %v1763 = vpack.c.b16 %v1727, %v1725
          %v1764 = vpack.c.b16 %v1728, %v1726
          %v1765 = vpack.c.b16 %v1731, %v1729
          %v1766 = vpack.c.b16 %v1732, %v1730
          %v1767 = vpack.c.b16 %v1735, %v1733
          %v1768 = vpack.c.b16 %v1736, %v1734
          %1801 = vmatpush.bf16.msra.mxu0 %v1751
          %1802 = vmatpush.bf16.msra.mxu0 %v1749
          %1803 = vmatpush.bf16.msra.mxu0 %v1747
          %1804 = vmatpush.bf16.msra.mxu0 %v1745
          %1805 = vmatpush.bf16.msra.mxu0 %v1743
          %1806 = vmatpush.bf16.msra.mxu0 %v1741
          %1807 = vmatpush.bf16.msra.mxu0 %v1739
          %1808 = vmatpush.bf16.msra.mxu0 %v1737
          %1809 = vmatmul.bf16.gmra.mxu0 %v1605
          %v1810 = vpop.f32.mrf.mxu0
          %v1811 = vadd.f32 0.0, %v1810
          %v1812 = vpop.f32.mrf.mxu0
          %v1813 = vadd.f32 0.0, %v1812
          %1814 = vmatmul.bf16.gmra.mxu0 %v1607
          %v1815 = vpop.f32.mrf.mxu0
          %v1816 = vadd.f32 0.0, %v1815
          %v1817 = vpop.f32.mrf.mxu0
          %v1818 = vadd.f32 0.0, %v1817
          %1819 = vdwg.mxu0
          %1820 = vmatpush.bf16.msra.mxu0 %v1767
          %1821 = vmatpush.bf16.msra.mxu0 %v1765
          %1822 = vmatpush.bf16.msra.mxu0 %v1763
          %1823 = vmatpush.bf16.msra.mxu0 %v1761
          %1824 = vmatpush.bf16.msra.mxu0 %v1759
          %1825 = vmatpush.bf16.msra.mxu0 %v1757
          %1826 = vmatpush.bf16.msra.mxu0 %v1755
          %1827 = vmatpush.bf16.msra.mxu0 %v1753
          %1828 = vmatmul.bf16.gmra.mxu0 %v1606
          %v1829 = vpop.f32.mrf.mxu0
          %v1830 = vadd.f32 %v1811, %v1829
          %v1831 = vpop.f32.mrf.mxu0
          %v1832 = vadd.f32 %v1813, %v1831
          %1833 = vmatmul.bf16.gmra.mxu0 %v1608
          %v1834 = vpop.f32.mrf.mxu0
          %v1835 = vadd.f32 %v1816, %v1834
          %v1836 = vpop.f32.mrf.mxu0
          %v1837 = vadd.f32 %v1818, %v1836
          %1838 = vdwg.mxu0
          %1839 = vmatpush.bf16.msra.mxu0 %v1752
          %1840 = vmatpush.bf16.msra.mxu0 %v1750
          %1841 = vmatpush.bf16.msra.mxu0 %v1748
          %1842 = vmatpush.bf16.msra.mxu0 %v1746
          %1843 = vmatpush.bf16.msra.mxu0 %v1744
          %1844 = vmatpush.bf16.msra.mxu0 %v1742
          %1845 = vmatpush.bf16.msra.mxu0 %v1740
          %1846 = vmatpush.bf16.msra.mxu0 %v1738
          %1847 = vmatmul.bf16.gmra.mxu0 %v1605
          %v1848 = vpop.f32.mrf.mxu0
          %v1849 = vadd.f32 0.0, %v1848
          %v1850 = vpop.f32.mrf.mxu0
          %v1851 = vadd.f32 0.0, %v1850
          %1852 = vmatmul.bf16.gmra.mxu0 %v1607
          %v1853 = vpop.f32.mrf.mxu0
          %v1854 = vadd.f32 0.0, %v1853
          %v1855 = vpop.f32.mrf.mxu0
          %v1856 = vadd.f32 0.0, %v1855
          %1857 = vdwg.mxu0
          %1858 = vmatpush.bf16.msra.mxu0 %v1768
          %1859 = vmatpush.bf16.msra.mxu0 %v1766
          %1860 = vmatpush.bf16.msra.mxu0 %v1764
          %1861 = vmatpush.bf16.msra.mxu0 %v1762
          %1862 = vmatpush.bf16.msra.mxu0 %v1760
          %1863 = vmatpush.bf16.msra.mxu0 %v1758
          %1864 = vmatpush.bf16.msra.mxu0 %v1756
          %1865 = vmatpush.bf16.msra.mxu0 %v1754
          %1866 = vmatmul.bf16.gmra.mxu0 %v1606
          %v1867 = vpop.f32.mrf.mxu0
          %v1868 = vadd.f32 %v1849, %v1867
          %v1869 = vpop.f32.mrf.mxu0
          %v1870 = vadd.f32 %v1851, %v1869
          %1871 = vmatmul.bf16.gmra.mxu0 %v1608
          %v1872 = vpop.f32.mrf.mxu0
          %v1873 = vadd.f32 %v1854, %v1872
          %v1874 = vpop.f32.mrf.mxu0
          %v1875 = vadd.f32 %v1856, %v1874
          %1876 = vdwg.mxu0
          %s1877 = scalar_lea.vmem %s531, 256 [#allocation9]
          %v1878 = vld [vmem:[%s1877] sm:$0xff]
          %v1879 = vld [vmem:[%s1877 + $0x8] sm:$0xff]
          %v1880 = vld [vmem:[%s1877 + $0x10] sm:$0xff]
          %v1881 = vld [vmem:[%s1877 + $0x18] sm:$0xff]
          %v1882 = vld [vmem:[%s1877 + $0x20] sm:$0xff]
          %v1883 = vld [vmem:[%s1877 + $0x28] sm:$0xff]
          %v1884 = vld [vmem:[%s1877 + $0x30] sm:$0xff]
          %v1885 = vld [vmem:[%s1877 + $0x38] sm:$0xff]
          %v1886 = vld [vmem:[%s1877 + $0x40] sm:$0xff]
          %v1887 = vld [vmem:[%s1877 + $0x48] sm:$0xff]
          %v1888 = vld [vmem:[%s1877 + $0x50] sm:$0xff]
          %v1889 = vld [vmem:[%s1877 + $0x58] sm:$0xff]
          %v1890 = vld [vmem:[%s1877 + $0x60] sm:$0xff]
          %v1891 = vld [vmem:[%s1877 + $0x68] sm:$0xff]
          %v1892 = vld [vmem:[%s1877 + $0x70] sm:$0xff]
          %v1893 = vld [vmem:[%s1877 + $0x78] sm:$0xff]
          %v1894 = vld [vmem:[%s1877 + $0x80] sm:$0xff]
          %v1895 = vld [vmem:[%s1877 + $0x88] sm:$0xff]
          %v1896 = vld [vmem:[%s1877 + $0x90] sm:$0xff]
          %v1897 = vld [vmem:[%s1877 + $0x98] sm:$0xff]
          %v1898 = vld [vmem:[%s1877 + $0xa0] sm:$0xff]
          %v1899 = vld [vmem:[%s1877 + $0xa8] sm:$0xff]
          %v1900 = vld [vmem:[%s1877 + $0xb0] sm:$0xff]
          %v1901 = vld [vmem:[%s1877 + $0xb8] sm:$0xff]
          %v1902 = vld [vmem:[%s1877 + $0xc0] sm:$0xff]
          %v1903 = vld [vmem:[%s1877 + $0xc8] sm:$0xff]
          %v1904 = vld [vmem:[%s1877 + $0xd0] sm:$0xff]
          %v1905 = vld [vmem:[%s1877 + $0xd8] sm:$0xff]
          %v1906 = vld [vmem:[%s1877 + $0xe0] sm:$0xff]
          %v1907 = vld [vmem:[%s1877 + $0xe8] sm:$0xff]
          %v1908 = vld [vmem:[%s1877 + $0xf0] sm:$0xff]
          %v1909 = vld [vmem:[%s1877 + $0xf8] sm:$0xff]
          %v1942 = vunpack.c.l.b16 %v1878
          %v1943 = vunpack.c.h.b16 %v1878
          %v1944 = vunpack.c.l.b16 %v1879
          %v1945 = vunpack.c.h.b16 %v1879
          %v1946 = vunpack.c.l.b16 %v1880
          %v1947 = vunpack.c.h.b16 %v1880
          %v1948 = vunpack.c.l.b16 %v1881
          %v1949 = vunpack.c.h.b16 %v1881
          %v1950 = vunpack.c.l.b16 %v1882
          %v1951 = vunpack.c.h.b16 %v1882
          %v1952 = vunpack.c.l.b16 %v1883
          %v1953 = vunpack.c.h.b16 %v1883
          %v1954 = vunpack.c.l.b16 %v1884
          %v1955 = vunpack.c.h.b16 %v1884
          %v1956 = vunpack.c.l.b16 %v1885
          %v1957 = vunpack.c.h.b16 %v1885
          %v1958 = vunpack.c.l.b16 %v1886
          %v1959 = vunpack.c.h.b16 %v1886
          %v1960 = vunpack.c.l.b16 %v1887
          %v1961 = vunpack.c.h.b16 %v1887
          %v1962 = vunpack.c.l.b16 %v1888
          %v1963 = vunpack.c.h.b16 %v1888
          %v1964 = vunpack.c.l.b16 %v1889
          %v1965 = vunpack.c.h.b16 %v1889
          %v1966 = vunpack.c.l.b16 %v1890
          %v1967 = vunpack.c.h.b16 %v1890
          %v1968 = vunpack.c.l.b16 %v1891
          %v1969 = vunpack.c.h.b16 %v1891
          %v1970 = vunpack.c.l.b16 %v1892
          %v1971 = vunpack.c.h.b16 %v1892
          %v1972 = vunpack.c.l.b16 %v1893
          %v1973 = vunpack.c.h.b16 %v1893
          %v1974 = vunpack.c.l.b16 %v1894
          %v1975 = vunpack.c.h.b16 %v1894
          %v1976 = vunpack.c.l.b16 %v1895
          %v1977 = vunpack.c.h.b16 %v1895
          %v1978 = vunpack.c.l.b16 %v1896
          %v1979 = vunpack.c.h.b16 %v1896
          %v1980 = vunpack.c.l.b16 %v1897
          %v1981 = vunpack.c.h.b16 %v1897
          %v1982 = vunpack.c.l.b16 %v1898
          %v1983 = vunpack.c.h.b16 %v1898
          %v1984 = vunpack.c.l.b16 %v1899
          %v1985 = vunpack.c.h.b16 %v1899
          %v1986 = vunpack.c.l.b16 %v1900
          %v1987 = vunpack.c.h.b16 %v1900
          %v1988 = vunpack.c.l.b16 %v1901
          %v1989 = vunpack.c.h.b16 %v1901
          %v1990 = vunpack.c.l.b16 %v1902
          %v1991 = vunpack.c.h.b16 %v1902
          %v1992 = vunpack.c.l.b16 %v1903
          %v1993 = vunpack.c.h.b16 %v1903
          %v1994 = vunpack.c.l.b16 %v1904
          %v1995 = vunpack.c.h.b16 %v1904
          %v1996 = vunpack.c.l.b16 %v1905
          %v1997 = vunpack.c.h.b16 %v1905
          %v1998 = vunpack.c.l.b16 %v1906
          %v1999 = vunpack.c.h.b16 %v1906
          %v2000 = vunpack.c.l.b16 %v1907
          %v2001 = vunpack.c.h.b16 %v1907
          %v2002 = vunpack.c.l.b16 %v1908
          %v2003 = vunpack.c.h.b16 %v1908
          %v2004 = vunpack.c.l.b16 %v1909
          %v2005 = vunpack.c.h.b16 %v1909
          %v2006 = vpack.c.b16 %v1944, %v1942
          %v2007 = vpack.c.b16 %v1945, %v1943
          %v2008 = vpack.c.b16 %v1948, %v1946
          %v2009 = vpack.c.b16 %v1949, %v1947
          %v2010 = vpack.c.b16 %v1952, %v1950
          %v2011 = vpack.c.b16 %v1953, %v1951
          %v2012 = vpack.c.b16 %v1956, %v1954
          %v2013 = vpack.c.b16 %v1957, %v1955
          %v2014 = vpack.c.b16 %v1960, %v1958
          %v2015 = vpack.c.b16 %v1961, %v1959
          %v2016 = vpack.c.b16 %v1964, %v1962
          %v2017 = vpack.c.b16 %v1965, %v1963
          %v2018 = vpack.c.b16 %v1968, %v1966
          %v2019 = vpack.c.b16 %v1969, %v1967
          %v2020 = vpack.c.b16 %v1972, %v1970
          %v2021 = vpack.c.b16 %v1973, %v1971
          %v2022 = vpack.c.b16 %v1976, %v1974
          %v2023 = vpack.c.b16 %v1977, %v1975
          %v2024 = vpack.c.b16 %v1980, %v1978
          %v2025 = vpack.c.b16 %v1981, %v1979
          %v2026 = vpack.c.b16 %v1984, %v1982
          %v2027 = vpack.c.b16 %v1985, %v1983
          %v2028 = vpack.c.b16 %v1988, %v1986
          %v2029 = vpack.c.b16 %v1989, %v1987
          %v2030 = vpack.c.b16 %v1992, %v1990
          %v2031 = vpack.c.b16 %v1993, %v1991
          %v2032 = vpack.c.b16 %v1996, %v1994
          %v2033 = vpack.c.b16 %v1997, %v1995
          %v2034 = vpack.c.b16 %v2000, %v1998
          %v2035 = vpack.c.b16 %v2001, %v1999
          %v2036 = vpack.c.b16 %v2004, %v2002
          %v2037 = vpack.c.b16 %v2005, %v2003
          %2070 = vmatpush.bf16.msra.mxu0 %v2020
          %2071 = vmatpush.bf16.msra.mxu0 %v2018
          %2072 = vmatpush.bf16.msra.mxu0 %v2016
          %2073 = vmatpush.bf16.msra.mxu0 %v2014
          %2074 = vmatpush.bf16.msra.mxu0 %v2012
          %2075 = vmatpush.bf16.msra.mxu0 %v2010
          %2076 = vmatpush.bf16.msra.mxu0 %v2008
          %2077 = vmatpush.bf16.msra.mxu0 %v2006
          %2078 = vmatmul.bf16.gmra.mxu0 %v1605
          %v2079 = vpop.f32.mrf.mxu0
          %v2080 = vadd.f32 0.0, %v2079
          %v2081 = vpop.f32.mrf.mxu0
          %v2082 = vadd.f32 0.0, %v2081
          %2083 = vmatmul.bf16.gmra.mxu0 %v1607
          %v2084 = vpop.f32.mrf.mxu0
          %v2085 = vadd.f32 0.0, %v2084
          %v2086 = vpop.f32.mrf.mxu0
          %v2087 = vadd.f32 0.0, %v2086
          %2088 = vdwg.mxu0
          %2089 = vmatpush.bf16.msra.mxu0 %v2036
          %2090 = vmatpush.bf16.msra.mxu0 %v2034
          %2091 = vmatpush.bf16.msra.mxu0 %v2032
          %2092 = vmatpush.bf16.msra.mxu0 %v2030
          %2093 = vmatpush.bf16.msra.mxu0 %v2028
          %2094 = vmatpush.bf16.msra.mxu0 %v2026
          %2095 = vmatpush.bf16.msra.mxu0 %v2024
          %2096 = vmatpush.bf16.msra.mxu0 %v2022
          %2097 = vmatmul.bf16.gmra.mxu0 %v1606
          %v2098 = vpop.f32.mrf.mxu0
          %v2099 = vadd.f32 %v2080, %v2098
          %v2100 = vpop.f32.mrf.mxu0
          %v2101 = vadd.f32 %v2082, %v2100
          %2102 = vmatmul.bf16.gmra.mxu0 %v1608
          %v2103 = vpop.f32.mrf.mxu0
          %v2104 = vadd.f32 %v2085, %v2103
          %v2105 = vpop.f32.mrf.mxu0
          %v2106 = vadd.f32 %v2087, %v2105
          %2107 = vdwg.mxu0
          %2108 = vmatpush.bf16.msra.mxu0 %v2021
          %2109 = vmatpush.bf16.msra.mxu0 %v2019
          %2110 = vmatpush.bf16.msra.mxu0 %v2017
          %2111 = vmatpush.bf16.msra.mxu0 %v2015
          %2112 = vmatpush.bf16.msra.mxu0 %v2013
          %2113 = vmatpush.bf16.msra.mxu0 %v2011
          %2114 = vmatpush.bf16.msra.mxu0 %v2009
          %2115 = vmatpush.bf16.msra.mxu0 %v2007
          %2116 = vmatmul.bf16.gmra.mxu0 %v1605
          %v2117 = vpop.f32.mrf.mxu0
          %v2118 = vadd.f32 0.0, %v2117
          %v2119 = vpop.f32.mrf.mxu0
          %v2120 = vadd.f32 0.0, %v2119
          %2121 = vmatmul.bf16.gmra.mxu0 %v1607
          %v2122 = vpop.f32.mrf.mxu0
          %v2123 = vadd.f32 0.0, %v2122
          %v2124 = vpop.f32.mrf.mxu0
          %v2125 = vadd.f32 0.0, %v2124
          %2126 = vdwg.mxu0
          %2127 = vmatpush.bf16.msra.mxu0 %v2037
          %2128 = vmatpush.bf16.msra.mxu0 %v2035
          %2129 = vmatpush.bf16.msra.mxu0 %v2033
          %2130 = vmatpush.bf16.msra.mxu0 %v2031
          %2131 = vmatpush.bf16.msra.mxu0 %v2029
          %2132 = vmatpush.bf16.msra.mxu0 %v2027
          %2133 = vmatpush.bf16.msra.mxu0 %v2025
          %2134 = vmatpush.bf16.msra.mxu0 %v2023
          %2135 = vmatmul.bf16.gmra.mxu0 %v1606
          %v2136 = vpop.f32.mrf.mxu0
          %v2137 = vadd.f32 %v2118, %v2136
          %v2138 = vpop.f32.mrf.mxu0
          %v2139 = vadd.f32 %v2120, %v2138
          %2140 = vmatmul.bf16.gmra.mxu0 %v1608
          %v2141 = vpop.f32.mrf.mxu0
          %v2142 = vadd.f32 %v2123, %v2141
          %v2143 = vpop.f32.mrf.mxu0
          %v2144 = vadd.f32 %v2125, %v2143
          %2145 = vdwg.mxu0
          %s2146 = scalar_lea.vmem %s531, 512 [#allocation9]
          %v2147 = vld [vmem:[%s2146] sm:$0xff]
          %v2148 = vld [vmem:[%s2146 + $0x8] sm:$0xff]
          %v2149 = vld [vmem:[%s2146 + $0x10] sm:$0xff]
          %v2150 = vld [vmem:[%s2146 + $0x18] sm:$0xff]
          %v2151 = vld [vmem:[%s2146 + $0x20] sm:$0xff]
          %v2152 = vld [vmem:[%s2146 + $0x28] sm:$0xff]
          %v2153 = vld [vmem:[%s2146 + $0x30] sm:$0xff]
          %v2154 = vld [vmem:[%s2146 + $0x38] sm:$0xff]
          %v2155 = vld [vmem:[%s2146 + $0x40] sm:$0xff]
          %v2156 = vld [vmem:[%s2146 + $0x48] sm:$0xff]
          %v2157 = vld [vmem:[%s2146 + $0x50] sm:$0xff]
          %v2158 = vld [vmem:[%s2146 + $0x58] sm:$0xff]
          %v2159 = vld [vmem:[%s2146 + $0x60] sm:$0xff]
          %v2160 = vld [vmem:[%s2146 + $0x68] sm:$0xff]
          %v2161 = vld [vmem:[%s2146 + $0x70] sm:$0xff]
          %v2162 = vld [vmem:[%s2146 + $0x78] sm:$0xff]
          %v2163 = vld [vmem:[%s2146 + $0x80] sm:$0xff]
          %v2164 = vld [vmem:[%s2146 + $0x88] sm:$0xff]
          %v2165 = vld [vmem:[%s2146 + $0x90] sm:$0xff]
          %v2166 = vld [vmem:[%s2146 + $0x98] sm:$0xff]
          %v2167 = vld [vmem:[%s2146 + $0xa0] sm:$0xff]
          %v2168 = vld [vmem:[%s2146 + $0xa8] sm:$0xff]
          %v2169 = vld [vmem:[%s2146 + $0xb0] sm:$0xff]
          %v2170 = vld [vmem:[%s2146 + $0xb8] sm:$0xff]
          %v2171 = vld [vmem:[%s2146 + $0xc0] sm:$0xff]
          %v2172 = vld [vmem:[%s2146 + $0xc8] sm:$0xff]
          %v2173 = vld [vmem:[%s2146 + $0xd0] sm:$0xff]
          %v2174 = vld [vmem:[%s2146 + $0xd8] sm:$0xff]
          %v2175 = vld [vmem:[%s2146 + $0xe0] sm:$0xff]
          %v2176 = vld [vmem:[%s2146 + $0xe8] sm:$0xff]
          %v2177 = vld [vmem:[%s2146 + $0xf0] sm:$0xff]
          %v2178 = vld [vmem:[%s2146 + $0xf8] sm:$0xff]
          %v2211 = vunpack.c.l.b16 %v2147
          %v2212 = vunpack.c.h.b16 %v2147
          %v2213 = vunpack.c.l.b16 %v2148
          %v2214 = vunpack.c.h.b16 %v2148
          %v2215 = vunpack.c.l.b16 %v2149
          %v2216 = vunpack.c.h.b16 %v2149
          %v2217 = vunpack.c.l.b16 %v2150
          %v2218 = vunpack.c.h.b16 %v2150
          %v2219 = vunpack.c.l.b16 %v2151
          %v2220 = vunpack.c.h.b16 %v2151
          %v2221 = vunpack.c.l.b16 %v2152
          %v2222 = vunpack.c.h.b16 %v2152
          %v2223 = vunpack.c.l.b16 %v2153
          %v2224 = vunpack.c.h.b16 %v2153
          %v2225 = vunpack.c.l.b16 %v2154
          %v2226 = vunpack.c.h.b16 %v2154
          %v2227 = vunpack.c.l.b16 %v2155
          %v2228 = vunpack.c.h.b16 %v2155
          %v2229 = vunpack.c.l.b16 %v2156
          %v2230 = vunpack.c.h.b16 %v2156
          %v2231 = vunpack.c.l.b16 %v2157
          %v2232 = vunpack.c.h.b16 %v2157
          %v2233 = vunpack.c.l.b16 %v2158
          %v2234 = vunpack.c.h.b16 %v2158
          %v2235 = vunpack.c.l.b16 %v2159
          %v2236 = vunpack.c.h.b16 %v2159
          %v2237 = vunpack.c.l.b16 %v2160
          %v2238 = vunpack.c.h.b16 %v2160
          %v2239 = vunpack.c.l.b16 %v2161
          %v2240 = vunpack.c.h.b16 %v2161
          %v2241 = vunpack.c.l.b16 %v2162
          %v2242 = vunpack.c.h.b16 %v2162
          %v2243 = vunpack.c.l.b16 %v2163
          %v2244 = vunpack.c.h.b16 %v2163
          %v2245 = vunpack.c.l.b16 %v2164
          %v2246 = vunpack.c.h.b16 %v2164
          %v2247 = vunpack.c.l.b16 %v2165
          %v2248 = vunpack.c.h.b16 %v2165
          %v2249 = vunpack.c.l.b16 %v2166
          %v2250 = vunpack.c.h.b16 %v2166
          %v2251 = vunpack.c.l.b16 %v2167
          %v2252 = vunpack.c.h.b16 %v2167
          %v2253 = vunpack.c.l.b16 %v2168
          %v2254 = vunpack.c.h.b16 %v2168
          %v2255 = vunpack.c.l.b16 %v2169
          %v2256 = vunpack.c.h.b16 %v2169
          %v2257 = vunpack.c.l.b16 %v2170
          %v2258 = vunpack.c.h.b16 %v2170
          %v2259 = vunpack.c.l.b16 %v2171
          %v2260 = vunpack.c.h.b16 %v2171
          %v2261 = vunpack.c.l.b16 %v2172
          %v2262 = vunpack.c.h.b16 %v2172
          %v2263 = vunpack.c.l.b16 %v2173
          %v2264 = vunpack.c.h.b16 %v2173
          %v2265 = vunpack.c.l.b16 %v2174
          %v2266 = vunpack.c.h.b16 %v2174
          %v2267 = vunpack.c.l.b16 %v2175
          %v2268 = vunpack.c.h.b16 %v2175
          %v2269 = vunpack.c.l.b16 %v2176
          %v2270 = vunpack.c.h.b16 %v2176
          %v2271 = vunpack.c.l.b16 %v2177
          %v2272 = vunpack.c.h.b16 %v2177
          %v2273 = vunpack.c.l.b16 %v2178
          %v2274 = vunpack.c.h.b16 %v2178
          %v2275 = vpack.c.b16 %v2213, %v2211
          %v2276 = vpack.c.b16 %v2214, %v2212
          %v2277 = vpack.c.b16 %v2217, %v2215
          %v2278 = vpack.c.b16 %v2218, %v2216
          %v2279 = vpack.c.b16 %v2221, %v2219
          %v2280 = vpack.c.b16 %v2222, %v2220
          %v2281 = vpack.c.b16 %v2225, %v2223
          %v2282 = vpack.c.b16 %v2226, %v2224
          %v2283 = vpack.c.b16 %v2229, %v2227
          %v2284 = vpack.c.b16 %v2230, %v2228
          %v2285 = vpack.c.b16 %v2233, %v2231
          %v2286 = vpack.c.b16 %v2234, %v2232
          %v2287 = vpack.c.b16 %v2237, %v2235
          %v2288 = vpack.c.b16 %v2238, %v2236
          %v2289 = vpack.c.b16 %v2241, %v2239
          %v2290 = vpack.c.b16 %v2242, %v2240
          %v2291 = vpack.c.b16 %v2245, %v2243
          %v2292 = vpack.c.b16 %v2246, %v2244
          %v2293 = vpack.c.b16 %v2249, %v2247
          %v2294 = vpack.c.b16 %v2250, %v2248
          %v2295 = vpack.c.b16 %v2253, %v2251
          %v2296 = vpack.c.b16 %v2254, %v2252
          %v2297 = vpack.c.b16 %v2257, %v2255
          %v2298 = vpack.c.b16 %v2258, %v2256
          %v2299 = vpack.c.b16 %v2261, %v2259
          %v2300 = vpack.c.b16 %v2262, %v2260
          %v2301 = vpack.c.b16 %v2265, %v2263
          %v2302 = vpack.c.b16 %v2266, %v2264
          %v2303 = vpack.c.b16 %v2269, %v2267
          %v2304 = vpack.c.b16 %v2270, %v2268
          %v2305 = vpack.c.b16 %v2273, %v2271
          %v2306 = vpack.c.b16 %v2274, %v2272
          %2339 = vmatpush.bf16.msra.mxu0 %v2289
          %2340 = vmatpush.bf16.msra.mxu0 %v2287
          %2341 = vmatpush.bf16.msra.mxu0 %v2285
          %2342 = vmatpush.bf16.msra.mxu0 %v2283
          %2343 = vmatpush.bf16.msra.mxu0 %v2281
          %2344 = vmatpush.bf16.msra.mxu0 %v2279
          %2345 = vmatpush.bf16.msra.mxu0 %v2277
          %2346 = vmatpush.bf16.msra.mxu0 %v2275
          %2347 = vmatmul.bf16.gmra.mxu0 %v1605
          %v2348 = vpop.f32.mrf.mxu0
          %v2349 = vadd.f32 0.0, %v2348
          %v2350 = vpop.f32.mrf.mxu0
          %v2351 = vadd.f32 0.0, %v2350
          %2352 = vmatmul.bf16.gmra.mxu0 %v1607
          %v2353 = vpop.f32.mrf.mxu0
          %v2354 = vadd.f32 0.0, %v2353
          %v2355 = vpop.f32.mrf.mxu0
          %v2356 = vadd.f32 0.0, %v2355
          %2357 = vdwg.mxu0
          %2358 = vmatpush.bf16.msra.mxu0 %v2305
          %2359 = vmatpush.bf16.msra.mxu0 %v2303
          %2360 = vmatpush.bf16.msra.mxu0 %v2301
          %2361 = vmatpush.bf16.msra.mxu0 %v2299
          %2362 = vmatpush.bf16.msra.mxu0 %v2297
          %2363 = vmatpush.bf16.msra.mxu0 %v2295
          %2364 = vmatpush.bf16.msra.mxu0 %v2293
          %2365 = vmatpush.bf16.msra.mxu0 %v2291
          %2366 = vmatmul.bf16.gmra.mxu0 %v1606
          %v2367 = vpop.f32.mrf.mxu0
          %v2368 = vadd.f32 %v2349, %v2367
          %v2369 = vpop.f32.mrf.mxu0
          %v2370 = vadd.f32 %v2351, %v2369
          %2371 = vmatmul.bf16.gmra.mxu0 %v1608
          %v2372 = vpop.f32.mrf.mxu0
          %v2373 = vadd.f32 %v2354, %v2372
          %v2374 = vpop.f32.mrf.mxu0
          %v2375 = vadd.f32 %v2356, %v2374
          %2376 = vdwg.mxu0
          %2377 = vmatpush.bf16.msra.mxu0 %v2290
          %2378 = vmatpush.bf16.msra.mxu0 %v2288
          %2379 = vmatpush.bf16.msra.mxu0 %v2286
          %2380 = vmatpush.bf16.msra.mxu0 %v2284
          %2381 = vmatpush.bf16.msra.mxu0 %v2282
          %2382 = vmatpush.bf16.msra.mxu0 %v2280
          %2383 = vmatpush.bf16.msra.mxu0 %v2278
          %2384 = vmatpush.bf16.msra.mxu0 %v2276
          %2385 = vmatmul.bf16.gmra.mxu0 %v1605
          %v2386 = vpop.f32.mrf.mxu0
          %v2387 = vadd.f32 0.0, %v2386
          %v2388 = vpop.f32.mrf.mxu0
          %v2389 = vadd.f32 0.0, %v2388
          %2390 = vmatmul.bf16.gmra.mxu0 %v1607
          %v2391 = vpop.f32.mrf.mxu0
          %v2392 = vadd.f32 0.0, %v2391
          %v2393 = vpop.f32.mrf.mxu0
          %v2394 = vadd.f32 0.0, %v2393
          %2395 = vdwg.mxu0
          %2396 = vmatpush.bf16.msra.mxu0 %v2306
          %2397 = vmatpush.bf16.msra.mxu0 %v2304
          %2398 = vmatpush.bf16.msra.mxu0 %v2302
          %2399 = vmatpush.bf16.msra.mxu0 %v2300
          %2400 = vmatpush.bf16.msra.mxu0 %v2298
          %2401 = vmatpush.bf16.msra.mxu0 %v2296
          %2402 = vmatpush.bf16.msra.mxu0 %v2294
          %2403 = vmatpush.bf16.msra.mxu0 %v2292
          %2404 = vmatmul.bf16.gmra.mxu0 %v1606
          %v2405 = vpop.f32.mrf.mxu0
          %v2406 = vadd.f32 %v2387, %v2405
          %v2407 = vpop.f32.mrf.mxu0
          %v2408 = vadd.f32 %v2389, %v2407
          %2409 = vmatmul.bf16.gmra.mxu0 %v1608
          %v2410 = vpop.f32.mrf.mxu0
          %v2411 = vadd.f32 %v2392, %v2410
          %v2412 = vpop.f32.mrf.mxu0
          %v2413 = vadd.f32 %v2394, %v2412
          %2414 = vdwg.mxu0
          %v2415 = vrot.slane %v1830, 7
          %v2416 = vrot.slane %v1868, 7
          %v2417 = vrot.slane %v1832, 7
          %v2418 = vrot.slane %v1870, 7
          %v2419 = vrot.slane %v1835, 7
          %v2420 = vrot.slane %v1873, 7
          %v2421 = vrot.slane %v1837, 7
          %v2422 = vrot.slane %v1875, 7
          %v2423 = vsel %vm1500, %v2419, %v2421
          %v2424 = vsel %vm1500, %v2420, %v2422
          %v2425 = vsel %vm1500, %v2417, %v2419
          %v2426 = vsel %vm1500, %v2418, %v2420
          %v2427 = vsel %vm1500, %v2415, %v2417
          %v2428 = vsel %vm1500, %v2416, %v2418
          %v2429 = vsel %vm1500, %v2421, %v2415
          %v2430 = vsel %vm1500, %v2422, %v2416
          %v2431 = vsel %vm1490, 0.0, %v2429
          %v2432 = vsel %vm1490, 0.0, %v2430
          %v2433 = vsel %vm1491, 0.0, %v2427
          %v2434 = vsel %vm1491, 0.0, %v2428
          %v2435 = vsel %vm1490, 0.0, %v2425
          %v2436 = vsel %vm1490, 0.0, %v2426
          %v2437 = vsel %vm1491, 0.0, %v2423
          %v2438 = vsel %vm1491, 0.0, %v2424
          %v2439 = vrot.slane %v2368, 1
          %v2440 = vrot.slane %v2406, 1
          %v2441 = vrot.slane %v2370, 1
          %v2442 = vrot.slane %v2408, 1
          %v2443 = vrot.slane %v2373, 1
          %v2444 = vrot.slane %v2411, 1
          %v2445 = vrot.slane %v2375, 1
          %v2446 = vrot.slane %v2413, 1
          %v2447 = vsel %vm1527, %v2443, %v2445
          %v2448 = vsel %vm1527, %v2444, %v2446
          %v2449 = vsel %vm1527, %v2441, %v2443
          %v2450 = vsel %vm1527, %v2442, %v2444
          %v2451 = vsel %vm1527, %v2439, %v2441
          %v2452 = vsel %vm1527, %v2440, %v2442
          %v2453 = vsel %vm1527, %v2445, %v2439
          %v2454 = vsel %vm1527, %v2446, %v2440
          %v2455 = vsel %vm1517, 0.0, %v2451
          %v2456 = vsel %vm1517, 0.0, %v2452
          %v2457 = vsel %vm1518, 0.0, %v2449
          %v2458 = vsel %vm1518, 0.0, %v2450
          %v2459 = vsel %vm1517, 0.0, %v2447
          %v2460 = vsel %vm1517, 0.0, %v2448
          %v2461 = vsel %vm1518, 0.0, %v2453
          %v2462 = vsel %vm1518, 0.0, %v2454
          %v2463 = vadd.f32 %v2431, %v2099
          %v2464 = vadd.f32 %v2432, %v2137
          %v2465 = vadd.f32 %v2433, %v2101
          %v2466 = vadd.f32 %v2434, %v2139
          %v2467 = vadd.f32 %v2435, %v2104
          %v2468 = vadd.f32 %v2436, %v2142
          %v2469 = vadd.f32 %v2437, %v2106
          %v2470 = vadd.f32 %v2438, %v2144
          %v2471 = vadd.f32 %v2463, %v2455
          %v2472 = vadd.f32 %v2464, %v2456
          %v2473 = vadd.f32 %v2465, %v2457
          %v2474 = vadd.f32 %v2466, %v2458
          %v2475 = vadd.f32 %v2467, %v2459
          %v2476 = vadd.f32 %v2468, %v2460
          %v2477 = vadd.f32 %v2469, %v2461
          %v2478 = vadd.f32 %v2470, %v2462
          %v2480 = vperm.slane %v1604, 0
          %v2481 = vperm.slane %v1604, 1
          %v2484 = vadd.f32 %v2471, %v2480
          %v2485 = vadd.f32 %v2472, %v2481
          %v2486 = vadd.f32 %v2473, %v2480
          %v2487 = vadd.f32 %v2474, %v2481
          %v2488 = vadd.f32 %v2475, %v2480
          %v2489 = vadd.f32 %v2476, %v2481
          %v2490 = vadd.f32 %v2477, %v2480
          %v2491 = vadd.f32 %v2478, %v2481
          %v2492 = vadd.f32 %v2484, %v2486
          %v2493 = vrot.slane %v2492, 4
          %v2494 = vadd.f32 %v2492, %v2493
          %v2495 = vrot.slane %v2494, 2
          %v2496 = vadd.f32 %v2494, %v2495
          %v2497 = vrot.slane %v2496, 1
          %v2498 = vadd.f32 %v2496, %v2497
          %v2499 = vadd.f32 %v2485, %v2487
          %v2500 = vrot.slane %v2499, 4
          %v2501 = vadd.f32 %v2499, %v2500
          %v2502 = vrot.slane %v2501, 2
          %v2503 = vadd.f32 %v2501, %v2502
          %v2504 = vrot.slane %v2503, 1
          %v2505 = vadd.f32 %v2503, %v2504
          %v2506 = vadd.f32 %v2488, %v2490
          %v2507 = vrot.slane %v2506, 4
          %v2508 = vadd.f32 %v2506, %v2507
          %v2509 = vrot.slane %v2508, 2
          %v2510 = vadd.f32 %v2508, %v2509
          %v2511 = vrot.slane %v2510, 1
          %v2512 = vadd.f32 %v2510, %v2511
          %v2513 = vadd.f32 %v2489, %v2491
          %v2514 = vrot.slane %v2513, 4
          %v2515 = vadd.f32 %v2513, %v2514
          %v2516 = vrot.slane %v2515, 2
          %v2517 = vadd.f32 %v2515, %v2516
          %v2518 = vrot.slane %v2517, 1
          %v2519 = vadd.f32 %v2517, %v2518
          %v2520 = vmax.f32 %v2484, %v2486
          %v2521 = vrot.slane %v2520, 4
          %v2522 = vmax.f32 %v2520, %v2521
          %v2523 = vrot.slane %v2522, 2
          %v2524 = vmax.f32 %v2522, %v2523
          %v2525 = vrot.slane %v2524, 1
          %v2526 = vmax.f32 %v2524, %v2525
          %v2527 = vmax.f32 %v2485, %v2487
          %v2528 = vrot.slane %v2527, 4
          %v2529 = vmax.f32 %v2527, %v2528
          %v2530 = vrot.slane %v2529, 2
          %v2531 = vmax.f32 %v2529, %v2530
          %v2532 = vrot.slane %v2531, 1
          %v2533 = vmax.f32 %v2531, %v2532
          %v2534 = vmax.f32 %v2488, %v2490
          %v2535 = vrot.slane %v2534, 4
          %v2536 = vmax.f32 %v2534, %v2535
          %v2537 = vrot.slane %v2536, 2
          %v2538 = vmax.f32 %v2536, %v2537
          %v2539 = vrot.slane %v2538, 1
          %v2540 = vmax.f32 %v2538, %v2539
          %v2541 = vmax.f32 %v2489, %v2491
          %v2542 = vrot.slane %v2541, 4
          %v2543 = vmax.f32 %v2541, %v2542
          %v2544 = vrot.slane %v2543, 2
          %v2545 = vmax.f32 %v2543, %v2544
          %v2546 = vrot.slane %v2545, 1
          %v2547 = vmax.f32 %v2545, %v2546
          %2550 = vrot.lane.b32.xlu0 %v2498, 112
          %v2551 = vpop.permute.xlu0 %2550
          %2552 = vrot.lane.b32.xlu0 %v2512, 112
          %v2553 = vpop.permute.xlu0 %2552
          %2554 = vrot.lane.b32.xlu0 %v2498, 96
          %v2555 = vpop.permute.xlu0 %2554
          %2556 = vrot.lane.b32.xlu0 %v2512, 96
          %v2557 = vpop.permute.xlu0 %2556
          %2558 = vrot.lane.b32.xlu0 %v2498, 80
          %v2559 = vpop.permute.xlu0 %2558
          %2560 = vrot.lane.b32.xlu0 %v2512, 80
          %v2561 = vpop.permute.xlu0 %2560
          %2562 = vrot.lane.b32.xlu0 %v2498, 64
          %v2563 = vpop.permute.xlu0 %2562
          %2564 = vrot.lane.b32.xlu0 %v2512, 64
          %v2565 = vpop.permute.xlu0 %2564
          %2566 = vrot.lane.b32.xlu0 %v2498, 48
          %v2567 = vpop.permute.xlu0 %2566
          %2568 = vrot.lane.b32.xlu0 %v2512, 48
          %v2569 = vpop.permute.xlu0 %2568
          %2570 = vrot.lane.b32.xlu0 %v2498, 32
          %v2571 = vpop.permute.xlu0 %2570
          %2572 = vrot.lane.b32.xlu0 %v2512, 32
          %v2573 = vpop.permute.xlu0 %2572
          %2574 = vrot.lane.b32.xlu0 %v2498, 16
          %v2575 = vpop.permute.xlu0 %2574
          %2576 = vrot.lane.b32.xlu0 %v2512, 16
          %v2577 = vpop.permute.xlu0 %2576
          %2580 = vrot.lane.b32.xlu0 %v2505, 112
          %v2581 = vpop.permute.xlu0 %2580
          %2582 = vrot.lane.b32.xlu0 %v2519, 112
          %v2583 = vpop.permute.xlu0 %2582
          %2584 = vrot.lane.b32.xlu0 %v2505, 96
          %v2585 = vpop.permute.xlu0 %2584
          %2586 = vrot.lane.b32.xlu0 %v2519, 96
          %v2587 = vpop.permute.xlu0 %2586
          %2588 = vrot.lane.b32.xlu0 %v2505, 80
          %v2589 = vpop.permute.xlu0 %2588
          %2590 = vrot.lane.b32.xlu0 %v2519, 80
          %v2591 = vpop.permute.xlu0 %2590
          %2592 = vrot.lane.b32.xlu0 %v2505, 64
          %v2593 = vpop.permute.xlu0 %2592
          %2594 = vrot.lane.b32.xlu0 %v2519, 64
          %v2595 = vpop.permute.xlu0 %2594
          %2596 = vrot.lane.b32.xlu0 %v2505, 48
          %v2597 = vpop.permute.xlu0 %2596
          %2598 = vrot.lane.b32.xlu0 %v2519, 48
          %v2599 = vpop.permute.xlu0 %2598
          %2600 = vrot.lane.b32.xlu0 %v2505, 32
          %v2601 = vpop.permute.xlu0 %2600
          %2602 = vrot.lane.b32.xlu0 %v2519, 32
          %v2603 = vpop.permute.xlu0 %2602
          %2604 = vrot.lane.b32.xlu0 %v2505, 16
          %v2605 = vpop.permute.xlu0 %2604
          %2606 = vrot.lane.b32.xlu0 %v2519, 16
          %v2607 = vpop.permute.xlu0 %2606
          %v2608 = vrot.slane %v2512, 7
          %vm2609 = vcmask 1041409
          %v2610 = vsel %vm2609, %v2608, %v2498
          %v2611 = vrot.slane %v2553, 7
          %v2612 = vsel %vm2609, %v2611, %v2551
          %v2613 = vrot.slane %v2557, 7
          %v2614 = vsel %vm2609, %v2613, %v2555
          %v2615 = vrot.slane %v2561, 7
          %v2616 = vsel %vm2609, %v2615, %v2559
          %v2617 = vrot.slane %v2565, 7
          %v2618 = vsel %vm2609, %v2617, %v2563
          %v2619 = vrot.slane %v2569, 7
          %v2620 = vsel %vm2609, %v2619, %v2567
          %v2621 = vrot.slane %v2573, 7
          %v2622 = vsel %vm2609, %v2621, %v2571
          %v2623 = vrot.slane %v2577, 7
          %v2624 = vsel %vm2609, %v2623, %v2575
          %v2625 = vrot.slane %v2519, 7
          %v2626 = vsel %vm2609, %v2625, %v2505
          %v2627 = vrot.slane %v2583, 7
          %v2628 = vsel %vm2609, %v2627, %v2581
          %v2629 = vrot.slane %v2587, 7
          %v2630 = vsel %vm2609, %v2629, %v2585
          %v2631 = vrot.slane %v2591, 7
          %v2632 = vsel %vm2609, %v2631, %v2589
          %v2633 = vrot.slane %v2595, 7
          %v2634 = vsel %vm2609, %v2633, %v2593
          %v2635 = vrot.slane %v2599, 7
          %v2636 = vsel %vm2609, %v2635, %v2597
          %v2637 = vrot.slane %v2603, 7
          %v2638 = vsel %vm2609, %v2637, %v2601
          %v2639 = vrot.slane %v2607, 7
          %v2640 = vsel %vm2609, %v2639, %v2605
          %v2657 = vrot.slane %v2614, 4
          %vm2658 = vcmask 1047556
          %v2659 = vsel %vm2658, %v2657, %v2610
          %v2661 = vunpack.c.l.s4 1983009808
          %v2662 = vunpack.c.0.s8 %v2661
          %v2663 = vperm.slane %v2659, %v2662
          %v2664 = vrot.slane %v2616, 4
          %v2665 = vsel %vm2658, %v2664, %v2612
          %v2667 = vunpack.c.l.s4 1983009808
          %v2668 = vunpack.c.0.s8 %v2667
          %v2669 = vperm.slane %v2665, %v2668
          %v2670 = vrot.slane %v2622, 4
          %v2671 = vsel %vm2658, %v2670, %v2618
          %v2673 = vunpack.c.l.s4 1983009808
          %v2674 = vunpack.c.0.s8 %v2673
          %v2675 = vperm.slane %v2671, %v2674
          %v2676 = vrot.slane %v2624, 4
          %v2677 = vsel %vm2658, %v2676, %v2620
          %v2679 = vunpack.c.l.s4 1983009808
          %v2680 = vunpack.c.0.s8 %v2679
          %v2681 = vperm.slane %v2677, %v2680
          %v2682 = vrot.slane %v2669, 4
          %v2683 = vsel %vm2658, %v2682, %v2663
          %v2685 = vunpack.c.l.s4 1934713408
          %v2686 = vunpack.c.0.s8 %v2685
          %v2687 = vperm.slane %v2683, %v2686
          %v2688 = vrot.slane %v2681, 4
          %v2689 = vsel %vm2658, %v2688, %v2675
          %v2691 = vunpack.c.l.s4 1934713408
          %v2692 = vunpack.c.0.s8 %v2691
          %v2693 = vperm.slane %v2689, %v2692
          %v2694 = vrot.slane %v2693, 4
          %v2695 = vsel %vm2658, %v2694, %v2687
          %v2696 = vrot.slane %v2687, 4
          %v2697 = vsel %vm2658, %v2693, %v2696
          %v2698 = vrot.slane %v2630, 4
          %v2699 = vsel %vm2658, %v2698, %v2626
          %v2701 = vunpack.c.l.s4 1983009808
          %v2702 = vunpack.c.0.s8 %v2701
          %v2703 = vperm.slane %v2699, %v2702
          %v2704 = vrot.slane %v2632, 4
          %v2705 = vsel %vm2658, %v2704, %v2628
          %v2707 = vunpack.c.l.s4 1983009808
          %v2708 = vunpack.c.0.s8 %v2707
          %v2709 = vperm.slane %v2705, %v2708
          %v2710 = vrot.slane %v2638, 4
          %v2711 = vsel %vm2658, %v2710, %v2634
          %v2713 = vunpack.c.l.s4 1983009808
          %v2714 = vunpack.c.0.s8 %v2713
          %v2715 = vperm.slane %v2711, %v2714
          %v2716 = vrot.slane %v2640, 4
          %v2717 = vsel %vm2658, %v2716, %v2636
          %v2719 = vunpack.c.l.s4 1983009808
          %v2720 = vunpack.c.0.s8 %v2719
          %v2721 = vperm.slane %v2717, %v2720
          %v2722 = vrot.slane %v2709, 4
          %v2723 = vsel %vm2658, %v2722, %v2703
          %v2725 = vunpack.c.l.s4 1934713408
          %v2726 = vunpack.c.0.s8 %v2725
          %v2727 = vperm.slane %v2723, %v2726
          %v2728 = vrot.slane %v2721, 4
          %v2729 = vsel %vm2658, %v2728, %v2715
          %v2731 = vunpack.c.l.s4 1934713408
          %v2732 = vunpack.c.0.s8 %v2731
          %v2733 = vperm.slane %v2729, %v2732
          %v2734 = vrot.slane %v2733, 4
          %v2735 = vsel %vm2658, %v2734, %v2727
          %v2736 = vrot.slane %v2727, 4
          %v2737 = vsel %vm2658, %v2733, %v2736
          %vm2738 = vcmask 130048
          %v2739 = vsel %vm2738, %v2695, 0.0
          %v2740 = vsel %vm2738, %v2735, 0.0
          %v2741 = vadd.f32 %v2739, %v2740
          %v2742 = vrot.slane %v2741, 4
          %v2743 = vadd.f32 %v2741, %v2742
          %v2744 = vrot.slane %v2743, 2
          %v2745 = vadd.f32 %v2743, %v2744
          %v2746 = vrot.slane %v2745, 1
          %v2747 = vadd.f32 %v2745, %v2746
          %v2748 = vsel %vm2738, %v2697, 0.0
          %v2749 = vsel %vm2738, %v2737, 0.0
          %v2750 = vadd.f32 %v2748, %v2749
          %v2751 = vrot.slane %v2750, 4
          %v2752 = vadd.f32 %v2750, %v2751
          %v2753 = vrot.slane %v2752, 2
          %v2754 = vadd.f32 %v2752, %v2753
          %v2755 = vrot.slane %v2754, 1
          %v2756 = vadd.f32 %v2754, %v2755
          %v2757 = vmul.f32 %v2747, 0.00390625
          %v2758 = vmul.f32 %v2756, 0.00390625
          %2761 = vrot.lane.b32.xlu0 %v2526, 112
          %v2762 = vpop.permute.xlu0 %2761
          %2763 = vrot.lane.b32.xlu0 %v2540, 112
          %v2764 = vpop.permute.xlu0 %2763
          %2765 = vrot.lane.b32.xlu0 %v2526, 96
          %v2766 = vpop.permute.xlu0 %2765
          %2767 = vrot.lane.b32.xlu0 %v2540, 96
          %v2768 = vpop.permute.xlu0 %2767
          %2769 = vrot.lane.b32.xlu0 %v2526, 80
          %v2770 = vpop.permute.xlu0 %2769
          %2771 = vrot.lane.b32.xlu0 %v2540, 80
          %v2772 = vpop.permute.xlu0 %2771
          %2773 = vrot.lane.b32.xlu0 %v2526, 64
          %v2774 = vpop.permute.xlu0 %2773
          %2775 = vrot.lane.b32.xlu0 %v2540, 64
          %v2776 = vpop.permute.xlu0 %2775
          %2777 = vrot.lane.b32.xlu0 %v2526, 48
          %v2778 = vpop.permute.xlu0 %2777
          %2779 = vrot.lane.b32.xlu0 %v2540, 48
          %v2780 = vpop.permute.xlu0 %2779
          %2781 = vrot.lane.b32.xlu0 %v2526, 32
          %v2782 = vpop.permute.xlu0 %2781
          %2783 = vrot.lane.b32.xlu0 %v2540, 32
          %v2784 = vpop.permute.xlu0 %2783
          %2785 = vrot.lane.b32.xlu0 %v2526, 16
          %v2786 = vpop.permute.xlu0 %2785
          %2787 = vrot.lane.b32.xlu0 %v2540, 16
          %v2788 = vpop.permute.xlu0 %2787
          %2791 = vrot.lane.b32.xlu0 %v2533, 112
          %v2792 = vpop.permute.xlu0 %2791
          %2793 = vrot.lane.b32.xlu0 %v2547, 112
          %v2794 = vpop.permute.xlu0 %2793
          %2795 = vrot.lane.b32.xlu0 %v2533, 96
          %v2796 = vpop.permute.xlu0 %2795
          %2797 = vrot.lane.b32.xlu0 %v2547, 96
          %v2798 = vpop.permute.xlu0 %2797
          %2799 = vrot.lane.b32.xlu0 %v2533, 80
          %v2800 = vpop.permute.xlu0 %2799
          %2801 = vrot.lane.b32.xlu0 %v2547, 80
          %v2802 = vpop.permute.xlu0 %2801
          %2803 = vrot.lane.b32.xlu0 %v2533, 64
          %v2804 = vpop.permute.xlu0 %2803
          %2805 = vrot.lane.b32.xlu0 %v2547, 64
          %v2806 = vpop.permute.xlu0 %2805
          %2807 = vrot.lane.b32.xlu0 %v2533, 48
          %v2808 = vpop.permute.xlu0 %2807
          %2809 = vrot.lane.b32.xlu0 %v2547, 48
          %v2810 = vpop.permute.xlu0 %2809
          %2811 = vrot.lane.b32.xlu0 %v2533, 32
          %v2812 = vpop.permute.xlu0 %2811
          %2813 = vrot.lane.b32.xlu0 %v2547, 32
          %v2814 = vpop.permute.xlu0 %2813
          %2815 = vrot.lane.b32.xlu0 %v2533, 16
          %v2816 = vpop.permute.xlu0 %2815
          %2817 = vrot.lane.b32.xlu0 %v2547, 16
          %v2818 = vpop.permute.xlu0 %2817
          %v2819 = vrot.slane %v2540, 7
          %v2820 = vsel %vm2609, %v2819, %v2526
          %v2821 = vrot.slane %v2764, 7
          %v2822 = vsel %vm2609, %v2821, %v2762
          %v2823 = vrot.slane %v2768, 7
          %v2824 = vsel %vm2609, %v2823, %v2766
          %v2825 = vrot.slane %v2772, 7
          %v2826 = vsel %vm2609, %v2825, %v2770
          %v2827 = vrot.slane %v2776, 7
          %v2828 = vsel %vm2609, %v2827, %v2774
          %v2829 = vrot.slane %v2780, 7
          %v2830 = vsel %vm2609, %v2829, %v2778
          %v2831 = vrot.slane %v2784, 7
          %v2832 = vsel %vm2609, %v2831, %v2782
          %v2833 = vrot.slane %v2788, 7
          %v2834 = vsel %vm2609, %v2833, %v2786
          %v2835 = vrot.slane %v2547, 7
          %v2836 = vsel %vm2609, %v2835, %v2533
          %v2837 = vrot.slane %v2794, 7
          %v2838 = vsel %vm2609, %v2837, %v2792
          %v2839 = vrot.slane %v2798, 7
          %v2840 = vsel %vm2609, %v2839, %v2796
          %v2841 = vrot.slane %v2802, 7
          %v2842 = vsel %vm2609, %v2841, %v2800
          %v2843 = vrot.slane %v2806, 7
          %v2844 = vsel %vm2609, %v2843, %v2804
          %v2845 = vrot.slane %v2810, 7
          %v2846 = vsel %vm2609, %v2845, %v2808
          %v2847 = vrot.slane %v2814, 7
          %v2848 = vsel %vm2609, %v2847, %v2812
          %v2849 = vrot.slane %v2818, 7
          %v2850 = vsel %vm2609, %v2849, %v2816
          %v2867 = vrot.slane %v2824, 4
          %v2868 = vsel %vm2658, %v2867, %v2820
          %v2870 = vunpack.c.l.s4 1983009808
          %v2871 = vunpack.c.0.s8 %v2870
          %v2872 = vperm.slane %v2868, %v2871
          %v2873 = vrot.slane %v2826, 4
          %v2874 = vsel %vm2658, %v2873, %v2822
          %v2876 = vunpack.c.l.s4 1983009808
          %v2877 = vunpack.c.0.s8 %v2876
          %v2878 = vperm.slane %v2874, %v2877
          %v2879 = vrot.slane %v2832, 4
          %v2880 = vsel %vm2658, %v2879, %v2828
          %v2882 = vunpack.c.l.s4 1983009808
          %v2883 = vunpack.c.0.s8 %v2882
          %v2884 = vperm.slane %v2880, %v2883
          %v2885 = vrot.slane %v2834, 4
          %v2886 = vsel %vm2658, %v2885, %v2830
          %v2888 = vunpack.c.l.s4 1983009808
          %v2889 = vunpack.c.0.s8 %v2888
          %v2890 = vperm.slane %v2886, %v2889
          %v2891 = vrot.slane %v2878, 4
          %v2892 = vsel %vm2658, %v2891, %v2872
          %v2894 = vunpack.c.l.s4 1934713408
          %v2895 = vunpack.c.0.s8 %v2894
          %v2896 = vperm.slane %v2892, %v2895
          %v2897 = vrot.slane %v2890, 4
          %v2898 = vsel %vm2658, %v2897, %v2884
          %v2900 = vunpack.c.l.s4 1934713408
          %v2901 = vunpack.c.0.s8 %v2900
          %v2902 = vperm.slane %v2898, %v2901
          %v2903 = vrot.slane %v2902, 4
          %v2904 = vsel %vm2658, %v2903, %v2896
          %v2905 = vrot.slane %v2896, 4
          %v2906 = vsel %vm2658, %v2902, %v2905
          %v2907 = vrot.slane %v2840, 4
          %v2908 = vsel %vm2658, %v2907, %v2836
          %v2910 = vunpack.c.l.s4 1983009808
          %v2911 = vunpack.c.0.s8 %v2910
          %v2912 = vperm.slane %v2908, %v2911
          %v2913 = vrot.slane %v2842, 4
          %v2914 = vsel %vm2658, %v2913, %v2838
          %v2916 = vunpack.c.l.s4 1983009808
          %v2917 = vunpack.c.0.s8 %v2916
          %v2918 = vperm.slane %v2914, %v2917
          %v2919 = vrot.slane %v2848, 4
          %v2920 = vsel %vm2658, %v2919, %v2844
          %v2922 = vunpack.c.l.s4 1983009808
          %v2923 = vunpack.c.0.s8 %v2922
          %v2924 = vperm.slane %v2920, %v2923
          %v2925 = vrot.slane %v2850, 4
          %v2926 = vsel %vm2658, %v2925, %v2846
          %v2928 = vunpack.c.l.s4 1983009808
          %v2929 = vunpack.c.0.s8 %v2928
          %v2930 = vperm.slane %v2926, %v2929
          %v2931 = vrot.slane %v2918, 4
          %v2932 = vsel %vm2658, %v2931, %v2912
          %v2934 = vunpack.c.l.s4 1934713408
          %v2935 = vunpack.c.0.s8 %v2934
          %v2936 = vperm.slane %v2932, %v2935
          %v2937 = vrot.slane %v2930, 4
          %v2938 = vsel %vm2658, %v2937, %v2924
          %v2940 = vunpack.c.l.s4 1934713408
          %v2941 = vunpack.c.0.s8 %v2940
          %v2942 = vperm.slane %v2938, %v2941
          %v2943 = vrot.slane %v2942, 4
          %v2944 = vsel %vm2658, %v2943, %v2936
          %v2945 = vrot.slane %v2936, 4
          %v2946 = vsel %vm2658, %v2942, %v2945
          %v2947 = vsel %vm2738, %v2904, -inf
          %v2948 = vsel %vm2738, %v2944, -inf
          %v2949 = vmax.f32 %v2947, %v2948
          %v2950 = vrot.slane %v2949, 4
          %v2951 = vmax.f32 %v2949, %v2950
          %v2952 = vrot.slane %v2951, 2
          %v2953 = vmax.f32 %v2951, %v2952
          %v2954 = vrot.slane %v2953, 1
          %v2955 = vmax.f32 %v2953, %v2954
          %v2956 = vsel %vm2738, %v2906, -inf
          %v2957 = vsel %vm2738, %v2946, -inf
          %v2958 = vmax.f32 %v2956, %v2957
          %v2959 = vrot.slane %v2958, 4
          %v2960 = vmax.f32 %v2958, %v2959
          %v2961 = vrot.slane %v2960, 2
          %v2962 = vmax.f32 %v2960, %v2961
          %v2963 = vrot.slane %v2962, 1
          %v2964 = vmax.f32 %v2962, %v2963
          %v2967 = vsel %vm2609, %v2758, %v2757
          %v2971 = vsel %vm2609, %v2964, %v2955
          %2972 = vrot.lane.b32.xlu0 %v2971, 16
          %v2973 = vpop.permute.xlu0 %2972
          %v2975 = vsel %vm2738, %v2967, %v2973
          %v2976 = vld [vmem:[%s551] sm:$0xff]
          %v2977 = vld [vmem:[%s551 + $0x8] sm:$0xff]
          %v2978 = vld [vmem:[%s551 + $0x10] sm:$0xff]
          %v2979 = vld [vmem:[%s551 + $0x18] sm:$0xff]
          %v2980 = vld [vmem:[%s560] sm:$0x1]
          %v2982 = vperm.slane %v2980, 0
          %vm2984 = vcmask 261120
          %v2986 = vsel %vm2984, %v2975, 0
          %2988 = vmatpush.msra.mxu0 0.0
          %2989 = vmatpush.msra.mxu0 0.0
          %2990 = vmatpush.msra.mxu0 0.0
          %2991 = vmatpush.msra.mxu0 0.0
          %2992 = vmatpush.msra.mxu0 0.0
          %2993 = vmatpush.msra.mxu0 0.0
          %2994 = vmatpush.msra.mxu0 0.0
          %2995 = vmatpush.msra.mxu0 0.0
          %2996 = vmatpush.msra.mxu0 0.0
          %2997 = vmatpush.msra.mxu0 0.0
          %2998 = vmatpush.msra.mxu0 0.0
          %2999 = vmatpush.msra.mxu0 0.0
          %3000 = vmatpush.msra.mxu0 %v2979
          %3001 = vmatpush.msra.mxu0 %v2978
          %3002 = vmatpush.msra.mxu0 %v2977
          %3003 = vmatpush.msra.mxu0 %v2976
          %3004 = vmatmul.f32.gmra.mxu0 %v2986
          %v3005 = vpop.f32.mrf.mxu0
          %v3006 = vadd.f32 %v2982, %v3005
          %3007 = vdwg.mxu0
          %s3008 = sadd.s32 %s1577, 1
          %s3009 = sld [smem:[#allocation3 + %s3008]]
          %vm3010 = vcmp.ge.f32.partialorder %v3006, 0.0
          %v3011 = vstv %s3009
          %v3012 = vmul.f32 %v3011, %v3006
          %v3013 = vsel %vm3010, %v3006, %v3012
          %v3014 = vld [vmem:[%s570] sm:$0xf]
          %v3015 = vld [vmem:[%s580] sm:$0x3]
          %v3017 = vperm.slane %v3015, 0
          %v3018 = vperm.slane %v3015, 1
          %3022 = vst [vmem:[#allocation1] ss:$4 sm:$0xff] %v3014
          %v3023 = vld.sshfl [vmem:[#allocation1] sm:$0xff pattern:$0x73625140]
          %v3024 = vld.sshfl [vmem:[#allocation1 + $0x8] sm:$0xff pattern:$0x73625140]
          %vm3025 = vcmask 15360
          %v3027 = vsel %vm3025, %v3013, 0
          %vm3029 = vcmask 1041408
          %v3030 = vsel %vm3029, %v3023, 0
          %v3032 = vsel %vm3029, %v3024, 0
          %3034 = vmatpush.msra.mxu0 0.0
          %3035 = vmatpush.msra.mxu0 0.0
          %3036 = vmatpush.msra.mxu0 0.0
          %3037 = vmatpush.msra.mxu0 0.0
          %3038 = vmatpush.msra.mxu0 0.0
          %3039 = vmatpush.msra.mxu0 0.0
          %3040 = vmatpush.msra.mxu0 0.0
          %3041 = vmatpush.msra.mxu0 0.0
          %3042 = vmatpush.msra.mxu0 0.0
          %3043 = vmatpush.msra.mxu0 0.0
          %3044 = vmatpush.msra.mxu0 0.0
          %3045 = vmatpush.msra.mxu0 0.0
          %3046 = vmatpush.msra.mxu0 0.0
          %3047 = vmatpush.msra.mxu0 0.0
          %3048 = vmatpush.msra.mxu0 0.0
          %3049 = vmatpush.msra.mxu0 %v3030
          %3050 = vmatmul.f32.gmra.mxu0 %v3027
          %v3051 = vpop.f32.mrf.mxu0
          %v3052 = vadd.f32 %v3017, %v3051
          %3053 = vdwg.mxu0
          %3054 = vmatpush.msra.mxu0 0.0
          %3055 = vmatpush.msra.mxu0 0.0
          %3056 = vmatpush.msra.mxu0 0.0
          %3057 = vmatpush.msra.mxu0 0.0
          %3058 = vmatpush.msra.mxu0 0.0
          %3059 = vmatpush.msra.mxu0 0.0
          %3060 = vmatpush.msra.mxu0 0.0
          %3061 = vmatpush.msra.mxu0 0.0
          %3062 = vmatpush.msra.mxu0 0.0
          %3063 = vmatpush.msra.mxu0 0.0
          %3064 = vmatpush.msra.mxu0 0.0
          %3065 = vmatpush.msra.mxu0 0.0
          %3066 = vmatpush.msra.mxu0 0.0
          %3067 = vmatpush.msra.mxu0 0.0
          %3068 = vmatpush.msra.mxu0 0.0
          %3069 = vmatpush.msra.mxu0 %v3032
          %3070 = vmatmul.f32.gmra.mxu0 %v3027
          %v3071 = vpop.f32.mrf.mxu0
          %v3072 = vadd.f32 %v3018, %v3071
          %3073 = vdwg.mxu0
          %v3074 = vxor.u32 %v3052, 2147483648
          %v3075 = vxor.u32 %v3072, 2147483648
          %v3076 = vmul.f32 %v3074, 1.442695
          %v3077 = vpow.pop %v3076
          %v3078 = vmul.f32 %v3075, 1.442695
          %v3079 = vpow.pop %v3078
          %v3080 = vadd.f32 %v3077, 1.0
          %v3081 = vadd.f32 %v3079, 1.0
          %v3082 = vrcp.pop %v3080
          %v3083 = vmul.f32 %v3080, %v3082
          %v3084 = vsub.f32 1.0, %v3083
          %v3085 = vmul.f32 %v3082, %v3084
          %v3086 = vadd.f32 %v3082, %v3085
          %vm3087 = vweird.f32 %v3080
          %vm3088 = vweird.f32 %v3082
          %vm3089 = vmor %vm3087, %vm3088
          %v3090 = vsel %vm3089, %v3082, %v3086
          %v3091 = vand.u32 2147483647, %v3080
          %vm3092 = vcmp.eq.f32.partialorder %v3091, 8.507059e+37
          %v3093 = vand.u32 %v3080, 2147483648
          %v3094 = vor.u32 1.1754944e-38, %v3093
          %v3095 = vsel %vm3092, %v3094, %v3090
          %v3096 = vmul.f32 1.0, %v3095
          %v3097 = vrcp.pop %v3081
          %v3098 = vmul.f32 %v3081, %v3097
          %v3099 = vsub.f32 1.0, %v3098
          %v3100 = vmul.f32 %v3097, %v3099
          %v3101 = vadd.f32 %v3097, %v3100
          %vm3102 = vweird.f32 %v3081
          %vm3103 = vweird.f32 %v3097
          %vm3104 = vmor %vm3102, %vm3103
          %v3105 = vsel %vm3104, %v3097, %v3101
          %v3106 = vand.u32 2147483647, %v3081
          %vm3107 = vcmp.eq.f32.partialorder %v3106, 8.507059e+37
          %v3108 = vand.u32 %v3081, 2147483648
          %v3109 = vor.u32 1.1754944e-38, %v3108
          %v3110 = vsel %vm3107, %v3109, %v3105
          %v3111 = vmul.f32 1.0, %v3110
          %v3114 = vrot.slane %v3111, 7
          %vm3115 = vcmask 1040384
          %v3116 = vsel %vm3115, %v3096, %v3114
          %v3117 = vsel %vm2609, %v3096, %v3114
          %v3118 = vrot.slane %v3117, 1
          %v3119 = vperm.slane %v3116, 0
          %v3120 = vperm.slane %v3116, 1
          %v3121 = vperm.slane %v3118, 0
          %v3122 = vperm.slane %v3118, 1
          %v3127 = vmul.f32 %v2484, %v3119
          %v3128 = vmul.f32 %v2485, %v3120
          %v3129 = vmul.f32 %v2486, %v3119
          %v3130 = vmul.f32 %v2487, %v3120
          %v3131 = vmul.f32 %v2488, %v3121
          %v3132 = vmul.f32 %v2489, %v3122
          %v3133 = vmul.f32 %v2490, %v3121
          %v3134 = vmul.f32 %v2491, %v3122
          %v3135 = vmul.f32 %v3127, 1.2
          %v3136 = vmul.f32 %v3128, 1.2
          %v3137 = vmul.f32 %v3129, 1.2
          %v3138 = vmul.f32 %v3130, 1.2
          %v3139 = vmul.f32 %v3131, 1.2
          %v3140 = vmul.f32 %v3132, 1.2
          %v3141 = vmul.f32 %v3133, 1.2
          %v3142 = vmul.f32 %v3134, 1.2
          %v3143 = vadd.f32 %v668, %v3135
          %v3144 = vadd.f32 %v669, %v3136
          %v3145 = vadd.f32 %v670, %v3137
          %v3146 = vadd.f32 %v671, %v3138
          %v3147 = vadd.f32 %v672, %v3139
          %v3148 = vadd.f32 %v673, %v3140
          %v3149 = vadd.f32 %v674, %v3141
          %v3150 = vadd.f32 %v675, %v3142
          %3151 = vst [vmem:[#allocation2] sm:$0xff] %v3143
          %3152 = vst [vmem:[#allocation2 + $0x8] sm:$0xff] %v3144
          %3153 = vst [vmem:[#allocation2 + $0x10] sm:$0xff] %v3145
          %3154 = vst [vmem:[#allocation2 + $0x18] sm:$0xff] %v3146
          %3155 = vst [vmem:[#allocation2 + $0x20] sm:$0xff] %v3147
          %3156 = vst [vmem:[#allocation2 + $0x28] sm:$0xff] %v3148
          %3157 = vst [vmem:[#allocation2 + $0x30] sm:$0xff] %v3149
          %3158 = vst [vmem:[#allocation2 + $0x38] sm:$0xff] %v3150
        $region104: #{_lambda_.1} parent=59 // pred_fallthru
          _
        %p3159 = scmp.eq.s32.totalorder %s37, 2
        // Predicated region
        $region105: #{_lambda_.1} parent=59 // pred_check
          %p3160 = pneg %p3159
        $region106: #{_lambda_.1} parent=59 // pred_check_branch
          %3162 = sbr.rel (%p3160) target = $region108
        $region107: #{_lambda_.1} parent=59 // pred_region
          %v3163 = vld [vmem:[%s1] sm:$0xff]
          %v3164 = vld [vmem:[%s1 + $0x8] sm:$0xff]
          %v3165 = vld [vmem:[%s1 + $0x10] sm:$0xff]
          %v3166 = vld [vmem:[%s1 + $0x18] sm:$0xff]
          %v3167 = vld [vmem:[%s1 + $0x20] sm:$0xff]
          %v3168 = vld [vmem:[%s1 + $0x28] sm:$0xff]
          %v3169 = vld [vmem:[%s1 + $0x30] sm:$0xff]
          %v3170 = vld [vmem:[%s1 + $0x38] sm:$0xff]
          %v3171 = vmul.f32 %v1565, 1.1
          %v3172 = vmul.f32 %v1566, 1.1
          %v3173 = vmul.f32 %v1567, 1.1
          %v3174 = vmul.f32 %v1568, 1.1
          %v3175 = vmul.f32 %v1569, 1.1
          %v3176 = vmul.f32 %v1570, 1.1
          %v3177 = vmul.f32 %v1571, 1.1
          %v3178 = vmul.f32 %v1572, 1.1
          %v3179 = vadd.f32 %v3163, %v3171
          %v3180 = vadd.f32 %v3164, %v3172
          %v3181 = vadd.f32 %v3165, %v3173
          %v3182 = vadd.f32 %v3166, %v3174
          %v3183 = vadd.f32 %v3167, %v3175
          %v3184 = vadd.f32 %v3168, %v3176
          %v3185 = vadd.f32 %v3169, %v3177
          %v3186 = vadd.f32 %v3170, %v3178
          %3187 = vst [vmem:[%s10] sm:$0xff] %v3179
          %3188 = vst [vmem:[%s10 + $0x8] sm:$0xff] %v3180
          %3189 = vst [vmem:[%s10 + $0x10] sm:$0xff] %v3181
          %3190 = vst [vmem:[%s10 + $0x18] sm:$0xff] %v3182
          %3191 = vst [vmem:[%s10 + $0x20] sm:$0xff] %v3183
          %3192 = vst [vmem:[%s10 + $0x28] sm:$0xff] %v3184
          %3193 = vst [vmem:[%s10 + $0x30] sm:$0xff] %v3185
          %3194 = vst [vmem:[%s10 + $0x38] sm:$0xff] %v3186
        $region108: #{_lambda_.1} parent=59 // pred_fallthru
          _
        // Predicated region
        $region109: #{_lambda_.1} parent=59 // pred_check
          %p3195 = pneg %p300
        $region110: #{_lambda_.1} parent=59 // pred_check_branch
          %3197 = sbr.rel (%p3195) target = $region112
        $region111: #{_lambda_.1} parent=59 // pred_region
          _
        $region112: #{_lambda_.1} parent=59 // pred_fallthru
          _
        // Predicated region
        $region113: #{_lambda_.1} parent=59 // pred_check
          %p3198 = pneg %p300
        $region114: #{_lambda_.1} parent=59 // pred_check_branch
          %3200 = sbr.rel (%p3198) target = $region116
        $region115: #{_lambda_.1} parent=59 // pred_region
          _
        $region116: #{_lambda_.1} parent=59 // pred_fallthru
          _
      $region60: #{_lambda_.1} parent=5 // pred_fallthru
        _
      %p3201 = scmp.le.s32.totalorder 2, %s32
      // Predicated region
      $region117: #{_lambda_.1} parent=5 // pred_check
        %p3202 = pneg %p3201
      $region118: #{_lambda_.1} parent=5 // pred_check_branch
        %3204 = sbr.rel (%p3202) target = $region120
      $region119: #{_lambda_.1} parent=5 // pred_region
        %s3205 = ssub.s32 %s32, 2
      $region120: #{_lambda_.1} parent=5 // pred_fallthru
        _
    $region6: #{_lambda_.1} parent=1 // loop_footer
      %s36 = sadd.s32 1, %s32
    $region7: #{_lambda_.1} parent=1 // loop_footer_branch
      %31 = sbr.rel target = $region3
    $region8: #{_lambda_.1} parent=1 // loop_exit
      _
    %3206 = vsyncpa [#allocation4], 1
    %s3207 = scalar_lea.sflag [#allocation4], 1
    %3208 = vsyncpa %s3207, 1
    %3209 = vsyncpa [#allocation8], 1
    %s3210 = scalar_lea.sflag [#allocation8], 1
    %3211 = vsyncpa %s3210, 1
    %3212 = vsyncpa [#allocation11], 1
    %s3213 = scalar_lea.sflag [#allocation11], 1
    %3214 = vsyncpa %s3213, 1
    %3215 = vsyncpa [#allocation14], 1
    %s3216 = scalar_lea.sflag [#allocation14], 1
    %3217 = vsyncpa %s3216, 1
    %3218 = vsyncpa [#allocation17], 1
    %s3219 = scalar_lea.sflag [#allocation17], 1
    %3220 = vsyncpa %s3219, 1
    %3221 = vsyncpa [#allocation5], 1
    %s3222 = scalar_lea.sflag [#allocation5], 1
    %3223 = vsyncpa %s3222, 1

</llo_original>
